<compile_context>
chip_gen: v6e
topology: v6e:2x2x1
jax: 0.10.0
libtpu: 0.0.40
codegen_flags: <defaults>
</compile_context>

<pallas_src>
import functools
import math

import jax
import jax.numpy as jnp
from jax.experimental import pallas as pl
from jax.experimental.pallas import tpu as pltpu

# ---------------------------------------------------------------------------
# Static model configuration (Python ints -> never traced)
# ---------------------------------------------------------------------------
INPUT_DIM = 6
D_MODEL = 128
NHEAD = 8
HEAD_DIM = D_MODEL // NHEAD
NUM_LAYERS = 3
DFF = 512
LN_EPS = 1e-5


def _layer_norm_f32(x, gamma, beta):
    mean = jnp.mean(x, axis=-1, keepdims=True)
    var = jnp.mean(jnp.square(x - mean), axis=-1, keepdims=True)
    return (x - mean) * jax.lax.rsqrt(var + LN_EPS) * gamma + beta


# ---------------------------------------------------------------------------
# Fused encoder-stack kernel
#   grid = (batch_tiles, num_layers);  layer axis innermost ("arbitrary")
#   activation for the current batch tile lives in VMEM scratch across layers
# ---------------------------------------------------------------------------
def _encoder_stack_kernel(
        src_ref, emb_w_ref, emb_b_ref, pe_ref,
        g1_ref, be1_ref, wqkv_ref, bqkv_ref, wo_ref, bo_ref,
        g2_ref, be2_ref, w1_ref, b1_ref, w2_ref, b2_ref,
        out_ref, x_scr, *, b_tile, seq):
    layer = pl.program_id(1)
    bf16 = jnp.bfloat16

    # Layer 0: input embedding (sqrt(d_model) pre-folded into the weights)
    # plus positional encoding, written into the resident VMEM activation.
    @pl.when(layer == 0)
    def _():
        emb = (jnp.dot(src_ref[...], emb_w_ref[...],
                       preferred_element_type=jnp.float32)
               + emb_b_ref[...])                                  # (TM, D)
        pe = pe_ref[...]                                          # (S, D)
        x_scr[...] = (emb.reshape(b_tile, seq, D_MODEL)
                      + pe[None, :, :]).reshape(b_tile * seq, D_MODEL)
        # TODO(synk): nn.Dropout is eval-mode identity (no stochastic mask).

    x = x_scr[...]                                                # (TM, D) f32

    # ---- pre-norm multi-head self-attention block ----
    xn = _layer_norm_f32(x, g1_ref[0], be1_ref[0])
    qkv = (jnp.dot(xn.astype(bf16), wqkv_ref[0],
                   preferred_element_type=jnp.float32)
           + bqkv_ref[0])                                         # (TM, 3D)

    scale = 1.0 / math.sqrt(HEAD_DIM)
    head_outs = []
    for h in range(NHEAD):                    # static unroll; one batch dim
        lo = h * HEAD_DIM
        q = (qkv[:, lo:lo + HEAD_DIM] * scale).reshape(b_tile, seq, HEAD_DIM)
        k = qkv[:, D_MODEL + lo:D_MODEL + lo + HEAD_DIM].reshape(
            b_tile, seq, HEAD_DIM)
        v = qkv[:, 2 * D_MODEL + lo:2 * D_MODEL + lo + HEAD_DIM].reshape(
            b_tile, seq, HEAD_DIM)
        s = jnp.einsum('bqd,bkd->bqk', q.astype(bf16), k.astype(bf16),
                       preferred_element_type=jnp.float32)
        m = jnp.max(s, axis=-1, keepdims=True)
        p = jnp.exp(s - m)
        p = p * pl.reciprocal(jnp.sum(p, axis=-1, keepdims=True), approx=True)
        oh = jnp.einsum('bqk,bkd->bqd', p.astype(bf16), v.astype(bf16),
                        preferred_element_type=jnp.float32)
        head_outs.append(oh.reshape(b_tile * seq, HEAD_DIM))
    attn = jnp.concatenate(head_outs, axis=-1)                    # (TM, D)

    x = x + (jnp.dot(attn.astype(bf16), wo_ref[0],
                     preferred_element_type=jnp.float32) + bo_ref[0])

    # ---- pre-norm feed-forward block ----
    xn = _layer_norm_f32(x, g2_ref[0], be2_ref[0])
    h1 = jnp.maximum(
        jnp.dot(xn.astype(bf16), w1_ref[0],
                preferred_element_type=jnp.float32) + b1_ref[0], 0.0)
    x = x + (jnp.dot(h1.astype(bf16), w2_ref[0],
                     preferred_element_type=jnp.float32) + b2_ref[0])

    x_scr[...] = x                                                # layer carry

    # Final layer: emit only the last token of each sequence (B_TILE, D).
    @pl.when(layer == pl.num_programs(1) - 1)
    def _():
        last = x.reshape(b_tile, seq, D_MODEL)[:, seq - 1, :]
        out_ref[0, :, :] = last


# ---------------------------------------------------------------------------
# Parameters (deterministic, PyTorch-Linear-style uniform init)
# ---------------------------------------------------------------------------
def init_params(key):
    def dense(k, fan_in, fan_out):
        kw, kb = jax.random.split(k)
        bound = 1.0 / math.sqrt(fan_in)
        w = jax.random.uniform(kw, (fan_in, fan_out), jnp.float32, -bound, bound)
        b = jax.random.uniform(kb, (fan_out,), jnp.float32, -bound, bound)
        return w, b

    keys = jax.random.split(key, 2 + NUM_LAYERS)
    params = {}
    emb_w, emb_b = dense(keys[0], INPUT_DIM, D_MODEL)
    # Fold the * sqrt(d_model) scale of the original forward into the
    # embedding parameters once (mathematically identical forward).
    params['emb_w'] = emb_w * math.sqrt(D_MODEL)
    params['emb_b'] = emb_b * math.sqrt(D_MODEL)
    params['fc_w'], params['fc_b'] = dense(keys[1], D_MODEL, 1)

    wqkv, bqkv, wo, bo, w1, b1, w2, b2 = [], [], [], [], [], [], [], []
    for l in range(NUM_LAYERS):
        k = jax.random.split(keys[2 + l], 6)
        wq, bq = dense(k[0], D_MODEL, D_MODEL)
        wk, bk = dense(k[1], D_MODEL, D_MODEL)
        wv, bv = dense(k[2], D_MODEL, D_MODEL)
        wo_l, bo_l = dense(k[3], D_MODEL, D_MODEL)
        w1_l, b1_l = dense(k[4], D_MODEL, DFF)
        w2_l, b2_l = dense(k[5], DFF, D_MODEL)
        wqkv.append(jnp.concatenate([wq, wk, wv], axis=1))        # (D, 3D)
        bqkv.append(jnp.concatenate([bq, bk, bv])[None, :])       # (1, 3D)
        wo.append(wo_l); bo.append(bo_l[None, :])
        w1.append(w1_l); b1.append(b1_l[None, :])
        w2.append(w2_l); b2.append(b2_l[None, :])

    ones = jnp.ones((NUM_LAYERS, 1, D_MODEL), jnp.float32)
    zeros = jnp.zeros((NUM_LAYERS, 1, D_MODEL), jnp.float32)
    params.update(
        # Big matmul weights stored in bf16 (f32 MXU accumulation in-kernel).
        wqkv=jnp.stack(wqkv).astype(jnp.bfloat16),
        wo=jnp.stack(wo).astype(jnp.bfloat16),
        w1=jnp.stack(w1).astype(jnp.bfloat16),
        w2=jnp.stack(w2).astype(jnp.bfloat16),
        bqkv=jnp.stack(bqkv), bo=jnp.stack(bo),
        b1=jnp.stack(b1), b2=jnp.stack(b2),
        g1=ones, be1=zeros, g2=ones, be2=zeros,
    )
    # TODO(synk): nn.MultiheadAttention xavier-inits the combined in_proj; this
    # uses Linear-style uniform init (same forward semantics, different init).
    return params


def positional_encoding(seq_len, d_model):
    position = jnp.arange(seq_len, dtype=jnp.float32)[:, None]
    div_term = jnp.exp(jnp.arange(0, d_model, 2, dtype=jnp.float32)
                       * (-math.log(10000.0) / d_model))
    pe = jnp.zeros((seq_len, d_model), dtype=jnp.float32)
    pe = pe.at[:, 0::2].set(jnp.sin(position * div_term))
    pe = pe.at[:, 1::2].set(jnp.cos(position * div_term))
    return pe


def _pick_batch_tile(batch, seq, target_rows=512):
    """Largest divisor of `batch` giving whole-sequence tiles of <= target_rows
    rows (multiple of 8).  Falls back to the full batch (always legal)."""
    best = batch
    for d in range(1, batch + 1):
        if batch % d:
            continue
        rows = d * seq
        if rows % 8 == 0 and rows <= target_rows:
            best = d
    return best


# ---------------------------------------------------------------------------
# Forward pass
# ---------------------------------------------------------------------------
def forward(params, src):
    B, S, in_dim = src.shape
    assert in_dim == INPUT_DIM
    M = B * S
    pad = (-INPUT_DIM) % 8                                  # sublane alignment

    b_tile = _pick_batch_tile(B, S)
    num_tiles = B // b_tile
    tile_m = b_tile * S

    src_p = jnp.pad(src.reshape(M, INPUT_DIM).astype(jnp.float32),
                    ((0, 0), (0, pad)))
    emb_w_p = jnp.pad(params['emb_w'], ((0, pad), (0, 0)))  # zero rows: exact
    emb_b = params['emb_b'].reshape(1, D_MODEL)
    pe = positional_encoding(S, D_MODEL)                    # (S, D) only

    row_map = lambda m, l: (m, 0)
    const2 = lambda m, l: (0, 0)
    layer_map = lambda m, l: (l, 0, 0)

    last_tok = pl.pallas_call(
        functools.partial(_encoder_stack_kernel, b_tile=b_tile, seq=S),
        out_shape=jax.ShapeDtypeStruct((num_tiles, b_tile, D_MODEL),
                                       jnp.float32),
        grid_spec=pltpu.PrefetchScalarGridSpec(
            num_scalar_prefetch=0,
            grid=(num_tiles, NUM_LAYERS),
            in_specs=[
                pl.BlockSpec((tile_m, INPUT_DIM + pad), row_map),    # src
                pl.BlockSpec((INPUT_DIM + pad, D_MODEL), const2),    # emb_w
                pl.BlockSpec((1, D_MODEL), const2),                  # emb_b
                pl.BlockSpec((S, D_MODEL), const2),                  # pe
                pl.BlockSpec((1, 1, D_MODEL), layer_map),            # g1
                pl.BlockSpec((1, 1, D_MODEL), layer_map),            # be1
                pl.BlockSpec((1, D_MODEL, 3 * D_MODEL), layer_map),  # wqkv
                pl.BlockSpec((1, 1, 3 * D_MODEL), layer_map),        # bqkv
                pl.BlockSpec((1, D_MODEL, D_MODEL), layer_map),      # wo
                pl.BlockSpec((1, 1, D_MODEL), layer_map),            # bo
                pl.BlockSpec((1, 1, D_MODEL), layer_map),            # g2
                pl.BlockSpec((1, 1, D_MODEL), layer_map),            # be2
                pl.BlockSpec((1, D_MODEL, DFF), layer_map),          # w1
                pl.BlockSpec((1, 1, DFF), layer_map),                # b1
                pl.BlockSpec((1, DFF, D_MODEL), layer_map),          # w2
                pl.BlockSpec((1, 1, D_MODEL), layer_map),            # b2
            ],
            out_specs=pl.BlockSpec((1, b_tile, D_MODEL),
                                   lambda m, l: (m, 0, 0)),
            scratch_shapes=[pltpu.VMEM((tile_m, D_MODEL), jnp.float32)],
        ),
        compiler_params=pltpu.CompilerParams(
            dimension_semantics=("parallel", "arbitrary")),
    )(src_p, emb_w_p, emb_b, pe,
      params['g1'], params['be1'], params['wqkv'], params['bqkv'],
      params['wo'], params['bo'], params['g2'], params['be2'],
      params['w1'], params['b1'], params['w2'], params['b2'])

    last = last_tok.reshape(B, D_MODEL)                     # (B, D)
    pred = last @ params['fc_w'] + params['fc_b']           # (B, 1) — tiny, XLA
    return pred[:, 0]                                       # (B,)


# ---------------------------------------------------------------------------
# Pure-JAX f32 reference (weights upcast; for numerical sanity check)
# ---------------------------------------------------------------------------
def forward_ref(params, src):
    B, S, _ = src.shape
    f32 = lambda a: a.astype(jnp.float32)
    x = src @ params['emb_w'] + params['emb_b']     # sqrt(d_model) pre-folded
    x = x + positional_encoding(S, D_MODEL)[None]

    def ln(t, g, b):
        mean = t.mean(-1, keepdims=True)
        var = jnp.mean(jnp.square(t - mean), axis=-1, keepdims=True)
        return (t - mean) * jax.lax.rsqrt(var + LN_EPS) * g + b

    def heads(t):
        return t.reshape(B, S, NHEAD, HEAD_DIM).transpose(0, 2, 1, 3)

    for l in range(NUM_LAYERS):
        xn = ln(x, params['g1'][l, 0], params['be1'][l, 0])
        qkv = xn @ f32(params['wqkv'][l]) + params['bqkv'][l, 0]
        q, k, v = jnp.split(qkv, 3, axis=-1)
        s = jnp.einsum('bhqd,bhkd->bhqk', heads(q), heads(k)) / math.sqrt(HEAD_DIM)
        p = jax.nn.softmax(s, axis=-1)
        o = jnp.einsum('bhqk,bhkd->bhqd', p, heads(v))
        o = o.transpose(0, 2, 1, 3).reshape(B, S, D_MODEL)
        x = x + (o @ f32(params['wo'][l]) + params['bo'][l, 0])
        xn = ln(x, params['g2'][l, 0], params['be2'][l, 0])
        h = jnp.maximum(xn @ f32(params['w1'][l]) + params['b1'][l, 0], 0.0)
        x = x + (h @ f32(params['w2'][l]) + params['b2'][l, 0])

    last = x[:, -1, :]
    return (last @ params['fc_w'] + params['fc_b'])[:, 0]


if __name__ == "__main__":
    key = jax.random.PRNGKey(0)
    pkey, xkey = jax.random.split(key)

    B, S = 2, 8   # small demo shapes; module default is seq_len=40, input_dim=6
    params = init_params(pkey)
    src = jax.random.normal(xkey, (B, S, INPUT_DIM), dtype=jnp.float32)

    out = jax.jit(forward)(params, src)
    out = jax.block_until_ready(out)
    assert out.shape == (B,), out.shape
    assert bool(jnp.all(jnp.isfinite(out)))

    ref = forward_ref(params, src)
    # bf16 matmuls (f32 accumulation) + approx softmax reciprocal vs f32 ref.
    assert bool(jnp.allclose(out, ref, rtol=2e-2, atol=2e-2)), (out, ref)

    print("KERNEL_OK")
</pallas_src>

<mosaic_0001>
module attributes {stable_mosaic.version = 11 : i64} {
  func.func @_encoder_stack_kernel(%arg0: i32, %arg1: i32, %arg2: memref<16x8xf32, #tpu.memory_space<vmem>>, %arg3: memref<8x128xf32, #tpu.memory_space<vmem>>, %arg4: memref<1x128xf32, #tpu.memory_space<vmem>>, %arg5: memref<8x128xf32, #tpu.memory_space<vmem>>, %arg6: memref<1x1x128xf32, #tpu.memory_space<vmem>>, %arg7: memref<1x1x128xf32, #tpu.memory_space<vmem>>, %arg8: memref<1x128x384xbf16, #tpu.memory_space<vmem>>, %arg9: memref<1x1x384xf32, #tpu.memory_space<vmem>>, %arg10: memref<1x128x128xbf16, #tpu.memory_space<vmem>>, %arg11: memref<1x1x128xf32, #tpu.memory_space<vmem>>, %arg12: memref<1x1x128xf32, #tpu.memory_space<vmem>>, %arg13: memref<1x1x128xf32, #tpu.memory_space<vmem>>, %arg14: memref<1x128x512xbf16, #tpu.memory_space<vmem>>, %arg15: memref<1x1x512xf32, #tpu.memory_space<vmem>>, %arg16: memref<1x512x128xbf16, #tpu.memory_space<vmem>>, %arg17: memref<1x1x128xf32, #tpu.memory_space<vmem>>, %arg18: memref<1x2x128xf32, #tpu.memory_space<vmem>>, %arg19: memref<16x128xf32, #tpu.memory_space<vmem>>) attributes {dimension_semantics = [#tpu.dimension_semantics<parallel>, #tpu.dimension_semantics<arbitrary>], iteration_bounds = array<i64: 1, 3>, scalar_prefetch = 0 : i64, scratch_operands = 1 : i64, tpu.core_type = #tpu.core_type<tc>, window_params = [{transform_indices = @transform_0, window_bounds = array<i64: 16, 8>}, {pipeline_mode = #tpu.pipeline_mode<synchronous>, transform_indices = @transform_1, window_bounds = array<i64: 8, 128>}, {pipeline_mode = #tpu.pipeline_mode<synchronous>, transform_indices = @transform_2, window_bounds = array<i64: 1, 128>}, {pipeline_mode = #tpu.pipeline_mode<synchronous>, transform_indices = @transform_3, window_bounds = array<i64: 8, 128>}, {transform_indices = @transform_4, window_bounds = array<i64: 1, 1, 128>}, {transform_indices = @transform_5, window_bounds = array<i64: 1, 1, 128>}, {transform_indices = @transform_6, window_bounds = array<i64: 1, 128, 384>}, {transform_indices = @transform_7, window_bounds = array<i64: 1, 1, 384>}, {transform_indices = @transform_8, window_bounds = array<i64: 1, 128, 128>}, {transform_indices = @transform_9, window_bounds = array<i64: 1, 1, 128>}, {transform_indices = @transform_10, window_bounds = array<i64: 1, 1, 128>}, {transform_indices = @transform_11, window_bounds = array<i64: 1, 1, 128>}, {transform_indices = @transform_12, window_bounds = array<i64: 1, 128, 512>}, {transform_indices = @transform_13, window_bounds = array<i64: 1, 1, 512>}, {transform_indices = @transform_14, window_bounds = array<i64: 1, 512, 128>}, {transform_indices = @transform_15, window_bounds = array<i64: 1, 1, 128>}, {transform_indices = @transform_16, window_bounds = array<i64: 1, 2, 128>}]} {
    %c0_i32 = arith.constant 0 : i32
    %0 = arith.cmpi eq, %arg1, %c0_i32 : i32
    %1 = arith.extui %0 : i1 to i32
    %c0_i32_0 = arith.constant 0 : i32
    %2 = arith.cmpi ne, %1, %c0_i32_0 : i32
    scf.if %2 {
      %c0_95 = arith.constant 0 : index
      %c0_96 = arith.constant 0 : index
      %297 = vector.load %arg2[%c0_95, %c0_96] : memref<16x8xf32, #tpu.memory_space<vmem>>, vector<16x8xf32>
      %c0_97 = arith.constant 0 : index
      %c0_98 = arith.constant 0 : index
      %298 = vector.load %arg3[%c0_97, %c0_98] : memref<8x128xf32, #tpu.memory_space<vmem>>, vector<8x128xf32>
      %cst_99 = arith.constant dense<0.000000e+00> : vector<16x128xf32>
      %299 = tpu.matmul %297, %298, %cst_99 {dimension_numbers = #tpu.dot_dimension_numbers<[1], [0], [0], [1], [0, 0, 1, 1], [], []>} : vector<16x8xf32>, vector<8x128xf32>, vector<16x128xf32> -> vector<16x128xf32>
      %c0_100 = arith.constant 0 : index
      %c0_101 = arith.constant 0 : index
      %300 = vector.load %arg4[%c0_100, %c0_101] : memref<1x128xf32, #tpu.memory_space<vmem>>, vector<1x128xf32>
      %301 = vector.broadcast %300 : vector<1x128xf32> to vector<16x128xf32>
      %302 = arith.addf %299, %301 : vector<16x128xf32>
      %c0_102 = arith.constant 0 : index
      %c0_103 = arith.constant 0 : index
      %303 = vector.load %arg5[%c0_102, %c0_103] : memref<8x128xf32, #tpu.memory_space<vmem>>, vector<8x128xf32>
      %304 = vector.shape_cast %302 : vector<16x128xf32> to vector<2x8x128xf32>
      %305 = vector.shape_cast %303 : vector<8x128xf32> to vector<1x8x128xf32>
      %306 = vector.broadcast %305 : vector<1x8x128xf32> to vector<2x8x128xf32>
      %307 = arith.addf %304, %306 : vector<2x8x128xf32>
      %308 = vector.shape_cast %307 : vector<2x8x128xf32> to vector<16x128xf32>
      %c0_104 = arith.constant 0 : index
      %c0_105 = arith.constant 0 : index
      %309 = vector.load %arg19[%c0_104, %c0_105] : memref<16x128xf32, #tpu.memory_space<vmem>>, vector<16x128xf32>
      tpu.vector_store %arg19[%c0_104, %c0_105], %308 {strides = array<i32>} : memref<16x128xf32, #tpu.memory_space<vmem>>, vector<16x128xf32>,
    } else {
    }
    %c0 = arith.constant 0 : index
    %c0_1 = arith.constant 0 : index
    %3 = vector.load %arg19[%c0, %c0_1] : memref<16x128xf32, #tpu.memory_space<vmem>>, vector<16x128xf32>
    %c0_2 = arith.constant 0 : index
    %c0_3 = arith.constant 0 : index
    %c0_4 = arith.constant 0 : index
    %4 = vector.load %arg6[%c0_2, %c0_3, %c0_4] : memref<1x1x128xf32, #tpu.memory_space<vmem>>, vector<1x1x128xf32>
    %5 = vector.shape_cast %4 : vector<1x1x128xf32> to vector<1x128xf32>
    %c0_5 = arith.constant 0 : index
    %c0_6 = arith.constant 0 : index
    %c0_7 = arith.constant 0 : index
    %6 = vector.load %arg7[%c0_5, %c0_6, %c0_7] : memref<1x1x128xf32, #tpu.memory_space<vmem>>, vector<1x1x128xf32>
    %7 = vector.shape_cast %6 : vector<1x1x128xf32> to vector<1x128xf32>
    %cst = arith.constant dense<0.000000e+00> : vector<16xf32>
    %8 = vector.multi_reduction <add>, %3, %cst [1] : vector<16x128xf32> to vector<16xf32>
    %9 = vector.shape_cast %8 : vector<16xf32> to vector<16x1xf32>
    %cst_8 = arith.constant 1.280000e+02 : f32
    %10 = vector.broadcast %cst_8 : f32 to vector<16x1xf32>
    %11 = arith.divf %9, %10 : vector<16x1xf32>
    %12 = vector.broadcast %11 : vector<16x1xf32> to vector<16x128xf32>
    %13 = arith.subf %3, %12 : vector<16x128xf32>
    %14 = arith.mulf %13, %13 : vector<16x128xf32>
    %cst_9 = arith.constant dense<0.000000e+00> : vector<16xf32>
    %15 = vector.multi_reduction <add>, %14, %cst_9 [1] : vector<16x128xf32> to vector<16xf32>
    %16 = vector.shape_cast %15 : vector<16xf32> to vector<16x1xf32>
    %cst_10 = arith.constant 1.280000e+02 : f32
    %17 = vector.broadcast %cst_10 : f32 to vector<16x1xf32>
    %18 = arith.divf %16, %17 : vector<16x1xf32>
    %19 = vector.broadcast %11 : vector<16x1xf32> to vector<16x128xf32>
    %20 = arith.subf %3, %19 : vector<16x128xf32>
    %cst_11 = arith.constant 9.99999974E-6 : f32
    %21 = vector.broadcast %cst_11 : f32 to vector<16x1xf32>
    %22 = arith.addf %18, %21 : vector<16x1xf32>
    %23 = math.rsqrt %22 : vector<16x1xf32>
    %24 = vector.broadcast %23 : vector<16x1xf32> to vector<16x128xf32>
    %25 = arith.mulf %20, %24 : vector<16x128xf32>
    %26 = vector.broadcast %5 : vector<1x128xf32> to vector<16x128xf32>
    %27 = arith.mulf %25, %26 : vector<16x128xf32>
    %28 = vector.broadcast %7 : vector<1x128xf32> to vector<16x128xf32>
    %29 = arith.addf %27, %28 : vector<16x128xf32>
    %30 = arith.truncf %29 : vector<16x128xf32> to vector<16x128xbf16>
    %c0_12 = arith.constant 0 : index
    %c0_13 = arith.constant 0 : index
    %c0_14 = arith.constant 0 : index
    %31 = vector.load %arg8[%c0_12, %c0_13, %c0_14] : memref<1x128x384xbf16, #tpu.memory_space<vmem>>, vector<1x128x384xbf16>
    %32 = vector.shape_cast %31 : vector<1x128x384xbf16> to vector<128x384xbf16>
    %cst_15 = arith.constant dense<0.000000e+00> : vector<16x384xf32>
    %33 = tpu.matmul %30, %32, %cst_15 {dimension_numbers = #tpu.dot_dimension_numbers<[1], [0], [0], [1], [0, 0, 1, 1], [], []>} : vector<16x128xbf16>, vector<128x384xbf16>, vector<16x384xf32> -> vector<16x384xf32>
    %c0_16 = arith.constant 0 : index
    %c0_17 = arith.constant 0 : index
    %c0_18 = arith.constant 0 : index
    %34 = vector.load %arg9[%c0_16, %c0_17, %c0_18] : memref<1x1x384xf32, #tpu.memory_space<vmem>>, vector<1x1x384xf32>
    %35 = vector.shape_cast %34 : vector<1x1x384xf32> to vector<1x384xf32>
    %36 = vector.broadcast %35 : vector<1x384xf32> to vector<16x384xf32>
    %37 = arith.addf %33, %36 : vector<16x384xf32>
    %38 = vector.extract_strided_slice %37 {offsets = [0, 0], sizes = [16, 16], strides = [1, 1]} : vector<16x384xf32> to vector<16x16xf32>
    %cst_19 = arith.constant 2.500000e-01 : f32
    %39 = vector.broadcast %cst_19 : f32 to vector<16x16xf32>
    %40 = arith.mulf %38, %39 : vector<16x16xf32>
    %41 = vector.shape_cast %40 : vector<16x16xf32> to vector<2x8x16xf32>
    %42 = vector.extract_strided_slice %37 {offsets = [0, 128], sizes = [16, 16], strides = [1, 1]} : vector<16x384xf32> to vector<16x16xf32>
    %43 = vector.shape_cast %42 : vector<16x16xf32> to vector<2x8x16xf32>
    %44 = vector.extract_strided_slice %37 {offsets = [0, 256], sizes = [16, 16], strides = [1, 1]} : vector<16x384xf32> to vector<16x16xf32>
    %45 = vector.shape_cast %44 : vector<16x16xf32> to vector<2x8x16xf32>
    %46 = arith.truncf %41 : vector<2x8x16xf32> to vector<2x8x16xbf16>
    %47 = arith.truncf %43 : vector<2x8x16xf32> to vector<2x8x16xbf16>
    "tpu.trace_start"() <{level = 10 : i32, message = "bqd,bkd->bqk"}> : () -> ()
    %cst_20 = arith.constant dense<0.000000e+00> : vector<2x8x8xf32>
    %48 = tpu.matmul %46, %47, %cst_20 {dimension_numbers = #tpu.dot_dimension_numbers<[2], [2], [1], [1], [0, 0, 0, 1, 1, 1], [0], [0]>} : vector<2x8x16xbf16>, vector<2x8x16xbf16>, vector<2x8x8xf32> -> vector<2x8x8xf32>
    "tpu.trace_stop"() : () -> ()
    %cst_21 = arith.constant dense<0xFF800000> : vector<2x8xf32>
    %49 = vector.multi_reduction <maximumf>, %48, %cst_21 [2] : vector<2x8x8xf32> to vector<2x8xf32>
    %50 = vector.shape_cast %49 : vector<2x8xf32> to vector<2x8x1xf32>
    %51 = vector.broadcast %50 : vector<2x8x1xf32> to vector<2x8x8xf32>
    %52 = arith.subf %48, %51 : vector<2x8x8xf32>
    %53 = math.exp %52 : vector<2x8x8xf32>
    %cst_22 = arith.constant dense<0.000000e+00> : vector<2x8xf32>
    %54 = vector.multi_reduction <add>, %53, %cst_22 [2] : vector<2x8x8xf32> to vector<2x8xf32>
    %55 = vector.shape_cast %54 : vector<2x8xf32> to vector<2x8x1xf32>
    %56 = tpu.reciprocal %55 {approx = true} : vector<2x8x1xf32> -> vector<2x8x1xf32>
    %57 = vector.broadcast %56 : vector<2x8x1xf32> to vector<2x8x8xf32>
    %58 = arith.mulf %53, %57 : vector<2x8x8xf32>
    %59 = arith.truncf %58 : vector<2x8x8xf32> to vector<2x8x8xbf16>
    %60 = arith.truncf %45 : vector<2x8x16xf32> to vector<2x8x16xbf16>
    "tpu.trace_start"() <{level = 10 : i32, message = "bqk,bkd->bqd"}> : () -> ()
    %cst_23 = arith.constant dense<0.000000e+00> : vector<2x8x16xf32>
    %61 = tpu.matmul %59, %60, %cst_23 {dimension_numbers = #tpu.dot_dimension_numbers<[2], [1], [1], [2], [0, 0, 0, 1, 1, 2], [0], [0]>} : vector<2x8x8xbf16>, vector<2x8x16xbf16>, vector<2x8x16xf32> -> vector<2x8x16xf32>
    "tpu.trace_stop"() : () -> ()
    %62 = vector.shape_cast %61 : vector<2x8x16xf32> to vector<16x16xf32>
    %63 = vector.extract_strided_slice %37 {offsets = [0, 16], sizes = [16, 16], strides = [1, 1]} : vector<16x384xf32> to vector<16x16xf32>
    %cst_24 = arith.constant 2.500000e-01 : f32
    %64 = vector.broadcast %cst_24 : f32 to vector<16x16xf32>
    %65 = arith.mulf %63, %64 : vector<16x16xf32>
    %66 = vector.shape_cast %65 : vector<16x16xf32> to vector<2x8x16xf32>
    %67 = vector.extract_strided_slice %37 {offsets = [0, 144], sizes = [16, 16], strides = [1, 1]} : vector<16x384xf32> to vector<16x16xf32>
    %68 = vector.shape_cast %67 : vector<16x16xf32> to vector<2x8x16xf32>
    %69 = vector.extract_strided_slice %37 {offsets = [0, 272], sizes = [16, 16], strides = [1, 1]} : vector<16x384xf32> to vector<16x16xf32>
    %70 = vector.shape_cast %69 : vector<16x16xf32> to vector<2x8x16xf32>
    %71 = arith.truncf %66 : vector<2x8x16xf32> to vector<2x8x16xbf16>
    %72 = arith.truncf %68 : vector<2x8x16xf32> to vector<2x8x16xbf16>
    "tpu.trace_start"() <{level = 10 : i32, message = "bqd,bkd->bqk"}> : () -> ()
    %cst_25 = arith.constant dense<0.000000e+00> : vector<2x8x8xf32>
    %73 = tpu.matmul %71, %72, %cst_25 {dimension_numbers = #tpu.dot_dimension_numbers<[2], [2], [1], [1], [0, 0, 0, 1, 1, 1], [0], [0]>} : vector<2x8x16xbf16>, vector<2x8x16xbf16>, vector<2x8x8xf32> -> vector<2x8x8xf32>
    "tpu.trace_stop"() : () -> ()
    %cst_26 = arith.constant dense<0xFF800000> : vector<2x8xf32>
    %74 = vector.multi_reduction <maximumf>, %73, %cst_26 [2] : vector<2x8x8xf32> to vector<2x8xf32>
    %75 = vector.shape_cast %74 : vector<2x8xf32> to vector<2x8x1xf32>
    %76 = vector.broadcast %75 : vector<2x8x1xf32> to vector<2x8x8xf32>
    %77 = arith.subf %73, %76 : vector<2x8x8xf32>
    %78 = math.exp %77 : vector<2x8x8xf32>
    %cst_27 = arith.constant dense<0.000000e+00> : vector<2x8xf32>
    %79 = vector.multi_reduction <add>, %78, %cst_27 [2] : vector<2x8x8xf32> to vector<2x8xf32>
    %80 = vector.shape_cast %79 : vector<2x8xf32> to vector<2x8x1xf32>
    %81 = tpu.reciprocal %80 {approx = true} : vector<2x8x1xf32> -> vector<2x8x1xf32>
    %82 = vector.broadcast %81 : vector<2x8x1xf32> to vector<2x8x8xf32>
    %83 = arith.mulf %78, %82 : vector<2x8x8xf32>
    %84 = arith.truncf %83 : vector<2x8x8xf32> to vector<2x8x8xbf16>
    %85 = arith.truncf %70 : vector<2x8x16xf32> to vector<2x8x16xbf16>
    "tpu.trace_start"() <{level = 10 : i32, message = "bqk,bkd->bqd"}> : () -> ()
    %cst_28 = arith.constant dense<0.000000e+00> : vector<2x8x16xf32>
    %86 = tpu.matmul %84, %85, %cst_28 {dimension_numbers = #tpu.dot_dimension_numbers<[2], [1], [1], [2], [0, 0, 0, 1, 1, 2], [0], [0]>} : vector<2x8x8xbf16>, vector<2x8x16xbf16>, vector<2x8x16xf32> -> vector<2x8x16xf32>
    "tpu.trace_stop"() : () -> ()
    %87 = vector.shape_cast %86 : vector<2x8x16xf32> to vector<16x16xf32>
    %88 = vector.extract_strided_slice %37 {offsets = [0, 32], sizes = [16, 16], strides = [1, 1]} : vector<16x384xf32> to vector<16x16xf32>
    %cst_29 = arith.constant 2.500000e-01 : f32
    %89 = vector.broadcast %cst_29 : f32 to vector<16x16xf32>
    %90 = arith.mulf %88, %89 : vector<16x16xf32>
    %91 = vector.shape_cast %90 : vector<16x16xf32> to vector<2x8x16xf32>
    %92 = vector.extract_strided_slice %37 {offsets = [0, 160], sizes = [16, 16], strides = [1, 1]} : vector<16x384xf32> to vector<16x16xf32>
    %93 = vector.shape_cast %92 : vector<16x16xf32> to vector<2x8x16xf32>
    %94 = vector.extract_strided_slice %37 {offsets = [0, 288], sizes = [16, 16], strides = [1, 1]} : vector<16x384xf32> to vector<16x16xf32>
    %95 = vector.shape_cast %94 : vector<16x16xf32> to vector<2x8x16xf32>
    %96 = arith.truncf %91 : vector<2x8x16xf32> to vector<2x8x16xbf16>
    %97 = arith.truncf %93 : vector<2x8x16xf32> to vector<2x8x16xbf16>
    "tpu.trace_start"() <{level = 10 : i32, message = "bqd,bkd->bqk"}> : () -> ()
    %cst_30 = arith.constant dense<0.000000e+00> : vector<2x8x8xf32>
    %98 = tpu.matmul %96, %97, %cst_30 {dimension_numbers = #tpu.dot_dimension_numbers<[2], [2], [1], [1], [0, 0, 0, 1, 1, 1], [0], [0]>} : vector<2x8x16xbf16>, vector<2x8x16xbf16>, vector<2x8x8xf32> -> vector<2x8x8xf32>
    "tpu.trace_stop"() : () -> ()
    %cst_31 = arith.constant dense<0xFF800000> : vector<2x8xf32>
    %99 = vector.multi_reduction <maximumf>, %98, %cst_31 [2] : vector<2x8x8xf32> to vector<2x8xf32>
    %100 = vector.shape_cast %99 : vector<2x8xf32> to vector<2x8x1xf32>
    %101 = vector.broadcast %100 : vector<2x8x1xf32> to vector<2x8x8xf32>
    %102 = arith.subf %98, %101 : vector<2x8x8xf32>
    %103 = math.exp %102 : vector<2x8x8xf32>
    %cst_32 = arith.constant dense<0.000000e+00> : vector<2x8xf32>
    %104 = vector.multi_reduction <add>, %103, %cst_32 [2] : vector<2x8x8xf32> to vector<2x8xf32>
    %105 = vector.shape_cast %104 : vector<2x8xf32> to vector<2x8x1xf32>
    %106 = tpu.reciprocal %105 {approx = true} : vector<2x8x1xf32> -> vector<2x8x1xf32>
    %107 = vector.broadcast %106 : vector<2x8x1xf32> to vector<2x8x8xf32>
    %108 = arith.mulf %103, %107 : vector<2x8x8xf32>
    %109 = arith.truncf %108 : vector<2x8x8xf32> to vector<2x8x8xbf16>
    %110 = arith.truncf %95 : vector<2x8x16xf32> to vector<2x8x16xbf16>
    "tpu.trace_start"() <{level = 10 : i32, message = "bqk,bkd->bqd"}> : () -> ()
    %cst_33 = arith.constant dense<0.000000e+00> : vector<2x8x16xf32>
    %111 = tpu.matmul %109, %110, %cst_33 {dimension_numbers = #tpu.dot_dimension_numbers<[2], [1], [1], [2], [0, 0, 0, 1, 1, 2], [0], [0]>} : vector<2x8x8xbf16>, vector<2x8x16xbf16>, vector<2x8x16xf32> -> vector<2x8x16xf32>
    "tpu.trace_stop"() : () -> ()
    %112 = vector.shape_cast %111 : vector<2x8x16xf32> to vector<16x16xf32>
    %113 = vector.extract_strided_slice %37 {offsets = [0, 48], sizes = [16, 16], strides = [1, 1]} : vector<16x384xf32> to vector<16x16xf32>
    %cst_34 = arith.constant 2.500000e-01 : f32
    %114 = vector.broadcast %cst_34 : f32 to vector<16x16xf32>
    %115 = arith.mulf %113, %114 : vector<16x16xf32>
    %116 = vector.shape_cast %115 : vector<16x16xf32> to vector<2x8x16xf32>
    %117 = vector.extract_strided_slice %37 {offsets = [0, 176], sizes = [16, 16], strides = [1, 1]} : vector<16x384xf32> to vector<16x16xf32>
    %118 = vector.shape_cast %117 : vector<16x16xf32> to vector<2x8x16xf32>
    %119 = vector.extract_strided_slice %37 {offsets = [0, 304], sizes = [16, 16], strides = [1, 1]} : vector<16x384xf32> to vector<16x16xf32>
    %120 = vector.shape_cast %119 : vector<16x16xf32> to vector<2x8x16xf32>
    %121 = arith.truncf %116 : vector<2x8x16xf32> to vector<2x8x16xbf16>
    %122 = arith.truncf %118 : vector<2x8x16xf32> to vector<2x8x16xbf16>
    "tpu.trace_start"() <{level = 10 : i32, message = "bqd,bkd->bqk"}> : () -> ()
    %cst_35 = arith.constant dense<0.000000e+00> : vector<2x8x8xf32>
    %123 = tpu.matmul %121, %122, %cst_35 {dimension_numbers = #tpu.dot_dimension_numbers<[2], [2], [1], [1], [0, 0, 0, 1, 1, 1], [0], [0]>} : vector<2x8x16xbf16>, vector<2x8x16xbf16>, vector<2x8x8xf32> -> vector<2x8x8xf32>
    "tpu.trace_stop"() : () -> ()
    %cst_36 = arith.constant dense<0xFF800000> : vector<2x8xf32>
    %124 = vector.multi_reduction <maximumf>, %123, %cst_36 [2] : vector<2x8x8xf32> to vector<2x8xf32>
    %125 = vector.shape_cast %124 : vector<2x8xf32> to vector<2x8x1xf32>
    %126 = vector.broadcast %125 : vector<2x8x1xf32> to vector<2x8x8xf32>
    %127 = arith.subf %123, %126 : vector<2x8x8xf32>
    %128 = math.exp %127 : vector<2x8x8xf32>
    %cst_37 = arith.constant dense<0.000000e+00> : vector<2x8xf32>
    %129 = vector.multi_reduction <add>, %128, %cst_37 [2] : vector<2x8x8xf32> to vector<2x8xf32>
    %130 = vector.shape_cast %129 : vector<2x8xf32> to vector<2x8x1xf32>
    %131 = tpu.reciprocal %130 {approx = true} : vector<2x8x1xf32> -> vector<2x8x1xf32>
    %132 = vector.broadcast %131 : vector<2x8x1xf32> to vector<2x8x8xf32>
    %133 = arith.mulf %128, %132 : vector<2x8x8xf32>
    %134 = arith.truncf %133 : vector<2x8x8xf32> to vector<2x8x8xbf16>
    %135 = arith.truncf %120 : vector<2x8x16xf32> to vector<2x8x16xbf16>
    "tpu.trace_start"() <{level = 10 : i32, message = "bqk,bkd->bqd"}> : () -> ()
    %cst_38 = arith.constant dense<0.000000e+00> : vector<2x8x16xf32>
    %136 = tpu.matmul %134, %135, %cst_38 {dimension_numbers = #tpu.dot_dimension_numbers<[2], [1], [1], [2], [0, 0, 0, 1, 1, 2], [0], [0]>} : vector<2x8x8xbf16>, vector<2x8x16xbf16>, vector<2x8x16xf32> -> vector<2x8x16xf32>
    "tpu.trace_stop"() : () -> ()
    %137 = vector.shape_cast %136 : vector<2x8x16xf32> to vector<16x16xf32>
    %138 = vector.extract_strided_slice %37 {offsets = [0, 64], sizes = [16, 16], strides = [1, 1]} : vector<16x384xf32> to vector<16x16xf32>
    %cst_39 = arith.constant 2.500000e-01 : f32
    %139 = vector.broadcast %cst_39 : f32 to vector<16x16xf32>
    %140 = arith.mulf %138, %139 : vector<16x16xf32>
    %141 = vector.shape_cast %140 : vector<16x16xf32> to vector<2x8x16xf32>
    %142 = vector.extract_strided_slice %37 {offsets = [0, 192], sizes = [16, 16], strides = [1, 1]} : vector<16x384xf32> to vector<16x16xf32>
    %143 = vector.shape_cast %142 : vector<16x16xf32> to vector<2x8x16xf32>
    %144 = vector.extract_strided_slice %37 {offsets = [0, 320], sizes = [16, 16], strides = [1, 1]} : vector<16x384xf32> to vector<16x16xf32>
    %145 = vector.shape_cast %144 : vector<16x16xf32> to vector<2x8x16xf32>
    %146 = arith.truncf %141 : vector<2x8x16xf32> to vector<2x8x16xbf16>
    %147 = arith.truncf %143 : vector<2x8x16xf32> to vector<2x8x16xbf16>
    "tpu.trace_start"() <{level = 10 : i32, message = "bqd,bkd->bqk"}> : () -> ()
    %cst_40 = arith.constant dense<0.000000e+00> : vector<2x8x8xf32>
    %148 = tpu.matmul %146, %147, %cst_40 {dimension_numbers = #tpu.dot_dimension_numbers<[2], [2], [1], [1], [0, 0, 0, 1, 1, 1], [0], [0]>} : vector<2x8x16xbf16>, vector<2x8x16xbf16>, vector<2x8x8xf32> -> vector<2x8x8xf32>
    "tpu.trace_stop"() : () -> ()
    %cst_41 = arith.constant dense<0xFF800000> : vector<2x8xf32>
    %149 = vector.multi_reduction <maximumf>, %148, %cst_41 [2] : vector<2x8x8xf32> to vector<2x8xf32>
    %150 = vector.shape_cast %149 : vector<2x8xf32> to vector<2x8x1xf32>
    %151 = vector.broadcast %150 : vector<2x8x1xf32> to vector<2x8x8xf32>
    %152 = arith.subf %148, %151 : vector<2x8x8xf32>
    %153 = math.exp %152 : vector<2x8x8xf32>
    %cst_42 = arith.constant dense<0.000000e+00> : vector<2x8xf32>
    %154 = vector.multi_reduction <add>, %153, %cst_42 [2] : vector<2x8x8xf32> to vector<2x8xf32>
    %155 = vector.shape_cast %154 : vector<2x8xf32> to vector<2x8x1xf32>
    %156 = tpu.reciprocal %155 {approx = true} : vector<2x8x1xf32> -> vector<2x8x1xf32>
    %157 = vector.broadcast %156 : vector<2x8x1xf32> to vector<2x8x8xf32>
    %158 = arith.mulf %153, %157 : vector<2x8x8xf32>
    %159 = arith.truncf %158 : vector<2x8x8xf32> to vector<2x8x8xbf16>
    %160 = arith.truncf %145 : vector<2x8x16xf32> to vector<2x8x16xbf16>
    "tpu.trace_start"() <{level = 10 : i32, message = "bqk,bkd->bqd"}> : () -> ()
    %cst_43 = arith.constant dense<0.000000e+00> : vector<2x8x16xf32>
    %161 = tpu.matmul %159, %160, %cst_43 {dimension_numbers = #tpu.dot_dimension_numbers<[2], [1], [1], [2], [0, 0, 0, 1, 1, 2], [0], [0]>} : vector<2x8x8xbf16>, vector<2x8x16xbf16>, vector<2x8x16xf32> -> vector<2x8x16xf32>
    "tpu.trace_stop"() : () -> ()
    %162 = vector.shape_cast %161 : vector<2x8x16xf32> to vector<16x16xf32>
    %163 = vector.extract_strided_slice %37 {offsets = [0, 80], sizes = [16, 16], strides = [1, 1]} : vector<16x384xf32> to vector<16x16xf32>
    %cst_44 = arith.constant 2.500000e-01 : f32
    %164 = vector.broadcast %cst_44 : f32 to vector<16x16xf32>
    %165 = arith.mulf %163, %164 : vector<16x16xf32>
    %166 = vector.shape_cast %165 : vector<16x16xf32> to vector<2x8x16xf32>
    %167 = vector.extract_strided_slice %37 {offsets = [0, 208], sizes = [16, 16], strides = [1, 1]} : vector<16x384xf32> to vector<16x16xf32>
    %168 = vector.shape_cast %167 : vector<16x16xf32> to vector<2x8x16xf32>
    %169 = vector.extract_strided_slice %37 {offsets = [0, 336], sizes = [16, 16], strides = [1, 1]} : vector<16x384xf32> to vector<16x16xf32>
    %170 = vector.shape_cast %169 : vector<16x16xf32> to vector<2x8x16xf32>
    %171 = arith.truncf %166 : vector<2x8x16xf32> to vector<2x8x16xbf16>
    %172 = arith.truncf %168 : vector<2x8x16xf32> to vector<2x8x16xbf16>
    "tpu.trace_start"() <{level = 10 : i32, message = "bqd,bkd->bqk"}> : () -> ()
    %cst_45 = arith.constant dense<0.000000e+00> : vector<2x8x8xf32>
    %173 = tpu.matmul %171, %172, %cst_45 {dimension_numbers = #tpu.dot_dimension_numbers<[2], [2], [1], [1], [0, 0, 0, 1, 1, 1], [0], [0]>} : vector<2x8x16xbf16>, vector<2x8x16xbf16>, vector<2x8x8xf32> -> vector<2x8x8xf32>
    "tpu.trace_stop"() : () -> ()
    %cst_46 = arith.constant dense<0xFF800000> : vector<2x8xf32>
    %174 = vector.multi_reduction <maximumf>, %173, %cst_46 [2] : vector<2x8x8xf32> to vector<2x8xf32>
    %175 = vector.shape_cast %174 : vector<2x8xf32> to vector<2x8x1xf32>
    %176 = vector.broadcast %175 : vector<2x8x1xf32> to vector<2x8x8xf32>
    %177 = arith.subf %173, %176 : vector<2x8x8xf32>
    %178 = math.exp %177 : vector<2x8x8xf32>
    %cst_47 = arith.constant dense<0.000000e+00> : vector<2x8xf32>
    %179 = vector.multi_reduction <add>, %178, %cst_47 [2] : vector<2x8x8xf32> to vector<2x8xf32>
    %180 = vector.shape_cast %179 : vector<2x8xf32> to vector<2x8x1xf32>
    %181 = tpu.reciprocal %180 {approx = true} : vector<2x8x1xf32> -> vector<2x8x1xf32>
    %182 = vector.broadcast %181 : vector<2x8x1xf32> to vector<2x8x8xf32>
    %183 = arith.mulf %178, %182 : vector<2x8x8xf32>
    %184 = arith.truncf %183 : vector<2x8x8xf32> to vector<2x8x8xbf16>
    %185 = arith.truncf %170 : vector<2x8x16xf32> to vector<2x8x16xbf16>
    "tpu.trace_start"() <{level = 10 : i32, message = "bqk,bkd->bqd"}> : () -> ()
    %cst_48 = arith.constant dense<0.000000e+00> : vector<2x8x16xf32>
    %186 = tpu.matmul %184, %185, %cst_48 {dimension_numbers = #tpu.dot_dimension_numbers<[2], [1], [1], [2], [0, 0, 0, 1, 1, 2], [0], [0]>} : vector<2x8x8xbf16>, vector<2x8x16xbf16>, vector<2x8x16xf32> -> vector<2x8x16xf32>
    "tpu.trace_stop"() : () -> ()
    %187 = vector.shape_cast %186 : vector<2x8x16xf32> to vector<16x16xf32>
    %188 = vector.extract_strided_slice %37 {offsets = [0, 96], sizes = [16, 16], strides = [1, 1]} : vector<16x384xf32> to vector<16x16xf32>
    %cst_49 = arith.constant 2.500000e-01 : f32
    %189 = vector.broadcast %cst_49 : f32 to vector<16x16xf32>
    %190 = arith.mulf %188, %189 : vector<16x16xf32>
    %191 = vector.shape_cast %190 : vector<16x16xf32> to vector<2x8x16xf32>
    %192 = vector.extract_strided_slice %37 {offsets = [0, 224], sizes = [16, 16], strides = [1, 1]} : vector<16x384xf32> to vector<16x16xf32>
    %193 = vector.shape_cast %192 : vector<16x16xf32> to vector<2x8x16xf32>
    %194 = vector.extract_strided_slice %37 {offsets = [0, 352], sizes = [16, 16], strides = [1, 1]} : vector<16x384xf32> to vector<16x16xf32>
    %195 = vector.shape_cast %194 : vector<16x16xf32> to vector<2x8x16xf32>
    %196 = arith.truncf %191 : vector<2x8x16xf32> to vector<2x8x16xbf16>
    %197 = arith.truncf %193 : vector<2x8x16xf32> to vector<2x8x16xbf16>
    "tpu.trace_start"() <{level = 10 : i32, message = "bqd,bkd->bqk"}> : () -> ()
    %cst_50 = arith.constant dense<0.000000e+00> : vector<2x8x8xf32>
    %198 = tpu.matmul %196, %197, %cst_50 {dimension_numbers = #tpu.dot_dimension_numbers<[2], [2], [1], [1], [0, 0, 0, 1, 1, 1], [0], [0]>} : vector<2x8x16xbf16>, vector<2x8x16xbf16>, vector<2x8x8xf32> -> vector<2x8x8xf32>
    "tpu.trace_stop"() : () -> ()
    %cst_51 = arith.constant dense<0xFF800000> : vector<2x8xf32>
    %199 = vector.multi_reduction <maximumf>, %198, %cst_51 [2] : vector<2x8x8xf32> to vector<2x8xf32>
    %200 = vector.shape_cast %199 : vector<2x8xf32> to vector<2x8x1xf32>
    %201 = vector.broadcast %200 : vector<2x8x1xf32> to vector<2x8x8xf32>
    %202 = arith.subf %198, %201 : vector<2x8x8xf32>
    %203 = math.exp %202 : vector<2x8x8xf32>
    %cst_52 = arith.constant dense<0.000000e+00> : vector<2x8xf32>
    %204 = vector.multi_reduction <add>, %203, %cst_52 [2] : vector<2x8x8xf32> to vector<2x8xf32>
    %205 = vector.shape_cast %204 : vector<2x8xf32> to vector<2x8x1xf32>
    %206 = tpu.reciprocal %205 {approx = true} : vector<2x8x1xf32> -> vector<2x8x1xf32>
    %207 = vector.broadcast %206 : vector<2x8x1xf32> to vector<2x8x8xf32>
    %208 = arith.mulf %203, %207 : vector<2x8x8xf32>
    %209 = arith.truncf %208 : vector<2x8x8xf32> to vector<2x8x8xbf16>
    %210 = arith.truncf %195 : vector<2x8x16xf32> to vector<2x8x16xbf16>
    "tpu.trace_start"() <{level = 10 : i32, message = "bqk,bkd->bqd"}> : () -> ()
    %cst_53 = arith.constant dense<0.000000e+00> : vector<2x8x16xf32>
    %211 = tpu.matmul %209, %210, %cst_53 {dimension_numbers = #tpu.dot_dimension_numbers<[2], [1], [1], [2], [0, 0, 0, 1, 1, 2], [0], [0]>} : vector<2x8x8xbf16>, vector<2x8x16xbf16>, vector<2x8x16xf32> -> vector<2x8x16xf32>
    "tpu.trace_stop"() : () -> ()
    %212 = vector.shape_cast %211 : vector<2x8x16xf32> to vector<16x16xf32>
    %213 = vector.extract_strided_slice %37 {offsets = [0, 112], sizes = [16, 16], strides = [1, 1]} : vector<16x384xf32> to vector<16x16xf32>
    %cst_54 = arith.constant 2.500000e-01 : f32
    %214 = vector.broadcast %cst_54 : f32 to vector<16x16xf32>
    %215 = arith.mulf %213, %214 : vector<16x16xf32>
    %216 = vector.shape_cast %215 : vector<16x16xf32> to vector<2x8x16xf32>
    %217 = vector.extract_strided_slice %37 {offsets = [0, 240], sizes = [16, 16], strides = [1, 1]} : vector<16x384xf32> to vector<16x16xf32>
    %218 = vector.shape_cast %217 : vector<16x16xf32> to vector<2x8x16xf32>
    %219 = vector.extract_strided_slice %37 {offsets = [0, 368], sizes = [16, 16], strides = [1, 1]} : vector<16x384xf32> to vector<16x16xf32>
    %220 = vector.shape_cast %219 : vector<16x16xf32> to vector<2x8x16xf32>
    %221 = arith.truncf %216 : vector<2x8x16xf32> to vector<2x8x16xbf16>
    %222 = arith.truncf %218 : vector<2x8x16xf32> to vector<2x8x16xbf16>
    "tpu.trace_start"() <{level = 10 : i32, message = "bqd,bkd->bqk"}> : () -> ()
    %cst_55 = arith.constant dense<0.000000e+00> : vector<2x8x8xf32>
    %223 = tpu.matmul %221, %222, %cst_55 {dimension_numbers = #tpu.dot_dimension_numbers<[2], [2], [1], [1], [0, 0, 0, 1, 1, 1], [0], [0]>} : vector<2x8x16xbf16>, vector<2x8x16xbf16>, vector<2x8x8xf32> -> vector<2x8x8xf32>
    "tpu.trace_stop"() : () -> ()
    %cst_56 = arith.constant dense<0xFF800000> : vector<2x8xf32>
    %224 = vector.multi_reduction <maximumf>, %223, %cst_56 [2] : vector<2x8x8xf32> to vector<2x8xf32>
    %225 = vector.shape_cast %224 : vector<2x8xf32> to vector<2x8x1xf32>
    %226 = vector.broadcast %225 : vector<2x8x1xf32> to vector<2x8x8xf32>
    %227 = arith.subf %223, %226 : vector<2x8x8xf32>
    %228 = math.exp %227 : vector<2x8x8xf32>
    %cst_57 = arith.constant dense<0.000000e+00> : vector<2x8xf32>
    %229 = vector.multi_reduction <add>, %228, %cst_57 [2] : vector<2x8x8xf32> to vector<2x8xf32>
    %230 = vector.shape_cast %229 : vector<2x8xf32> to vector<2x8x1xf32>
    %231 = tpu.reciprocal %230 {approx = true} : vector<2x8x1xf32> -> vector<2x8x1xf32>
    %232 = vector.broadcast %231 : vector<2x8x1xf32> to vector<2x8x8xf32>
    %233 = arith.mulf %228, %232 : vector<2x8x8xf32>
    %234 = arith.truncf %233 : vector<2x8x8xf32> to vector<2x8x8xbf16>
    %235 = arith.truncf %220 : vector<2x8x16xf32> to vector<2x8x16xbf16>
    "tpu.trace_start"() <{level = 10 : i32, message = "bqk,bkd->bqd"}> : () -> ()
    %cst_58 = arith.constant dense<0.000000e+00> : vector<2x8x16xf32>
    %236 = tpu.matmul %234, %235, %cst_58 {dimension_numbers = #tpu.dot_dimension_numbers<[2], [1], [1], [2], [0, 0, 0, 1, 1, 2], [0], [0]>} : vector<2x8x8xbf16>, vector<2x8x16xbf16>, vector<2x8x16xf32> -> vector<2x8x16xf32>
    "tpu.trace_stop"() : () -> ()
    %237 = vector.shape_cast %236 : vector<2x8x16xf32> to vector<16x16xf32>
    %238 = tpu.concatenate %62, %87, %112, %137, %162, %187, %212, %237 in 1 : vector<16x16xf32>, vector<16x16xf32>, vector<16x16xf32>, vector<16x16xf32>, vector<16x16xf32>, vector<16x16xf32>, vector<16x16xf32>, vector<16x16xf32> -> vector<16x128xf32>
    %239 = arith.truncf %238 : vector<16x128xf32> to vector<16x128xbf16>
    %c0_59 = arith.constant 0 : index
    %c0_60 = arith.constant 0 : index
    %c0_61 = arith.constant 0 : index
    %240 = vector.load %arg10[%c0_59, %c0_60, %c0_61] : memref<1x128x128xbf16, #tpu.memory_space<vmem>>, vector<1x128x128xbf16>
    %241 = vector.shape_cast %240 : vector<1x128x128xbf16> to vector<128x128xbf16>
    %cst_62 = arith.constant dense<0.000000e+00> : vector<16x128xf32>
    %242 = tpu.matmul %239, %241, %cst_62 {dimension_numbers = #tpu.dot_dimension_numbers<[1], [0], [0], [1], [0, 0, 1, 1], [], []>} : vector<16x128xbf16>, vector<128x128xbf16>, vector<16x128xf32> -> vector<16x128xf32>
    %c0_63 = arith.constant 0 : index
    %c0_64 = arith.constant 0 : index
    %c0_65 = arith.constant 0 : index
    %243 = vector.load %arg11[%c0_63, %c0_64, %c0_65] : memref<1x1x128xf32, #tpu.memory_space<vmem>>, vector<1x1x128xf32>
    %244 = vector.shape_cast %243 : vector<1x1x128xf32> to vector<1x128xf32>
    %245 = vector.broadcast %244 : vector<1x128xf32> to vector<16x128xf32>
    %246 = arith.addf %242, %245 : vector<16x128xf32>
    %247 = arith.addf %3, %246 : vector<16x128xf32>
    %c0_66 = arith.constant 0 : index
    %c0_67 = arith.constant 0 : index
    %c0_68 = arith.constant 0 : index
    %248 = vector.load %arg12[%c0_66, %c0_67, %c0_68] : memref<1x1x128xf32, #tpu.memory_space<vmem>>, vector<1x1x128xf32>
    %249 = vector.shape_cast %248 : vector<1x1x128xf32> to vector<1x128xf32>
    %c0_69 = arith.constant 0 : index
    %c0_70 = arith.constant 0 : index
    %c0_71 = arith.constant 0 : index
    %250 = vector.load %arg13[%c0_69, %c0_70, %c0_71] : memref<1x1x128xf32, #tpu.memory_space<vmem>>, vector<1x1x128xf32>
    %251 = vector.shape_cast %250 : vector<1x1x128xf32> to vector<1x128xf32>
    %cst_72 = arith.constant dense<0.000000e+00> : vector<16xf32>
    %252 = vector.multi_reduction <add>, %247, %cst_72 [1] : vector<16x128xf32> to vector<16xf32>
    %253 = vector.shape_cast %252 : vector<16xf32> to vector<16x1xf32>
    %cst_73 = arith.constant 1.280000e+02 : f32
    %254 = vector.broadcast %cst_73 : f32 to vector<16x1xf32>
    %255 = arith.divf %253, %254 : vector<16x1xf32>
    %256 = vector.broadcast %255 : vector<16x1xf32> to vector<16x128xf32>
    %257 = arith.subf %247, %256 : vector<16x128xf32>
    %258 = arith.mulf %257, %257 : vector<16x128xf32>
    %cst_74 = arith.constant dense<0.000000e+00> : vector<16xf32>
    %259 = vector.multi_reduction <add>, %258, %cst_74 [1] : vector<16x128xf32> to vector<16xf32>
    %260 = vector.shape_cast %259 : vector<16xf32> to vector<16x1xf32>
    %cst_75 = arith.constant 1.280000e+02 : f32
    %261 = vector.broadcast %cst_75 : f32 to vector<16x1xf32>
    %262 = arith.divf %260, %261 : vector<16x1xf32>
    %263 = vector.broadcast %255 : vector<16x1xf32> to vector<16x128xf32>
    %264 = arith.subf %247, %263 : vector<16x128xf32>
    %cst_76 = arith.constant 9.99999974E-6 : f32
    %265 = vector.broadcast %cst_76 : f32 to vector<16x1xf32>
    %266 = arith.addf %262, %265 : vector<16x1xf32>
    %267 = math.rsqrt %266 : vector<16x1xf32>
    %268 = vector.broadcast %267 : vector<16x1xf32> to vector<16x128xf32>
    %269 = arith.mulf %264, %268 : vector<16x128xf32>
    %270 = vector.broadcast %249 : vector<1x128xf32> to vector<16x128xf32>
    %271 = arith.mulf %269, %270 : vector<16x128xf32>
    %272 = vector.broadcast %251 : vector<1x128xf32> to vector<16x128xf32>
    %273 = arith.addf %271, %272 : vector<16x128xf32>
    %274 = arith.truncf %273 : vector<16x128xf32> to vector<16x128xbf16>
    %c0_77 = arith.constant 0 : index
    %c0_78 = arith.constant 0 : index
    %c0_79 = arith.constant 0 : index
    %275 = vector.load %arg14[%c0_77, %c0_78, %c0_79] : memref<1x128x512xbf16, #tpu.memory_space<vmem>>, vector<1x128x512xbf16>
    %276 = vector.shape_cast %275 : vector<1x128x512xbf16> to vector<128x512xbf16>
    %cst_80 = arith.constant dense<0.000000e+00> : vector<16x512xf32>
    %277 = tpu.matmul %274, %276, %cst_80 {dimension_numbers = #tpu.dot_dimension_numbers<[1], [0], [0], [1], [0, 0, 1, 1], [], []>} : vector<16x128xbf16>, vector<128x512xbf16>, vector<16x512xf32> -> vector<16x512xf32>
    %c0_81 = arith.constant 0 : index
    %c0_82 = arith.constant 0 : index
    %c0_83 = arith.constant 0 : index
    %278 = vector.load %arg15[%c0_81, %c0_82, %c0_83] : memref<1x1x512xf32, #tpu.memory_space<vmem>>, vector<1x1x512xf32>
    %279 = vector.shape_cast %278 : vector<1x1x512xf32> to vector<1x512xf32>
    %280 = vector.broadcast %279 : vector<1x512xf32> to vector<16x512xf32>
    %281 = arith.addf %277, %280 : vector<16x512xf32>
    %cst_84 = arith.constant 0.000000e+00 : f32
    %282 = vector.broadcast %cst_84 : f32 to vector<16x512xf32>
    %283 = arith.maximumf %281, %282 : vector<16x512xf32>
    %284 = arith.truncf %283 : vector<16x512xf32> to vector<16x512xbf16>
    %c0_85 = arith.constant 0 : index
    %c0_86 = arith.constant 0 : index
    %c0_87 = arith.constant 0 : index
    %285 = vector.load %arg16[%c0_85, %c0_86, %c0_87] : memref<1x512x128xbf16, #tpu.memory_space<vmem>>, vector<1x512x128xbf16>
    %286 = vector.shape_cast %285 : vector<1x512x128xbf16> to vector<512x128xbf16>
    %cst_88 = arith.constant dense<0.000000e+00> : vector<16x128xf32>
    %287 = tpu.matmul %284, %286, %cst_88 {dimension_numbers = #tpu.dot_dimension_numbers<[1], [0], [0], [1], [0, 0, 1, 1], [], []>} : vector<16x512xbf16>, vector<512x128xbf16>, vector<16x128xf32> -> vector<16x128xf32>
    %c0_89 = arith.constant 0 : index
    %c0_90 = arith.constant 0 : index
    %c0_91 = arith.constant 0 : index
    %288 = vector.load %arg17[%c0_89, %c0_90, %c0_91] : memref<1x1x128xf32, #tpu.memory_space<vmem>>, vector<1x1x128xf32>
    %289 = vector.shape_cast %288 : vector<1x1x128xf32> to vector<1x128xf32>
    %290 = vector.broadcast %289 : vector<1x128xf32> to vector<16x128xf32>
    %291 = arith.addf %287, %290 : vector<16x128xf32>
    %292 = arith.addf %247, %291 : vector<16x128xf32>
    %c0_92 = arith.constant 0 : index
    %c0_93 = arith.constant 0 : index
    %293 = vector.load %arg19[%c0_92, %c0_93] : memref<16x128xf32, #tpu.memory_space<vmem>>, vector<16x128xf32>
    tpu.vector_store %arg19[%c0_92, %c0_93], %292 {strides = array<i32>} : memref<16x128xf32, #tpu.memory_space<vmem>>, vector<16x128xf32>,
    %c2_i32 = arith.constant 2 : i32
    %294 = arith.cmpi eq, %arg1, %c2_i32 : i32
    %295 = arith.extui %294 : i1 to i32
    %c0_i32_94 = arith.constant 0 : i32
    %296 = arith.cmpi ne, %295, %c0_i32_94 : i32
    scf.if %296 {
      %297 = vector.shape_cast %292 : vector<16x128xf32> to vector<2x8x128xf32>
      %298 = vector.extract_strided_slice %297 {offsets = [0, 7, 0], sizes = [2, 1, 128], strides = [1, 1, 1]} : vector<2x8x128xf32> to vector<2x1x128xf32>
      %299 = vector.shape_cast %298 : vector<2x1x128xf32> to vector<2x128xf32>
      %c0_95 = arith.constant 0 : index
      %c0_96 = arith.constant 0 : index
      %c0_97 = arith.constant 0 : index
      %300 = vector.load %arg18[%c0_95, %c0_96, %c0_97] : memref<1x2x128xf32, #tpu.memory_space<vmem>>, vector<1x2x128xf32>
      %301 = vector.shape_cast %300 : vector<1x2x128xf32> to vector<2x128xf32>
      %302 = vector.shape_cast %299 : vector<2x128xf32> to vector<1x2x128xf32>
      tpu.vector_store %arg18[%c0_95, %c0_96, %c0_97], %302 {strides = array<i32>} : memref<1x2x128xf32, #tpu.memory_space<vmem>>, vector<1x2x128xf32>,
    } else {
    }
    return
  }
  func.func @transform_0(%arg0: i32, %arg1: i32) -> (i32, i32) {
    %c0_i32 = arith.constant 0 : i32
    %c0_i32_0 = arith.constant 0 : i32
    return %arg0, %c0_i32 : i32, i32
  }
  func.func @transform_1(%arg0: i32, %arg1: i32) -> (i32, i32) {
    %c0_i32 = arith.constant 0 : i32
    %c0_i32_0 = arith.constant 0 : i32
    %c0_i32_1 = arith.constant 0 : i32
    return %c0_i32, %c0_i32_0 : i32, i32
  }
  func.func @transform_2(%arg0: i32, %arg1: i32) -> (i32, i32) {
    %c0_i32 = arith.constant 0 : i32
    %c0_i32_0 = arith.constant 0 : i32
    %c0_i32_1 = arith.constant 0 : i32
    return %c0_i32, %c0_i32_0 : i32, i32
  }
  func.func @transform_3(%arg0: i32, %arg1: i32) -> (i32, i32) {
    %c0_i32 = arith.constant 0 : i32
    %c0_i32_0 = arith.constant 0 : i32
    %c0_i32_1 = arith.constant 0 : i32
    return %c0_i32, %c0_i32_0 : i32, i32
  }
  func.func @transform_4(%arg0: i32, %arg1: i32) -> (i32, i32, i32) {
    %c0_i32 = arith.constant 0 : i32
    %c0_i32_0 = arith.constant 0 : i32
    %c0_i32_1 = arith.constant 0 : i32
    return %arg1, %c0_i32, %c0_i32_0 : i32, i32, i32
  }
  func.func @transform_5(%arg0: i32, %arg1: i32) -> (i32, i32, i32) {
    %c0_i32 = arith.constant 0 : i32
    %c0_i32_0 = arith.constant 0 : i32
    %c0_i32_1 = arith.constant 0 : i32
    return %arg1, %c0_i32, %c0_i32_0 : i32, i32, i32
  }
  func.func @transform_6(%arg0: i32, %arg1: i32) -> (i32, i32, i32) {
    %c0_i32 = arith.constant 0 : i32
    %c0_i32_0 = arith.constant 0 : i32
    %c0_i32_1 = arith.constant 0 : i32
    return %arg1, %c0_i32, %c0_i32_0 : i32, i32, i32
  }
  func.func @transform_7(%arg0: i32, %arg1: i32) -> (i32, i32, i32) {
    %c0_i32 = arith.constant 0 : i32
    %c0_i32_0 = arith.constant 0 : i32
    %c0_i32_1 = arith.constant 0 : i32
    return %arg1, %c0_i32, %c0_i32_0 : i32, i32, i32
  }
  func.func @transform_8(%arg0: i32, %arg1: i32) -> (i32, i32, i32) {
    %c0_i32 = arith.constant 0 : i32
    %c0_i32_0 = arith.constant 0 : i32
    %c0_i32_1 = arith.constant 0 : i32
    return %arg1, %c0_i32, %c0_i32_0 : i32, i32, i32
  }
  func.func @transform_9(%arg0: i32, %arg1: i32) -> (i32, i32, i32) {
    %c0_i32 = arith.constant 0 : i32
    %c0_i32_0 = arith.constant 0 : i32
    %c0_i32_1 = arith.constant 0 : i32
    return %arg1, %c0_i32, %c0_i32_0 : i32, i32, i32
  }
  func.func @transform_10(%arg0: i32, %arg1: i32) -> (i32, i32, i32) {
    %c0_i32 = arith.constant 0 : i32
    %c0_i32_0 = arith.constant 0 : i32
    %c0_i32_1 = arith.constant 0 : i32
    return %arg1, %c0_i32, %c0_i32_0 : i32, i32, i32
  }
  func.func @transform_11(%arg0: i32, %arg1: i32) -> (i32, i32, i32) {
    %c0_i32 = arith.constant 0 : i32
    %c0_i32_0 = arith.constant 0 : i32
    %c0_i32_1 = arith.constant 0 : i32
    return %arg1, %c0_i32, %c0_i32_0 : i32, i32, i32
  }
  func.func @transform_12(%arg0: i32, %arg1: i32) -> (i32, i32, i32) {
    %c0_i32 = arith.constant 0 : i32
    %c0_i32_0 = arith.constant 0 : i32
    %c0_i32_1 = arith.constant 0 : i32
    return %arg1, %c0_i32, %c0_i32_0 : i32, i32, i32
  }
  func.func @transform_13(%arg0: i32, %arg1: i32) -> (i32, i32, i32) {
    %c0_i32 = arith.constant 0 : i32
    %c0_i32_0 = arith.constant 0 : i32
    %c0_i32_1 = arith.constant 0 : i32
    return %arg1, %c0_i32, %c0_i32_0 : i32, i32, i32
  }
  func.func @transform_14(%arg0: i32, %arg1: i32) -> (i32, i32, i32) {
    %c0_i32 = arith.constant 0 : i32
    %c0_i32_0 = arith.constant 0 : i32
    %c0_i32_1 = arith.constant 0 : i32
    return %arg1, %c0_i32, %c0_i32_0 : i32, i32, i32
  }
  func.func @transform_15(%arg0: i32, %arg1: i32) -> (i32, i32, i32) {
    %c0_i32 = arith.constant 0 : i32
    %c0_i32_0 = arith.constant 0 : i32
    %c0_i32_1 = arith.constant 0 : i32
    return %arg1, %c0_i32, %c0_i32_0 : i32, i32, i32
  }
  func.func @transform_16(%arg0: i32, %arg1: i32) -> (i32, i32, i32) {
    %c0_i32 = arith.constant 0 : i32
    %c0_i32_0 = arith.constant 0 : i32
    %c0_i32_1 = arith.constant 0 : i32
    return %arg0, %c0_i32, %c0_i32_0 : i32, i32, i32
  }
}

</mosaic_0001>

<llo_original>
// kernel: forward.1
$region0: #{forward.1}
  #allocation0 [shape = 'u32[]', space=smem, size = 0x4, offset = 0x4, fixed_abs, tag = 'smem constant byte address 0x4 - core index']
  #allocation1 [shape = 'u32[144,128]{1,0:T(1,128)}', space=vmem, size = 0x12000, scoped, tag = 'internal scratch']
  #allocation2 [shape = 'f32[16,128]{1,0:T(8,128)}', space=vmem, size = 0x2000, scoped, tag = 'scratch operand']
  %s0 = inlined_call_operand.vmem [shape: f32[16,8], index: 0, kind: input, shape index: {}]
  %s1 = inlined_call_operand.vmem [shape: f32[8,128], index: 1, kind: input, shape index: {}]
  %s2 = inlined_call_operand.vmem [shape: f32[1,128], index: 2, kind: input, shape index: {}]
  %s3 = inlined_call_operand.vmem [shape: f32[8,128], index: 3, kind: input, shape index: {}]
  %s4 = inlined_call_operand.vmem [shape: f32[3,1,128], index: 4, kind: input, shape index: {}]
  %s5 = inlined_call_operand.vmem [shape: f32[3,1,128], index: 5, kind: input, shape index: {}]
  %s6 = inlined_call_operand.hbm [shape: bf16[3,128,384], index: 6, kind: input, shape index: {}]
  %s7 = inlined_call_operand.vmem [shape: f32[3,1,384], index: 7, kind: input, shape index: {}]
  %s8 = inlined_call_operand.vmem [shape: bf16[3,128,128], index: 8, kind: input, shape index: {}]
  %s9 = inlined_call_operand.vmem [shape: f32[3,1,128], index: 9, kind: input, shape index: {}]
  %s10 = inlined_call_operand.vmem [shape: f32[3,1,128], index: 10, kind: input, shape index: {}]
  %s11 = inlined_call_operand.vmem [shape: f32[3,1,128], index: 11, kind: input, shape index: {}]
  %s12 = inlined_call_operand.hbm [shape: bf16[3,128,512], index: 12, kind: input, shape index: {}]
  %s13 = inlined_call_operand.vmem [shape: f32[3,1,512], index: 13, kind: input, shape index: {}]
  %s14 = inlined_call_operand.hbm [shape: bf16[3,512,128], index: 14, kind: input, shape index: {}]
  %s15 = inlined_call_operand.vmem [shape: f32[3,1,128], index: 15, kind: input, shape index: {}]
  %s16 = inlined_call_operand.vmem [shape: f32[1,2,128], index: 16, kind: output, shape index: {}]
  %s17 = sld [smem:[#allocation0]]
  $region117: #{forward.1} parent=0
    _
  %s19 = ssub.s32 1, %s17
  %s20 = scalar_select 0, %s19, %s17
  $region1: #{forward.1} parent=0
    #allocation3 [shape = 'u8[196608]{0}', space=vmem, size = 0x30000, scoped, tag = 'input window, operand 6']
    #allocation4 [shape = 's32[2]{0}', space=sflag, size = 0x8, scoped, tag = 'scoped memory for forward.1']
    #allocation5 [shape = 'u8[262144]{0}', space=vmem, size = 0x40000, scoped, tag = 'input window, operand 12']
    #allocation6 [shape = 's32[2]{0}', space=sflag, size = 0x8, scoped, tag = 'scoped memory for forward.1']
    #allocation7 [shape = 'u8[262144]{0}', space=vmem, size = 0x40000, scoped, tag = 'input window, operand 14']
    %21 = vsyncpa [#allocation4], 0
    %s22 = scalar_lea.sflag [#allocation4], 1
    %23 = vsyncpa %s22, 0
    %24 = vsyncpa [#allocation6], 0
    %s25 = scalar_lea.sflag [#allocation6], 1
    %26 = vsyncpa %s25, 0
    loop: start=0, step=1, limit=5
    $region2: #{forward.1} parent=1 // loop_pre_header
      _
    $region3: #{forward.1} parent=1 // loop_header
      %s28 = sphi 0, %s32
      %p29 = scmp.ge.s32.totalorder %s28, 5
      %s35 = sphi 0, %s47
      %s36 = sphi 0, %s43
      %s37 = sphi 0, %s35
      %s38 = sphi 0, %s36
      %s39 = sphi 0, %s37
      %s40 = sphi 0, %s38
      %s50 = sphi 0, %s52
      %s53 = sphi 0, %s50
      %s54 = sphi 0, %s53
      %s70 = sphi 0, %s54
      %s74 = sphi 0, %s74
      %s76 = sphi 0, %s74
      %s77 = sphi 0, %s76
      %s91 = sphi 0, %s77
      %s95 = sphi 0, %s95
      %s97 = sphi 0, %s95
      %s98 = sphi 0, %s97
      %s112 = sphi 0, %s98
      %s116 = sphi 0, %s116
      %s118 = sphi 0, %s116
      %s119 = sphi 0, %s118
      %s133 = sphi 0, %s119
      %s139 = sphi 0, %s141
      %s142 = sphi 0, %s139
      %s143 = sphi 0, %s142
      %s159 = sphi 0, %s143
      %s165 = sphi 0, %s167
      %s168 = sphi 0, %s165
      %s169 = sphi 0, %s168
      %s185 = sphi 0, %s169
      %s191 = sphi 0, %s193
      %s194 = sphi 0, %s191
      %s195 = sphi 0, %s194
      %s211 = sphi 0, %s195
      %s217 = sphi 0, %s219
      %s220 = sphi 0, %s217
      %s221 = sphi 0, %s220
      %s237 = sphi 0, %s221
      %s243 = sphi 0, %s245
      %s246 = sphi 0, %s243
      %s247 = sphi 0, %s246
      %s263 = sphi 0, %s247
      %s269 = sphi 0, %s271
      %s272 = sphi 0, %s269
      %s273 = sphi 0, %s272
      %s289 = sphi 0, %s273
      %s295 = sphi 0, %s297
      %s298 = sphi 0, %s295
      %s299 = sphi 0, %s298
      %s315 = sphi 0, %s299
      %s321 = sphi 0, %s323
      %s324 = sphi 0, %s321
      %s325 = sphi 0, %s324
      %s341 = sphi 0, %s325
      %s347 = sphi 0, %s349
      %s350 = sphi 0, %s347
      %s351 = sphi 0, %s350
      %s367 = sphi 0, %s351
      %s373 = sphi 0, %s375
      %s376 = sphi 0, %s373
      %s377 = sphi 0, %s376
      %s393 = sphi 0, %s377
      %s399 = sphi 0, %s401
      %s402 = sphi 0, %s399
      %s403 = sphi 0, %s402
      %s419 = sphi 0, %s403
      %s425 = sphi 0, %s427
      %s428 = sphi 0, %s425
      %s429 = sphi 0, %s428
      %s445 = sphi 0, %s429
      %s451 = sphi 0, %s453
      %s454 = sphi 0, %s451
      %s455 = sphi 0, %s454
      %s471 = sphi 0, %s455
    $region4: #{forward.1} parent=1 // loop_header_branch
      %31 = sbr.rel (%p29) target = $region8
    $region5: #{forward.1} parent=1 // loop_body
      %s33 = ssub.s32 %s28, 1
      %s34 = ssub.s32 %s28, 2
      %s41 = sadd.s32 1, %s36
      %p42 = scmp.ge.s32.totalorder %s41, 3
      %s43 = scalar_select %p42, 0, %s41
      %s44 = sadd.s32 1, %s35
      %s45 = scalar_select %p42, %s44, %s35
      %p46 = scmp.ge.s32.totalorder %s45, 1
      %s47 = scalar_select %p46, 0, %s45
      %s48 = ssub.s32 %s35, %s47
      %p49 = scmp.eq.s32.totalorder %s48, 0
      %s51 = sadd.s32 %s50, 1
      %s52 = scalar_select %p49, %s50, %s51
      %p55 = pneg %p49
      %p56 = scmp.eq.s32.totalorder %s28, 2
      %p57 = por %p55, %p56
      %p58 = scmp.ne.s32.totalorder %s50, %s53
      %p59 = scmp.eq.s32.totalorder %s28, 0
      %p60 = por %p58, %p59
      %p61 = scmp.ne.s32.totalorder %s50, %s53
      %p62 = scmp.eq.s32.totalorder %s33, 2
      %p63 = por %p61, %p62
      %p64 = scmp.ne.s32.totalorder %s53, %s54
      %p65 = scmp.eq.s32.totalorder %s33, 0
      %p66 = por %p64, %p65
      %p67 = scmp.ne.s32.totalorder %s53, %s54
      %p68 = scmp.eq.s32.totalorder %s34, 2
      %p69 = por %p67, %p68
      %p71 = scmp.ne.s32.totalorder %s54, %s70
      %p72 = scmp.eq.s32.totalorder %s34, 0
      %p73 = por %p71, %p72
      %s75 = sadd.s32 %s74, 1
      %p78 = scmp.eq.s32.totalorder %s28, 2
      %p79 = scmp.ne.s32.totalorder %s74, %s76
      %p80 = scmp.eq.s32.totalorder %s28, 0
      %p81 = por %p79, %p80
      %p82 = scmp.ne.s32.totalorder %s74, %s76
      %p83 = scmp.eq.s32.totalorder %s33, 2
      %p84 = por %p82, %p83
      %p85 = scmp.ne.s32.totalorder %s76, %s77
      %p86 = scmp.eq.s32.totalorder %s33, 0
      %p87 = por %p85, %p86
      %p88 = scmp.ne.s32.totalorder %s76, %s77
      %p89 = scmp.eq.s32.totalorder %s34, 2
      %p90 = por %p88, %p89
      %p92 = scmp.ne.s32.totalorder %s77, %s91
      %p93 = scmp.eq.s32.totalorder %s34, 0
      %p94 = por %p92, %p93
      %s96 = sadd.s32 %s95, 1
      %p99 = scmp.eq.s32.totalorder %s28, 2
      %p100 = scmp.ne.s32.totalorder %s95, %s97
      %p101 = scmp.eq.s32.totalorder %s28, 0
      %p102 = por %p100, %p101
      %p103 = scmp.ne.s32.totalorder %s95, %s97
      %p104 = scmp.eq.s32.totalorder %s33, 2
      %p105 = por %p103, %p104
      %p106 = scmp.ne.s32.totalorder %s97, %s98
      %p107 = scmp.eq.s32.totalorder %s33, 0
      %p108 = por %p106, %p107
      %p109 = scmp.ne.s32.totalorder %s97, %s98
      %p110 = scmp.eq.s32.totalorder %s34, 2
      %p111 = por %p109, %p110
      %p113 = scmp.ne.s32.totalorder %s98, %s112
      %p114 = scmp.eq.s32.totalorder %s34, 0
      %p115 = por %p113, %p114
      %s117 = sadd.s32 %s116, 1
      %p120 = scmp.eq.s32.totalorder %s28, 2
      %p121 = scmp.ne.s32.totalorder %s116, %s118
      %p122 = scmp.eq.s32.totalorder %s28, 0
      %p123 = por %p121, %p122
      %p124 = scmp.ne.s32.totalorder %s116, %s118
      %p125 = scmp.eq.s32.totalorder %s33, 2
      %p126 = por %p124, %p125
      %p127 = scmp.ne.s32.totalorder %s118, %s119
      %p128 = scmp.eq.s32.totalorder %s33, 0
      %p129 = por %p127, %p128
      %p130 = scmp.ne.s32.totalorder %s118, %s119
      %p131 = scmp.eq.s32.totalorder %s34, 2
      %p132 = por %p130, %p131
      %p134 = scmp.ne.s32.totalorder %s119, %s133
      %p135 = scmp.eq.s32.totalorder %s34, 0
      %p136 = por %p134, %p135
      %s137 = ssub.s32 %s36, %s43
      %p138 = scmp.eq.s32.totalorder %s137, 0
      %s140 = sadd.s32 %s139, 1
      %s141 = scalar_select %p138, %s139, %s140
      %p144 = pneg %p138
      %p145 = scmp.eq.s32.totalorder %s28, 2
      %p146 = por %p144, %p145
      %p147 = scmp.ne.s32.totalorder %s139, %s142
      %p148 = scmp.eq.s32.totalorder %s28, 0
      %p149 = por %p147, %p148
      %p150 = scmp.ne.s32.totalorder %s139, %s142
      %p151 = scmp.eq.s32.totalorder %s33, 2
      %p152 = por %p150, %p151
      %p153 = scmp.ne.s32.totalorder %s142, %s143
      %p154 = scmp.eq.s32.totalorder %s33, 0
      %p155 = por %p153, %p154
      %p156 = scmp.ne.s32.totalorder %s142, %s143
      %p157 = scmp.eq.s32.totalorder %s34, 2
      %p158 = por %p156, %p157
      %p160 = scmp.ne.s32.totalorder %s143, %s159
      %p161 = scmp.eq.s32.totalorder %s34, 0
      %p162 = por %p160, %p161
      %s163 = ssub.s32 %s36, %s43
      %p164 = scmp.eq.s32.totalorder %s163, 0
      %s166 = sadd.s32 %s165, 1
      %s167 = scalar_select %p164, %s165, %s166
      %p170 = pneg %p164
      %p171 = scmp.eq.s32.totalorder %s28, 2
      %p172 = por %p170, %p171
      %p173 = scmp.ne.s32.totalorder %s165, %s168
      %p174 = scmp.eq.s32.totalorder %s28, 0
      %p175 = por %p173, %p174
      %p176 = scmp.ne.s32.totalorder %s165, %s168
      %p177 = scmp.eq.s32.totalorder %s33, 2
      %p178 = por %p176, %p177
      %p179 = scmp.ne.s32.totalorder %s168, %s169
      %p180 = scmp.eq.s32.totalorder %s33, 0
      %p181 = por %p179, %p180
      %p182 = scmp.ne.s32.totalorder %s168, %s169
      %p183 = scmp.eq.s32.totalorder %s34, 2
      %p184 = por %p182, %p183
      %p186 = scmp.ne.s32.totalorder %s169, %s185
      %p187 = scmp.eq.s32.totalorder %s34, 0
      %p188 = por %p186, %p187
      %s189 = ssub.s32 %s36, %s43
      %p190 = scmp.eq.s32.totalorder %s189, 0
      %s192 = sadd.s32 %s191, 1
      %s193 = scalar_select %p190, %s191, %s192
      %p196 = pneg %p190
      %p197 = scmp.eq.s32.totalorder %s28, 2
      %p198 = por %p196, %p197
      %p199 = scmp.ne.s32.totalorder %s191, %s194
      %p200 = scmp.eq.s32.totalorder %s28, 0
      %p201 = por %p199, %p200
      %p202 = scmp.ne.s32.totalorder %s191, %s194
      %p203 = scmp.eq.s32.totalorder %s33, 2
      %p204 = por %p202, %p203
      %p205 = scmp.ne.s32.totalorder %s194, %s195
      %p206 = scmp.eq.s32.totalorder %s33, 0
      %p207 = por %p205, %p206
      %p208 = scmp.ne.s32.totalorder %s194, %s195
      %p209 = scmp.eq.s32.totalorder %s34, 2
      %p210 = por %p208, %p209
      %p212 = scmp.ne.s32.totalorder %s195, %s211
      %p213 = scmp.eq.s32.totalorder %s34, 0
      %p214 = por %p212, %p213
      %s215 = ssub.s32 %s36, %s43
      %p216 = scmp.eq.s32.totalorder %s215, 0
      %s218 = sadd.s32 %s217, 1
      %s219 = scalar_select %p216, %s217, %s218
      %p222 = pneg %p216
      %p223 = scmp.eq.s32.totalorder %s28, 2
      %p224 = por %p222, %p223
      %p225 = scmp.ne.s32.totalorder %s217, %s220
      %p226 = scmp.eq.s32.totalorder %s28, 0
      %p227 = por %p225, %p226
      %p228 = scmp.ne.s32.totalorder %s217, %s220
      %p229 = scmp.eq.s32.totalorder %s33, 2
      %p230 = por %p228, %p229
      %p231 = scmp.ne.s32.totalorder %s220, %s221
      %p232 = scmp.eq.s32.totalorder %s33, 0
      %p233 = por %p231, %p232
      %p234 = scmp.ne.s32.totalorder %s220, %s221
      %p235 = scmp.eq.s32.totalorder %s34, 2
      %p236 = por %p234, %p235
      %p238 = scmp.ne.s32.totalorder %s221, %s237
      %p239 = scmp.eq.s32.totalorder %s34, 0
      %p240 = por %p238, %p239
      %s241 = ssub.s32 %s36, %s43
      %p242 = scmp.eq.s32.totalorder %s241, 0
      %s244 = sadd.s32 %s243, 1
      %s245 = scalar_select %p242, %s243, %s244
      %p248 = pneg %p242
      %p249 = scmp.eq.s32.totalorder %s28, 2
      %p250 = por %p248, %p249
      %p251 = scmp.ne.s32.totalorder %s243, %s246
      %p252 = scmp.eq.s32.totalorder %s28, 0
      %p253 = por %p251, %p252
      %p254 = scmp.ne.s32.totalorder %s243, %s246
      %p255 = scmp.eq.s32.totalorder %s33, 2
      %p256 = por %p254, %p255
      %p257 = scmp.ne.s32.totalorder %s246, %s247
      %p258 = scmp.eq.s32.totalorder %s33, 0
      %p259 = por %p257, %p258
      %p260 = scmp.ne.s32.totalorder %s246, %s247
      %p261 = scmp.eq.s32.totalorder %s34, 2
      %p262 = por %p260, %p261
      %p264 = scmp.ne.s32.totalorder %s247, %s263
      %p265 = scmp.eq.s32.totalorder %s34, 0
      %p266 = por %p264, %p265
      %s267 = ssub.s32 %s36, %s43
      %p268 = scmp.eq.s32.totalorder %s267, 0
      %s270 = sadd.s32 %s269, 1
      %s271 = scalar_select %p268, %s269, %s270
      %p274 = pneg %p268
      %p275 = scmp.eq.s32.totalorder %s28, 2
      %p276 = por %p274, %p275
      %p277 = scmp.ne.s32.totalorder %s269, %s272
      %p278 = scmp.eq.s32.totalorder %s28, 0
      %p279 = por %p277, %p278
      %p280 = scmp.ne.s32.totalorder %s269, %s272
      %p281 = scmp.eq.s32.totalorder %s33, 2
      %p282 = por %p280, %p281
      %p283 = scmp.ne.s32.totalorder %s272, %s273
      %p284 = scmp.eq.s32.totalorder %s33, 0
      %p285 = por %p283, %p284
      %p286 = scmp.ne.s32.totalorder %s272, %s273
      %p287 = scmp.eq.s32.totalorder %s34, 2
      %p288 = por %p286, %p287
      %p290 = scmp.ne.s32.totalorder %s273, %s289
      %p291 = scmp.eq.s32.totalorder %s34, 0
      %p292 = por %p290, %p291
      %s293 = ssub.s32 %s36, %s43
      %p294 = scmp.eq.s32.totalorder %s293, 0
      %s296 = sadd.s32 %s295, 1
      %s297 = scalar_select %p294, %s295, %s296
      %p300 = pneg %p294
      %p301 = scmp.eq.s32.totalorder %s28, 2
      %p302 = por %p300, %p301
      %p303 = scmp.ne.s32.totalorder %s295, %s298
      %p304 = scmp.eq.s32.totalorder %s28, 0
      %p305 = por %p303, %p304
      %p306 = scmp.ne.s32.totalorder %s295, %s298
      %p307 = scmp.eq.s32.totalorder %s33, 2
      %p308 = por %p306, %p307
      %p309 = scmp.ne.s32.totalorder %s298, %s299
      %p310 = scmp.eq.s32.totalorder %s33, 0
      %p311 = por %p309, %p310
      %p312 = scmp.ne.s32.totalorder %s298, %s299
      %p313 = scmp.eq.s32.totalorder %s34, 2
      %p314 = por %p312, %p313
      %p316 = scmp.ne.s32.totalorder %s299, %s315
      %p317 = scmp.eq.s32.totalorder %s34, 0
      %p318 = por %p316, %p317
      %s319 = ssub.s32 %s36, %s43
      %p320 = scmp.eq.s32.totalorder %s319, 0
      %s322 = sadd.s32 %s321, 1
      %s323 = scalar_select %p320, %s321, %s322
      %p326 = pneg %p320
      %p327 = scmp.eq.s32.totalorder %s28, 2
      %p328 = por %p326, %p327
      %p329 = scmp.ne.s32.totalorder %s321, %s324
      %p330 = scmp.eq.s32.totalorder %s28, 0
      %p331 = por %p329, %p330
      %p332 = scmp.ne.s32.totalorder %s321, %s324
      %p333 = scmp.eq.s32.totalorder %s33, 2
      %p334 = por %p332, %p333
      %p335 = scmp.ne.s32.totalorder %s324, %s325
      %p336 = scmp.eq.s32.totalorder %s33, 0
      %p337 = por %p335, %p336
      %p338 = scmp.ne.s32.totalorder %s324, %s325
      %p339 = scmp.eq.s32.totalorder %s34, 2
      %p340 = por %p338, %p339
      %p342 = scmp.ne.s32.totalorder %s325, %s341
      %p343 = scmp.eq.s32.totalorder %s34, 0
      %p344 = por %p342, %p343
      %s345 = ssub.s32 %s36, %s43
      %p346 = scmp.eq.s32.totalorder %s345, 0
      %s348 = sadd.s32 %s347, 1
      %s349 = scalar_select %p346, %s347, %s348
      %p352 = pneg %p346
      %p353 = scmp.eq.s32.totalorder %s28, 2
      %p354 = por %p352, %p353
      %p355 = scmp.ne.s32.totalorder %s347, %s350
      %p356 = scmp.eq.s32.totalorder %s28, 0
      %p357 = por %p355, %p356
      %p358 = scmp.ne.s32.totalorder %s347, %s350
      %p359 = scmp.eq.s32.totalorder %s33, 2
      %p360 = por %p358, %p359
      %p361 = scmp.ne.s32.totalorder %s350, %s351
      %p362 = scmp.eq.s32.totalorder %s33, 0
      %p363 = por %p361, %p362
      %p364 = scmp.ne.s32.totalorder %s350, %s351
      %p365 = scmp.eq.s32.totalorder %s34, 2
      %p366 = por %p364, %p365
      %p368 = scmp.ne.s32.totalorder %s351, %s367
      %p369 = scmp.eq.s32.totalorder %s34, 0
      %p370 = por %p368, %p369
      %s371 = ssub.s32 %s36, %s43
      %p372 = scmp.eq.s32.totalorder %s371, 0
      %s374 = sadd.s32 %s373, 1
      %s375 = scalar_select %p372, %s373, %s374
      %p378 = pneg %p372
      %p379 = scmp.eq.s32.totalorder %s28, 2
      %p380 = por %p378, %p379
      %p381 = scmp.ne.s32.totalorder %s373, %s376
      %p382 = scmp.eq.s32.totalorder %s28, 0
      %p383 = por %p381, %p382
      %p384 = scmp.ne.s32.totalorder %s373, %s376
      %p385 = scmp.eq.s32.totalorder %s33, 2
      %p386 = por %p384, %p385
      %p387 = scmp.ne.s32.totalorder %s376, %s377
      %p388 = scmp.eq.s32.totalorder %s33, 0
      %p389 = por %p387, %p388
      %p390 = scmp.ne.s32.totalorder %s376, %s377
      %p391 = scmp.eq.s32.totalorder %s34, 2
      %p392 = por %p390, %p391
      %p394 = scmp.ne.s32.totalorder %s377, %s393
      %p395 = scmp.eq.s32.totalorder %s34, 0
      %p396 = por %p394, %p395
      %s397 = ssub.s32 %s36, %s43
      %p398 = scmp.eq.s32.totalorder %s397, 0
      %s400 = sadd.s32 %s399, 1
      %s401 = scalar_select %p398, %s399, %s400
      %p404 = pneg %p398
      %p405 = scmp.eq.s32.totalorder %s28, 2
      %p406 = por %p404, %p405
      %p407 = scmp.ne.s32.totalorder %s399, %s402
      %p408 = scmp.eq.s32.totalorder %s28, 0
      %p409 = por %p407, %p408
      %p410 = scmp.ne.s32.totalorder %s399, %s402
      %p411 = scmp.eq.s32.totalorder %s33, 2
      %p412 = por %p410, %p411
      %p413 = scmp.ne.s32.totalorder %s402, %s403
      %p414 = scmp.eq.s32.totalorder %s33, 0
      %p415 = por %p413, %p414
      %p416 = scmp.ne.s32.totalorder %s402, %s403
      %p417 = scmp.eq.s32.totalorder %s34, 2
      %p418 = por %p416, %p417
      %p420 = scmp.ne.s32.totalorder %s403, %s419
      %p421 = scmp.eq.s32.totalorder %s34, 0
      %p422 = por %p420, %p421
      %s423 = ssub.s32 %s36, %s43
      %p424 = scmp.eq.s32.totalorder %s423, 0
      %s426 = sadd.s32 %s425, 1
      %s427 = scalar_select %p424, %s425, %s426
      %p430 = pneg %p424
      %p431 = scmp.eq.s32.totalorder %s28, 2
      %p432 = por %p430, %p431
      %p433 = scmp.ne.s32.totalorder %s425, %s428
      %p434 = scmp.eq.s32.totalorder %s28, 0
      %p435 = por %p433, %p434
      %p436 = scmp.ne.s32.totalorder %s425, %s428
      %p437 = scmp.eq.s32.totalorder %s33, 2
      %p438 = por %p436, %p437
      %p439 = scmp.ne.s32.totalorder %s428, %s429
      %p440 = scmp.eq.s32.totalorder %s33, 0
      %p441 = por %p439, %p440
      %p442 = scmp.ne.s32.totalorder %s428, %s429
      %p443 = scmp.eq.s32.totalorder %s34, 2
      %p444 = por %p442, %p443
      %p446 = scmp.ne.s32.totalorder %s429, %s445
      %p447 = scmp.eq.s32.totalorder %s34, 0
      %p448 = por %p446, %p447
      %s449 = ssub.s32 %s35, %s47
      %p450 = scmp.eq.s32.totalorder %s449, 0
      %s452 = sadd.s32 %s451, 1
      %s453 = scalar_select %p450, %s451, %s452
      %p456 = pneg %p450
      %p457 = scmp.eq.s32.totalorder %s28, 2
      %p458 = por %p456, %p457
      %p459 = scmp.ne.s32.totalorder %s451, %s454
      %p460 = scmp.eq.s32.totalorder %s28, 0
      %p461 = por %p459, %p460
      %p462 = scmp.ne.s32.totalorder %s451, %s454
      %p463 = scmp.eq.s32.totalorder %s33, 2
      %p464 = por %p462, %p463
      %p465 = scmp.ne.s32.totalorder %s454, %s455
      %p466 = scmp.eq.s32.totalorder %s33, 0
      %p467 = por %p465, %p466
      %p468 = scmp.ne.s32.totalorder %s454, %s455
      %p469 = scmp.eq.s32.totalorder %s34, 2
      %p470 = por %p468, %p469
      %p472 = scmp.ne.s32.totalorder %s455, %s471
      %p473 = scmp.eq.s32.totalorder %s34, 0
      %p474 = por %p472, %p473
      %p475 = scmp.le.s32.totalorder 1, %s28
      %p476 = scmp.lt.s32.totalorder %s28, 4
      %p477 = pnand %p475, %p476
      %p478 = pneg %p477
      // Predicated region
      $region9: #{forward.1} parent=5 // pred_check
        _
      $region10: #{forward.1} parent=5 // pred_check_branch
        %480 = sbr.rel (%p477) target = $region12
      $region11: #{forward.1} parent=5 // pred_region
        %s481 = ssub.s32 %s28, 1
        // Predicated region
        $region13: #{forward.1} parent=11 // pred_check
          %p482 = pneg %p66
        $region14: #{forward.1} parent=11 // pred_check_branch
          %484 = sbr.rel (%p482) target = $region16
        $region15: #{forward.1} parent=11 // pred_region
          %s485 = smul.u32 2, %s37
          %p486 = scmp.lt.s32.totalorder %s485, 1
          %s487 = scalar_select %p486, %s485, 1
          %s488 = smul.addr %s487, 8
          %s489 = scalar_lea.vmem %s0, %s488
          %s490 = smul.u32 2, %s37
        $region16: #{forward.1} parent=11 // pred_fallthru
          _
        // Predicated region
        $region17: #{forward.1} parent=11 // pred_check
          %p491 = pneg %p87
        $region18: #{forward.1} parent=11 // pred_check_branch
          %493 = sbr.rel (%p491) target = $region20
        $region19: #{forward.1} parent=11 // pred_region
          _
        $region20: #{forward.1} parent=11 // pred_fallthru
          _
        // Predicated region
        $region21: #{forward.1} parent=11 // pred_check
          %p494 = pneg %p108
        $region22: #{forward.1} parent=11 // pred_check_branch
          %496 = sbr.rel (%p494) target = $region24
        $region23: #{forward.1} parent=11 // pred_region
          _
        $region24: #{forward.1} parent=11 // pred_fallthru
          _
        // Predicated region
        $region25: #{forward.1} parent=11 // pred_check
          %p497 = pneg %p129
        $region26: #{forward.1} parent=11 // pred_check_branch
          %499 = sbr.rel (%p497) target = $region28
        $region27: #{forward.1} parent=11 // pred_region
          _
        $region28: #{forward.1} parent=11 // pred_fallthru
          _
      $region12: #{forward.1} parent=5 // pred_fallthru
        _
      %p500 = scmp.lt.s32.totalorder %s28, 3
      // Predicated region
      $region29: #{forward.1} parent=5 // pred_check
        %p501 = pneg %p500
      $region30: #{forward.1} parent=5 // pred_check_branch
        %503 = sbr.rel (%p501) target = $region32
      $region31: #{forward.1} parent=5 // pred_region
        // Predicated region
        $region33: #{forward.1} parent=31 // pred_check
          %p504 = pneg %p149
        $region34: #{forward.1} parent=31 // pred_check_branch
          %506 = sbr.rel (%p504) target = $region36
        $region35: #{forward.1} parent=31 // pred_region
          %p507 = scmp.lt.s32.totalorder %s36, 2
          %s508 = scalar_select %p507, %s36, 2
          %s509 = scalar_lea.vmem %s4, %s508
        $region36: #{forward.1} parent=31 // pred_fallthru
          _
        // Predicated region
        $region37: #{forward.1} parent=31 // pred_check
          %p510 = pneg %p175
        $region38: #{forward.1} parent=31 // pred_check_branch
          %512 = sbr.rel (%p510) target = $region40
        $region39: #{forward.1} parent=31 // pred_region
          %p513 = scmp.lt.s32.totalorder %s36, 2
          %s514 = scalar_select %p513, %s36, 2
          %s515 = scalar_lea.vmem %s5, %s514
        $region40: #{forward.1} parent=31 // pred_fallthru
          _
        // Predicated region
        $region41: #{forward.1} parent=31 // pred_check
          %p516 = pneg %p201
        $region42: #{forward.1} parent=31 // pred_check_branch
          %518 = sbr.rel (%p516) target = $region44
        $region43: #{forward.1} parent=31 // pred_region
          %s519 = sand.u32 %s191, 1
          %s520 = scalar_lea.sflag [#allocation4], %s519
          %s521 = sand.u32 %s191, 1
          %s522 = smul.addr %s521, 192
          %s523 = scalar_lea.vmem [#allocation3], %s522
          %s525 = ssub.s32 3072, 3072
          %526 = vsyncadd %s520, %s525
          %s527 = smul.addr %s36, 48
          %s528 = smul.addr %s527, 64
          %s529 = scalar_lea.hbm %s6, %s528
          %s530 = sshll.u32 %s523, 4
          %s531 = int_to_ptr.vmem [resolvable:$true] %s530
          %536 = dma.hbm_to_vmem [thread:$0]  %s529, 3072, %s531, %s520, 192, 192, 12
        $region44: #{forward.1} parent=31 // pred_fallthru
          _
        // Predicated region
        $region45: #{forward.1} parent=31 // pred_check
          %p537 = pneg %p227
        $region46: #{forward.1} parent=31 // pred_check_branch
          %539 = sbr.rel (%p537) target = $region48
        $region47: #{forward.1} parent=31 // pred_region
          %p540 = scmp.lt.s32.totalorder %s36, 2
          %s541 = scalar_select %p540, %s36, 2
          %s542 = smul.addr %s541, 3
          %s543 = scalar_lea.vmem %s7, %s542
        $region48: #{forward.1} parent=31 // pred_fallthru
          _
        // Predicated region
        $region49: #{forward.1} parent=31 // pred_check
          %p544 = pneg %p253
        $region50: #{forward.1} parent=31 // pred_check_branch
          %546 = sbr.rel (%p544) target = $region52
        $region51: #{forward.1} parent=31 // pred_region
          %p547 = scmp.lt.s32.totalorder %s36, 2
          %s548 = scalar_select %p547, %s36, 2
          %s549 = smul.addr %s548, 16
          %s550 = smul.addr %s549, 4
          %s551 = scalar_lea.vmem %s8, %s550
        $region52: #{forward.1} parent=31 // pred_fallthru
          _
        // Predicated region
        $region53: #{forward.1} parent=31 // pred_check
          %p552 = pneg %p279
        $region54: #{forward.1} parent=31 // pred_check_branch
          %554 = sbr.rel (%p552) target = $region56
        $region55: #{forward.1} parent=31 // pred_region
          %p555 = scmp.lt.s32.totalorder %s36, 2
          %s556 = scalar_select %p555, %s36, 2
          %s557 = scalar_lea.vmem %s9, %s556
        $region56: #{forward.1} parent=31 // pred_fallthru
          _
        // Predicated region
        $region57: #{forward.1} parent=31 // pred_check
          %p558 = pneg %p305
        $region58: #{forward.1} parent=31 // pred_check_branch
          %560 = sbr.rel (%p558) target = $region60
        $region59: #{forward.1} parent=31 // pred_region
          %p561 = scmp.lt.s32.totalorder %s36, 2
          %s562 = scalar_select %p561, %s36, 2
          %s563 = scalar_lea.vmem %s10, %s562
        $region60: #{forward.1} parent=31 // pred_fallthru
          _
        // Predicated region
        $region61: #{forward.1} parent=31 // pred_check
          %p564 = pneg %p331
        $region62: #{forward.1} parent=31 // pred_check_branch
          %566 = sbr.rel (%p564) target = $region64
        $region63: #{forward.1} parent=31 // pred_region
          %p567 = scmp.lt.s32.totalorder %s36, 2
          %s568 = scalar_select %p567, %s36, 2
          %s569 = scalar_lea.vmem %s11, %s568
        $region64: #{forward.1} parent=31 // pred_fallthru
          _
        // Predicated region
        $region65: #{forward.1} parent=31 // pred_check
          %p570 = pneg %p357
        $region66: #{forward.1} parent=31 // pred_check_branch
          %572 = sbr.rel (%p570) target = $region68
        $region67: #{forward.1} parent=31 // pred_region
          %s573 = sand.u32 %s28, 1
          %s574 = scalar_lea.sflag [#allocation6], %s573
          %s575 = sand.u32 %s347, 1
          %s576 = smul.addr %s575, 256
          %s577 = scalar_lea.vmem [#allocation5], %s576
          %s579 = ssub.s32 4096, 4096
          %580 = vsyncadd %s574, %s579
          %s581 = smul.addr %s36, 64
          %s582 = smul.addr %s581, 64
          %s583 = scalar_lea.hbm %s12, %s582
          %s584 = sshll.u32 %s577, 4
          %s585 = int_to_ptr.vmem [resolvable:$true] %s584
          %590 = dma.hbm_to_vmem [thread:$0]  %s583, 4096, %s585, %s574, 256, 256, 16
        $region68: #{forward.1} parent=31 // pred_fallthru
          _
        // Predicated region
        $region69: #{forward.1} parent=31 // pred_check
          %p591 = pneg %p383
        $region70: #{forward.1} parent=31 // pred_check_branch
          %593 = sbr.rel (%p591) target = $region72
        $region71: #{forward.1} parent=31 // pred_region
          %p594 = scmp.lt.s32.totalorder %s36, 2
          %s595 = scalar_select %p594, %s36, 2
          %s596 = smul.addr %s595, 4
          %s597 = scalar_lea.vmem %s13, %s596
        $region72: #{forward.1} parent=31 // pred_fallthru
          _
        // Predicated region
        $region73: #{forward.1} parent=31 // pred_check
          %p598 = pneg %p409
        $region74: #{forward.1} parent=31 // pred_check_branch
          %600 = sbr.rel (%p598) target = $region76
        $region75: #{forward.1} parent=31 // pred_region
          %s601 = sand.u32 %s28, 1
          %s602 = scalar_lea.sflag [#allocation6], %s601
          %s603 = sand.u32 %s399, 1
          %s604 = smul.addr %s603, 256
          %s605 = scalar_lea.vmem [#allocation7], %s604
          %s607 = ssub.s32 4096, 4096
          %608 = vsyncadd %s602, %s607
          %s609 = smul.addr %s36, 64
          %s610 = smul.addr %s609, 64
          %s611 = scalar_lea.hbm %s14, %s610
          %s612 = sshll.u32 %s605, 4
          %s613 = int_to_ptr.vmem [resolvable:$true] %s612
          %618 = dma.hbm_to_vmem [thread:$0]  %s611, 4096, %s613, %s602, 64, 64, 4
        $region76: #{forward.1} parent=31 // pred_fallthru
          _
        // Predicated region
        $region77: #{forward.1} parent=31 // pred_check
          %p619 = pneg %p435
        $region78: #{forward.1} parent=31 // pred_check_branch
          %621 = sbr.rel (%p619) target = $region80
        $region79: #{forward.1} parent=31 // pred_region
          %p622 = scmp.lt.s32.totalorder %s36, 2
          %s623 = scalar_select %p622, %s36, 2
          %s624 = scalar_lea.vmem %s15, %s623
        $region80: #{forward.1} parent=31 // pred_fallthru
          _
      $region32: #{forward.1} parent=5 // pred_fallthru
        _
      %p625 = scmp.le.s32.totalorder 1, %s28
      %p626 = scmp.lt.s32.totalorder %s28, 4
      %p627 = pnand %p625, %p626
      %p628 = pneg %p627
      // Predicated region
      $region81: #{forward.1} parent=5 // pred_check
        _
      $region82: #{forward.1} parent=5 // pred_check_branch
        %630 = sbr.rel (%p627) target = $region84
      $region83: #{forward.1} parent=5 // pred_region
        %s631 = ssub.s32 %s28, 1
        %s632 = sand.u32 %s194, 1
        %s633 = scalar_lea.sflag [#allocation4], %s632
        %s634 = sand.u32 %s194, 1
        %s635 = smul.addr %s634, 192
        %s636 = scalar_lea.vmem [#allocation3], %s635
        // Predicated region
        $region85: #{forward.1} parent=83 // pred_check
          %p637 = pneg %p207
        $region86: #{forward.1} parent=83 // pred_check_branch
          %639 = sbr.rel (%p637) target = $region88
        $region87: #{forward.1} parent=83 // pred_region
          %640 = dma.done %s633, 3072
        $region88: #{forward.1} parent=83 // pred_fallthru
          _
        %s641 = sand.u32 %s33, 1
        %s642 = scalar_lea.sflag [#allocation6], %s641
        %s643 = sand.u32 %s350, 1
        %s644 = smul.addr %s643, 256
        %s645 = scalar_lea.vmem [#allocation5], %s644
        // Predicated region
        $region89: #{forward.1} parent=83 // pred_check
          %p646 = pneg %p363
        $region90: #{forward.1} parent=83 // pred_check_branch
          %648 = sbr.rel (%p646) target = $region92
        $region91: #{forward.1} parent=83 // pred_region
          %649 = dma.done %s642, 4096
        $region92: #{forward.1} parent=83 // pred_fallthru
          _
        %s650 = sand.u32 %s33, 1
        %s651 = scalar_lea.sflag [#allocation6], %s650
        %s652 = sand.u32 %s402, 1
        %s653 = smul.addr %s652, 256
        %s654 = scalar_lea.vmem [#allocation7], %s653
        // Predicated region
        $region93: #{forward.1} parent=83 // pred_check
          %p655 = pneg %p415
        $region94: #{forward.1} parent=83 // pred_check_branch
          %657 = sbr.rel (%p655) target = $region96
        $region95: #{forward.1} parent=83 // pred_region
          %658 = dma.done %s651, 4096
        $region96: #{forward.1} parent=83 // pred_fallthru
          _
        %s659 = smul.u32 2, %s37
        %p660 = scmp.lt.s32.totalorder %s659, 1
        %s661 = scalar_select %p660, %s659, 1
        %s662 = smul.addr %s661, 8
        %s663 = scalar_lea.vmem %s0, %s662
        %p664 = pneg %p66
        %p665 = pneg %p63
        %p666 = pneg %p87
        %p667 = pneg %p84
        %p668 = pneg %p108
        %p669 = pneg %p105
        %p670 = pneg %p129
        %p671 = pneg %p126
        %p672 = scmp.lt.s32.totalorder %s38, 2
        %s673 = scalar_select %p672, %s38, 2
        %s674 = scalar_lea.vmem %s4, %s673
        %p675 = pneg %p155
        %p676 = pneg %p152
        %p677 = scmp.lt.s32.totalorder %s38, 2
        %s678 = scalar_select %p677, %s38, 2
        %s679 = scalar_lea.vmem %s5, %s678
        %p680 = pneg %p181
        %p681 = pneg %p178
        %s682 = sand.u32 %s194, 1
        %s683 = scalar_lea.sflag [#allocation4], %s682
        %s684 = sand.u32 %s194, 1
        %s685 = smul.addr %s684, 192
        %s686 = scalar_lea.vmem [#allocation3], %s685
        %p687 = pneg %p207
        %p688 = pneg %p204
        %p689 = scmp.lt.s32.totalorder %s38, 2
        %s690 = scalar_select %p689, %s38, 2
        %s691 = smul.addr %s690, 3
        %s692 = scalar_lea.vmem %s7, %s691
        %p693 = pneg %p233
        %p694 = pneg %p230
        %p695 = scmp.lt.s32.totalorder %s38, 2
        %s696 = scalar_select %p695, %s38, 2
        %s697 = smul.addr %s696, 16
        %s698 = smul.addr %s697, 4
        %s699 = scalar_lea.vmem %s8, %s698
        %p700 = pneg %p259
        %p701 = pneg %p256
        %p702 = scmp.lt.s32.totalorder %s38, 2
        %s703 = scalar_select %p702, %s38, 2
        %s704 = scalar_lea.vmem %s9, %s703
        %p705 = pneg %p285
        %p706 = pneg %p282
        %p707 = scmp.lt.s32.totalorder %s38, 2
        %s708 = scalar_select %p707, %s38, 2
        %s709 = scalar_lea.vmem %s10, %s708
        %p710 = pneg %p311
        %p711 = pneg %p308
        %p712 = scmp.lt.s32.totalorder %s38, 2
        %s713 = scalar_select %p712, %s38, 2
        %s714 = scalar_lea.vmem %s11, %s713
        %p715 = pneg %p337
        %p716 = pneg %p334
        %s717 = sand.u32 %s33, 1
        %s718 = scalar_lea.sflag [#allocation6], %s717
        %s719 = sand.u32 %s350, 1
        %s720 = smul.addr %s719, 256
        %s721 = scalar_lea.vmem [#allocation5], %s720
        %p722 = pneg %p363
        %p723 = pneg %p360
        %p724 = scmp.lt.s32.totalorder %s38, 2
        %s725 = scalar_select %p724, %s38, 2
        %s726 = smul.addr %s725, 4
        %s727 = scalar_lea.vmem %s13, %s726
        %p728 = pneg %p389
        %p729 = pneg %p386
        %s730 = sand.u32 %s33, 1
        %s731 = scalar_lea.sflag [#allocation6], %s730
        %s732 = sand.u32 %s402, 1
        %s733 = smul.addr %s732, 256
        %s734 = scalar_lea.vmem [#allocation7], %s733
        %p735 = pneg %p415
        %p736 = pneg %p412
        %p737 = scmp.lt.s32.totalorder %s38, 2
        %s738 = scalar_select %p737, %s38, 2
        %s739 = scalar_lea.vmem %s15, %s738
        %p740 = pneg %p441
        %p741 = pneg %p438
        %p742 = pneg %p467
        %p743 = pneg %p464
        %p744 = scmp.lt.s32.totalorder %s37, 0
        %s745 = scalar_select %p744, %s37, 0
        %s746 = smul.addr %s745, 2
        %s747 = scalar_lea.vmem %s16, %s746
        %s748 = smul.u32 2, %s37
        %p749 = scmp.lt.s32.totalorder %s748, 1
        %s750 = scalar_select %p749, %s748, 1
        %s751 = smul.addr %s750, 8
        %s752 = scalar_lea.vmem %s0, %s751
        %s753 = smul.u32 2, %s37
        %p754 = scmp.lt.s32.totalorder %s38, 2
        %s755 = scalar_select %p754, %s38, 2
        %s756 = scalar_lea.vmem %s4, %s755
        %p757 = scmp.lt.s32.totalorder %s38, 2
        %s758 = scalar_select %p757, %s38, 2
        %s759 = scalar_lea.vmem %s5, %s758
        %p760 = scmp.lt.s32.totalorder %s38, 2
        %s761 = scalar_select %p760, %s38, 2
        %s762 = smul.addr %s761, 3
        %s763 = scalar_lea.vmem %s7, %s762
        %p764 = scmp.lt.s32.totalorder %s38, 2
        %s765 = scalar_select %p764, %s38, 2
        %s766 = smul.addr %s765, 16
        %s767 = smul.addr %s766, 4
        %s768 = scalar_lea.vmem %s8, %s767
        %p769 = scmp.lt.s32.totalorder %s38, 2
        %s770 = scalar_select %p769, %s38, 2
        %s771 = scalar_lea.vmem %s9, %s770
        %p772 = scmp.lt.s32.totalorder %s38, 2
        %s773 = scalar_select %p772, %s38, 2
        %s774 = scalar_lea.vmem %s10, %s773
        %p775 = scmp.lt.s32.totalorder %s38, 2
        %s776 = scalar_select %p775, %s38, 2
        %s777 = scalar_lea.vmem %s11, %s776
        %p778 = scmp.lt.s32.totalorder %s38, 2
        %s779 = scalar_select %p778, %s38, 2
        %s780 = smul.addr %s779, 4
        %s781 = scalar_lea.vmem %s13, %s780
        %p782 = scmp.lt.s32.totalorder %s38, 2
        %s783 = scalar_select %p782, %s38, 2
        %s784 = scalar_lea.vmem %s15, %s783
        %p785 = scmp.lt.s32.totalorder %s37, 0
        %s786 = scalar_select %p785, %s37, 0
        %s787 = smul.addr %s786, 2
        %s788 = scalar_lea.vmem %s16, %s787
        %p790 = scmp.eq.s32.totalorder %s38, 0
        // Predicated region
        $region97: #{forward.1} parent=83 // pred_check
          %p791 = pneg %p790
        $region98: #{forward.1} parent=83 // pred_check_branch
          %793 = sbr.rel (%p791) target = $region100
        $region99: #{forward.1} parent=83 // pred_region
          %v794 = vld [vmem:[%s752] sm:$0xff]
          %v795 = vld [vmem:[%s752 + $0x8] sm:$0xff]
          %v796 = vld [vmem:[%s1] sm:$0xff]
          %v797 = vld [vmem:[%s2] sm:$0x1]
          %v799 = vlaneseq
          %v800 = vshrl.u32 %v799, 7
          %v801 = vsub.s32 0, %v800
          %v802 = vrot.slane %v797, %v801
          %vm804 = vcmask 64512
          %v806 = vsel %vm804, %v794, 0
          %v809 = vsel %vm804, %v795, 0
          %811 = vmatprep.subr.mxu0 0.0
          %812 = vmatpush1.msra.mxu0 0.0
          %813 = vmatprep.subr.mxu0 0.0
          %814 = vmatpush1.msra.mxu0 0.0
          %815 = vmatprep.subr.mxu0 0.0
          %816 = vmatpush1.msra.mxu0 0.0
          %817 = vmatprep.subr.mxu0 0.0
          %818 = vmatpush1.msra.mxu0 0.0
          %819 = vmatprep.subr.mxu0 0.0
          %820 = vmatpush1.msra.mxu0 0.0
          %821 = vmatprep.subr.mxu0 0.0
          %822 = vmatpush1.msra.mxu0 0.0
          %823 = vmatprep.subr.mxu0 0.0
          %824 = vmatpush1.msra.mxu0 0.0
          %825 = vmatprep.subr.mxu0 0.0
          %826 = vmatpush1.msra.mxu0 0.0
          %827 = vmatprep.subr.mxu0 0.0
          %828 = vmatpush1.msra.mxu0 0.0
          %829 = vmatprep.subr.mxu0 0.0
          %830 = vmatpush1.msra.mxu0 0.0
          %831 = vmatprep.subr.mxu0 0.0
          %832 = vmatpush1.msra.mxu0 0.0
          %833 = vmatprep.subr.mxu0 0.0
          %834 = vmatpush1.msra.mxu0 0.0
          %835 = vmatprep.subr.mxu0 0.0
          %836 = vmatpush1.msra.mxu0 0.0
          %837 = vmatprep.subr.mxu0 0.0
          %838 = vmatpush1.msra.mxu0 0.0
          %839 = vmatprep.subr.mxu0 0.0
          %840 = vmatpush1.msra.mxu0 0.0
          %841 = vmatprep.subr.mxu0 0.0
          %842 = vmatpush1.msra.mxu0 %v796
          %843 = vmatprep.subr.mxu0 0.0
          %844 = vmatpush2.msra.mxu0 0.0
          %845 = vmatprep.subr.mxu0 0.0
          %846 = vmatpush2.msra.mxu0 0.0
          %847 = vmatprep.subr.mxu0 0.0
          %848 = vmatpush2.msra.mxu0 0.0
          %849 = vmatprep.subr.mxu0 0.0
          %850 = vmatpush2.msra.mxu0 0.0
          %851 = vmatprep.subr.mxu0 0.0
          %852 = vmatpush2.msra.mxu0 0.0
          %853 = vmatprep.subr.mxu0 0.0
          %854 = vmatpush2.msra.mxu0 0.0
          %855 = vmatprep.subr.mxu0 0.0
          %856 = vmatpush2.msra.mxu0 0.0
          %857 = vmatprep.subr.mxu0 0.0
          %858 = vmatpush2.msra.mxu0 0.0
          %859 = vmatprep.subr.mxu0 0.0
          %860 = vmatpush2.msra.mxu0 0.0
          %861 = vmatprep.subr.mxu0 0.0
          %862 = vmatpush2.msra.mxu0 0.0
          %863 = vmatprep.subr.mxu0 0.0
          %864 = vmatpush2.msra.mxu0 0.0
          %865 = vmatprep.subr.mxu0 0.0
          %866 = vmatpush2.msra.mxu0 0.0
          %867 = vmatprep.subr.mxu0 0.0
          %868 = vmatpush2.msra.mxu0 0.0
          %869 = vmatprep.subr.mxu0 0.0
          %870 = vmatpush2.msra.mxu0 0.0
          %871 = vmatprep.subr.mxu0 0.0
          %872 = vmatpush2.msra.mxu0 0.0
          %873 = vmatprep.subr.mxu0 0.0
          %874 = vmatpush2.msra.mxu0 0.0
          %875 = vmatprep.mubr.f32.mxu0 0.0
          %876 = vmatmul.mubr.f32.gmra.mxu0 %v806
          %v877 = vpop.f32.mrf.mxu0
          %v878 = vadd.f32 %v802, %v877
          %v879 = vpop.f32.mrf.mxu0
          %880 = vmatprep.mubr.f32.mxu0 0.0
          %881 = vmatmul.mubr.f32.gmra.mxu0 %v809
          %v882 = vpop.f32.mrf.mxu0
          %v883 = vadd.f32 %v802, %v882
          %v884 = vpop.f32.mrf.mxu0
          %885 = vdwg.mxu0
          %v886 = vld [vmem:[%s3] sm:$0xff]
          %v887 = vadd.f32 %v878, %v886
          %v888 = vadd.f32 %v883, %v886
          %889 = vst [vmem:[#allocation2] sm:$0xff] %v887
          %890 = vst [vmem:[#allocation2 + $0x8] sm:$0xff] %v888
        $region100: #{forward.1} parent=83 // pred_fallthru
          _
        %v891 = vld [vmem:[#allocation2] sm:$0xff]
        %v892 = vld [vmem:[#allocation2 + $0x8] sm:$0xff]
        %v893 = vld [vmem:[%s756] sm:$0x1]
        %v894 = vld [vmem:[%s759] sm:$0x1]
        %895 = vadd.xlane.f32.xlu0 %v891
        %v896 = vpop.xlane.xlu0 %895
        %897 = vadd.xlane.f32.xlu0 %v892
        %v898 = vpop.xlane.xlu0 %897
        %v899 = vrcp.pop 128.0
        %v900 = vmul.f32 %v896, %v899
        %v901 = vmul.f32 %v898, %v899
        %v902 = vsub.f32 %v891, %v900
        %v903 = vsub.f32 %v892, %v901
        %v904 = vmul.f32 %v902, %v902
        %v905 = vmul.f32 %v903, %v903
        %906 = vadd.xlane.f32.xlu0 %v904
        %v907 = vpop.xlane.xlu0 %906
        %908 = vadd.xlane.f32.xlu0 %v905
        %v909 = vpop.xlane.xlu0 %908
        %v910 = vmul.f32 %v907, %v899
        %v911 = vmul.f32 %v909, %v899
        %v912 = vadd.f32 %v910, 1e-05
        %v913 = vadd.f32 %v911, 1e-05
        %v914 = vrsqrt.pop %v912
        %v915 = vrsqrt.pop %v913
        %v916 = vmul.f32 %v902, %v914
        %v917 = vmul.f32 %v903, %v915
        %v919 = vlaneseq
        %v920 = vshrl.u32 %v919, 7
        %v921 = vsub.s32 0, %v920
        %v922 = vrot.slane %v893, %v921
        %v924 = vmul.f32 %v916, %v922
        %v925 = vmul.f32 %v917, %v922
        %v927 = vlaneseq
        %v928 = vshrl.u32 %v927, 7
        %v929 = vsub.s32 0, %v928
        %v930 = vrot.slane %v894, %v929
        %v932 = vadd.f32 %v924, %v930
        %v933 = vadd.f32 %v925, %v930
        %v934 = vpack.c.bf16 %v933, %v932
        %v935 = vld [vmem:[%s636] sm:$0xff]
        %v936 = vld [vmem:[%s636 + $0x8] sm:$0xf]
        %v937 = vld [vmem:[%s636 + $0xc] sm:$0xff]
        %v938 = vld [vmem:[%s636 + $0x14] sm:$0xf]
        %v939 = vld [vmem:[%s636 + $0x18] sm:$0xff]
        %v940 = vld [vmem:[%s636 + $0x20] sm:$0xf]
        %v941 = vld [vmem:[%s636 + $0x24] sm:$0xff]
        %v942 = vld [vmem:[%s636 + $0x2c] sm:$0xf]
        %v943 = vld [vmem:[%s636 + $0x30] sm:$0xff]
        %v944 = vld [vmem:[%s636 + $0x38] sm:$0xf]
        %v945 = vld [vmem:[%s636 + $0x3c] sm:$0xff]
        %v946 = vld [vmem:[%s636 + $0x44] sm:$0xf]
        %v947 = vld [vmem:[%s636 + $0x48] sm:$0xff]
        %v948 = vld [vmem:[%s636 + $0x50] sm:$0xf]
        %v949 = vld [vmem:[%s636 + $0x54] sm:$0xff]
        %v950 = vld [vmem:[%s636 + $0x5c] sm:$0xf]
        %v951 = vld [vmem:[%s636 + $0x60] sm:$0xff]
        %v952 = vld [vmem:[%s636 + $0x68] sm:$0xf]
        %v953 = vld [vmem:[%s636 + $0x6c] sm:$0xff]
        %v954 = vld [vmem:[%s636 + $0x74] sm:$0xf]
        %v955 = vld [vmem:[%s636 + $0x78] sm:$0xff]
        %v956 = vld [vmem:[%s636 + $0x80] sm:$0xf]
        %v957 = vld [vmem:[%s636 + $0x84] sm:$0xff]
        %v958 = vld [vmem:[%s636 + $0x8c] sm:$0xf]
        %v959 = vld [vmem:[%s636 + $0x90] sm:$0xff]
        %v960 = vld [vmem:[%s636 + $0x98] sm:$0xf]
        %v961 = vld [vmem:[%s636 + $0x9c] sm:$0xff]
        %v962 = vld [vmem:[%s636 + $0xa4] sm:$0xf]
        %v963 = vld [vmem:[%s636 + $0xa8] sm:$0xff]
        %v964 = vld [vmem:[%s636 + $0xb0] sm:$0xf]
        %v965 = vld [vmem:[%s636 + $0xb4] sm:$0xff]
        %v966 = vld [vmem:[%s636 + $0xbc] sm:$0xf]
        %v967 = vld [vmem:[%s763] sm:$0x7]
        %v969 = vlaneseq
        %v970 = vshrl.u32 %v969, 7
        %v971 = vsub.s32 0, %v970
        %v972 = vrot.slane %v967, %v971
        %v973 = vlaneseq
        %v974 = vshrl.u32 %v973, 7
        %v975 = vsub.s32 1, %v974
        %v976 = vrot.slane %v967, %v975
        %v977 = vlaneseq
        %v978 = vshrl.u32 %v977, 7
        %v979 = vsub.s32 2, %v978
        %v980 = vrot.slane %v967, %v979
        %v1016 = vunpack.c.l.b16 %v935
        %v1017 = vunpack.c.h.b16 %v935
        %v1018 = vunpack.c.l.b16 %v936
        %v1019 = vunpack.c.l.b16 %v937
        %v1020 = vunpack.c.h.b16 %v937
        %v1021 = vunpack.c.l.b16 %v938
        %v1022 = vunpack.c.l.b16 %v939
        %v1023 = vunpack.c.h.b16 %v939
        %v1024 = vunpack.c.l.b16 %v940
        %v1025 = vunpack.c.l.b16 %v941
        %v1026 = vunpack.c.h.b16 %v941
        %v1027 = vunpack.c.l.b16 %v942
        %v1028 = vunpack.c.l.b16 %v943
        %v1029 = vunpack.c.h.b16 %v943
        %v1030 = vunpack.c.l.b16 %v944
        %v1031 = vunpack.c.l.b16 %v945
        %v1032 = vunpack.c.h.b16 %v945
        %v1033 = vunpack.c.l.b16 %v946
        %v1034 = vunpack.c.l.b16 %v947
        %v1035 = vunpack.c.h.b16 %v947
        %v1036 = vunpack.c.l.b16 %v948
        %v1037 = vunpack.c.l.b16 %v949
        %v1038 = vunpack.c.h.b16 %v949
        %v1039 = vunpack.c.l.b16 %v950
        %v1040 = vunpack.c.l.b16 %v951
        %v1041 = vunpack.c.h.b16 %v951
        %v1042 = vunpack.c.l.b16 %v952
        %v1043 = vunpack.c.l.b16 %v953
        %v1044 = vunpack.c.h.b16 %v953
        %v1045 = vunpack.c.l.b16 %v954
        %v1046 = vunpack.c.l.b16 %v955
        %v1047 = vunpack.c.h.b16 %v955
        %v1048 = vunpack.c.l.b16 %v956
        %v1049 = vunpack.c.l.b16 %v957
        %v1050 = vunpack.c.h.b16 %v957
        %v1051 = vunpack.c.l.b16 %v958
        %v1052 = vunpack.c.l.b16 %v959
        %v1053 = vunpack.c.h.b16 %v959
        %v1054 = vunpack.c.l.b16 %v960
        %v1055 = vunpack.c.l.b16 %v961
        %v1056 = vunpack.c.h.b16 %v961
        %v1057 = vunpack.c.l.b16 %v962
        %v1058 = vunpack.c.l.b16 %v963
        %v1059 = vunpack.c.h.b16 %v963
        %v1060 = vunpack.c.l.b16 %v964
        %v1061 = vunpack.c.l.b16 %v965
        %v1062 = vunpack.c.h.b16 %v965
        %v1063 = vunpack.c.l.b16 %v966
        %v1064 = vpack.c.b16 %v1019, %v1016
        %v1065 = vpack.c.b16 %v1020, %v1017
        %v1066 = vpack.c.b16 %v1021, %v1018
        %v1067 = vpack.c.b16 %v1025, %v1022
        %v1068 = vpack.c.b16 %v1026, %v1023
        %v1069 = vpack.c.b16 %v1027, %v1024
        %v1070 = vpack.c.b16 %v1031, %v1028
        %v1071 = vpack.c.b16 %v1032, %v1029
        %v1072 = vpack.c.b16 %v1033, %v1030
        %v1073 = vpack.c.b16 %v1037, %v1034
        %v1074 = vpack.c.b16 %v1038, %v1035
        %v1075 = vpack.c.b16 %v1039, %v1036
        %v1076 = vpack.c.b16 %v1043, %v1040
        %v1077 = vpack.c.b16 %v1044, %v1041
        %v1078 = vpack.c.b16 %v1045, %v1042
        %v1079 = vpack.c.b16 %v1049, %v1046
        %v1080 = vpack.c.b16 %v1050, %v1047
        %v1081 = vpack.c.b16 %v1051, %v1048
        %v1082 = vpack.c.b16 %v1055, %v1052
        %v1083 = vpack.c.b16 %v1056, %v1053
        %v1084 = vpack.c.b16 %v1057, %v1054
        %v1085 = vpack.c.b16 %v1061, %v1058
        %v1086 = vpack.c.b16 %v1062, %v1059
        %v1087 = vpack.c.b16 %v1063, %v1060
        %1112 = vmatprep.subr.bf16.mxu0 %v1086
        %1113 = vmatpush1.bf16.msra.mxu0 %v1085
        %1114 = vmatprep.subr.bf16.mxu0 %v1083
        %1115 = vmatpush1.bf16.msra.mxu0 %v1082
        %1116 = vmatprep.subr.bf16.mxu0 %v1080
        %1117 = vmatpush1.bf16.msra.mxu0 %v1079
        %1118 = vmatprep.subr.bf16.mxu0 %v1077
        %1119 = vmatpush1.bf16.msra.mxu0 %v1076
        %1120 = vmatprep.subr.bf16.mxu0 %v1074
        %1121 = vmatpush1.bf16.msra.mxu0 %v1073
        %1122 = vmatprep.subr.bf16.mxu0 %v1071
        %1123 = vmatpush1.bf16.msra.mxu0 %v1070
        %1124 = vmatprep.subr.bf16.mxu0 %v1068
        %1125 = vmatpush1.bf16.msra.mxu0 %v1067
        %1126 = vmatprep.subr.bf16.mxu0 %v1065
        %1127 = vmatpush1.bf16.msra.mxu0 %v1064
        %1128 = vmatprep.subr.bf16.mxu0 0
        %1129 = vmatpush2.bf16.msra.mxu0 0
        %1130 = vmatprep.subr.bf16.mxu0 0
        %1131 = vmatpush2.bf16.msra.mxu0 0
        %1132 = vmatprep.subr.bf16.mxu0 0
        %1133 = vmatpush2.bf16.msra.mxu0 0
        %1134 = vmatprep.subr.bf16.mxu0 0
        %1135 = vmatpush2.bf16.msra.mxu0 0
        %1136 = vmatprep.subr.bf16.mxu0 0
        %1137 = vmatpush2.bf16.msra.mxu0 0
        %1138 = vmatprep.subr.bf16.mxu0 0
        %1139 = vmatpush2.bf16.msra.mxu0 0
        %1140 = vmatprep.subr.bf16.mxu0 0
        %1141 = vmatpush2.bf16.msra.mxu0 0
        %1142 = vmatprep.subr.bf16.mxu0 0
        %1143 = vmatpush2.bf16.msra.mxu0 0
        %1144 = vmatprep.mubr.bf16.mxu0 0
        %1145 = vmatmul.mubr.bf16.gmra.mxu0 %v934
        %v1146 = vpop.f32.mrf.mxu0
        %v1147 = vadd.f32 %v972, %v1146
        %v1148 = vpop.f32.mrf.mxu0
        %v1149 = vadd.f32 %v976, %v1148
        %v1150 = vpop.f32.mrf.mxu0
        %v1151 = vadd.f32 %v972, %v1150
        %v1152 = vpop.f32.mrf.mxu0
        %v1153 = vadd.f32 %v976, %v1152
        %1154 = vdwg.mxu0
        %1155 = vmatprep.subr.bf16.mxu0 0
        %1156 = vmatpush1.bf16.msra.mxu0 %v1087
        %1157 = vmatprep.subr.bf16.mxu0 0
        %1158 = vmatpush1.bf16.msra.mxu0 %v1084
        %1159 = vmatprep.subr.bf16.mxu0 0
        %1160 = vmatpush1.bf16.msra.mxu0 %v1081
        %1161 = vmatprep.subr.bf16.mxu0 0
        %1162 = vmatpush1.bf16.msra.mxu0 %v1078
        %1163 = vmatprep.subr.bf16.mxu0 0
        %1164 = vmatpush1.bf16.msra.mxu0 %v1075
        %1165 = vmatprep.subr.bf16.mxu0 0
        %1166 = vmatpush1.bf16.msra.mxu0 %v1072
        %1167 = vmatprep.subr.bf16.mxu0 0
        %1168 = vmatpush1.bf16.msra.mxu0 %v1069
        %1169 = vmatprep.subr.bf16.mxu0 0
        %1170 = vmatpush1.bf16.msra.mxu0 %v1066
        %1171 = vmatprep.subr.bf16.mxu0 0
        %1172 = vmatpush2.bf16.msra.mxu0 0
        %1173 = vmatprep.subr.bf16.mxu0 0
        %1174 = vmatpush2.bf16.msra.mxu0 0
        %1175 = vmatprep.subr.bf16.mxu0 0
        %1176 = vmatpush2.bf16.msra.mxu0 0
        %1177 = vmatprep.subr.bf16.mxu0 0
        %1178 = vmatpush2.bf16.msra.mxu0 0
        %1179 = vmatprep.subr.bf16.mxu0 0
        %1180 = vmatpush2.bf16.msra.mxu0 0
        %1181 = vmatprep.subr.bf16.mxu0 0
        %1182 = vmatpush2.bf16.msra.mxu0 0
        %1183 = vmatprep.subr.bf16.mxu0 0
        %1184 = vmatpush2.bf16.msra.mxu0 0
        %1185 = vmatprep.subr.bf16.mxu0 0
        %1186 = vmatpush2.bf16.msra.mxu0 0
        %1187 = vmatprep.mubr.bf16.mxu0 0
        %1188 = vmatmul.mubr.bf16.gmra.mxu0 %v934
        %v1189 = vpop.f32.mrf.mxu0
        %v1190 = vadd.f32 %v980, %v1189
        %v1191 = vpop.f32.mrf.mxu0
        %v1192 = vpop.f32.mrf.mxu0
        %v1193 = vadd.f32 %v980, %v1192
        %v1194 = vpop.f32.mrf.mxu0
        %1195 = vdwg.mxu0
        %v1196 = vmul.f32 %v1147, 0.25
        %v1197 = vmul.f32 %v1151, 0.25
        %v1198 = vpack.c.bf16 %v1196, %v1196
        %v1199 = vpack.c.bf16 %v1197, %v1197
        %v1200 = vpack.c.bf16 %v1149, %v1149
        %v1201 = vpack.c.bf16 %v1153, %v1153
        %vm1202 = vcmask 130048
        %v1204 = vsel %vm1202, %v1198, 0
        %v1207 = vsel %vm1202, %v1200, 0
        %1209 = vmatprep.subr.bf16.mxu0 0
        %1210 = vmatpush1.bf16.xpose.msra.mxu0 0
        %1211 = vmatprep.subr.bf16.mxu0 0
        %1212 = vmatpush1.bf16.xpose.msra.mxu0 0
        %1213 = vmatprep.subr.bf16.mxu0 0
        %1214 = vmatpush1.bf16.xpose.msra.mxu0 0
        %1215 = vmatprep.subr.bf16.mxu0 0
        %1216 = vmatpush1.bf16.xpose.msra.mxu0 0
        %1217 = vmatprep.subr.bf16.mxu0 0
        %1218 = vmatpush1.bf16.xpose.msra.mxu0 0
        %1219 = vmatprep.subr.bf16.mxu0 0
        %1220 = vmatpush1.bf16.xpose.msra.mxu0 0
        %1221 = vmatprep.subr.bf16.mxu0 0
        %1222 = vmatpush1.bf16.xpose.msra.mxu0 0
        %1223 = vmatprep.subr.bf16.mxu0 0
        %1224 = vmatpush1.bf16.xpose.msra.mxu0 %v1207
        %1225 = vmatprep.subr.bf16.mxu0 0
        %1226 = vmatpush2.bf16.xpose.msra.mxu0 0
        %1227 = vmatprep.subr.bf16.mxu0 0
        %1228 = vmatpush2.bf16.xpose.msra.mxu0 0
        %1229 = vmatprep.subr.bf16.mxu0 0
        %1230 = vmatpush2.bf16.xpose.msra.mxu0 0
        %1231 = vmatprep.subr.bf16.mxu0 0
        %1232 = vmatpush2.bf16.xpose.msra.mxu0 0
        %1233 = vmatprep.subr.bf16.mxu0 0
        %1234 = vmatpush2.bf16.xpose.msra.mxu0 0
        %1235 = vmatprep.subr.bf16.mxu0 0
        %1236 = vmatpush2.bf16.xpose.msra.mxu0 0
        %1237 = vmatprep.subr.bf16.mxu0 0
        %1238 = vmatpush2.bf16.xpose.msra.mxu0 0
        %1239 = vmatprep.subr.bf16.mxu0 0
        %1240 = vmatpush2.bf16.xpose.msra.mxu0 0
        %1241 = vmatprep.mubr.bf16.mxu0 0
        %1242 = vmatmul.mubr.bf16.gmra.mxu0 %v1204
        %v1243 = vpop.f32.mrf.mxu0
        %v1244 = vadd.f32 0.0, %v1243
        %v1245 = vpop.f32.mrf.mxu0
        %v1246 = vpop.f32.mrf.mxu0
        %v1247 = vpop.f32.mrf.mxu0
        %1248 = vdwg.mxu0
        %v1250 = vsel %vm1202, %v1199, 0
        %v1253 = vsel %vm1202, %v1201, 0
        %1255 = vmatprep.subr.bf16.mxu0 0
        %1256 = vmatpush1.bf16.xpose.msra.mxu0 0
        %1257 = vmatprep.subr.bf16.mxu0 0
        %1258 = vmatpush1.bf16.xpose.msra.mxu0 0
        %1259 = vmatprep.subr.bf16.mxu0 0
        %1260 = vmatpush1.bf16.xpose.msra.mxu0 0
        %1261 = vmatprep.subr.bf16.mxu0 0
        %1262 = vmatpush1.bf16.xpose.msra.mxu0 0
        %1263 = vmatprep.subr.bf16.mxu0 0
        %1264 = vmatpush1.bf16.xpose.msra.mxu0 0
        %1265 = vmatprep.subr.bf16.mxu0 0
        %1266 = vmatpush1.bf16.xpose.msra.mxu0 0
        %1267 = vmatprep.subr.bf16.mxu0 0
        %1268 = vmatpush1.bf16.xpose.msra.mxu0 0
        %1269 = vmatprep.subr.bf16.mxu0 0
        %1270 = vmatpush1.bf16.xpose.msra.mxu0 %v1253
        %1271 = vmatprep.subr.bf16.mxu0 0
        %1272 = vmatpush2.bf16.xpose.msra.mxu0 0
        %1273 = vmatprep.subr.bf16.mxu0 0
        %1274 = vmatpush2.bf16.xpose.msra.mxu0 0
        %1275 = vmatprep.subr.bf16.mxu0 0
        %1276 = vmatpush2.bf16.xpose.msra.mxu0 0
        %1277 = vmatprep.subr.bf16.mxu0 0
        %1278 = vmatpush2.bf16.xpose.msra.mxu0 0
        %1279 = vmatprep.subr.bf16.mxu0 0
        %1280 = vmatpush2.bf16.xpose.msra.mxu0 0
        %1281 = vmatprep.subr.bf16.mxu0 0
        %1282 = vmatpush2.bf16.xpose.msra.mxu0 0
        %1283 = vmatprep.subr.bf16.mxu0 0
        %1284 = vmatpush2.bf16.xpose.msra.mxu0 0
        %1285 = vmatprep.subr.bf16.mxu0 0
        %1286 = vmatpush2.bf16.xpose.msra.mxu0 0
        %1287 = vmatprep.mubr.bf16.mxu0 0
        %1288 = vmatmul.mubr.bf16.gmra.mxu0 %v1250
        %v1289 = vpop.f32.mrf.mxu0
        %v1290 = vadd.f32 0.0, %v1289
        %v1291 = vpop.f32.mrf.mxu0
        %v1292 = vpop.f32.mrf.mxu0
        %v1293 = vpop.f32.mrf.mxu0
        %1294 = vdwg.mxu0
        %vm1295 = vcmask 64512
        %v1296 = vsel %vm1295, %v1244, -inf
        %1297 = vmax.xlane.f32.xlu0 %v1296
        %v1298 = vpop.xlane.xlu0 %1297
        %v1299 = vsel %vm1295, %v1290, -inf
        %1300 = vmax.xlane.f32.xlu0 %v1299
        %v1301 = vpop.xlane.xlu0 %1300
        %v1302 = vsub.f32 %v1244, %v1298
        %v1303 = vsub.f32 %v1290, %v1301
        %v1304 = vmul.f32 %v1302, 1.442695
        %v1305 = vpow.pop %v1304
        %v1306 = vmul.f32 %v1303, 1.442695
        %v1307 = vpow.pop %v1306
        %v1308 = vsel %vm1295, %v1305, 0.0
        %1309 = vadd.xlane.f32.xlu0 %v1308
        %v1310 = vpop.xlane.xlu0 %1309
        %v1311 = vsel %vm1295, %v1307, 0.0
        %1312 = vadd.xlane.f32.xlu0 %v1311
        %v1313 = vpop.xlane.xlu0 %1312
        %v1314 = vrcp.pop %v1310
        %v1315 = vrcp.pop %v1313
        %v1316 = vmul.f32 %v1305, %v1314
        %v1317 = vmul.f32 %v1307, %v1315
        %v1318 = vpack.c.bf16 %v1316, %v1316
        %v1319 = vpack.c.bf16 %v1317, %v1317
        %v1320 = vpack.c.bf16 %v1190, %v1190
        %v1321 = vpack.c.bf16 %v1193, %v1193
        %v1323 = vsel %vm1295, %v1318, 0
        %vm1325 = vcmask 1043456
        %v1327 = vsel %vm1325, %v1320, 0
        %1329 = vmatprep.subr.bf16.mxu0 0
        %1330 = vmatpush1.bf16.msra.mxu0 0
        %1331 = vmatprep.subr.bf16.mxu0 0
        %1332 = vmatpush1.bf16.msra.mxu0 0
        %1333 = vmatprep.subr.bf16.mxu0 0
        %1334 = vmatpush1.bf16.msra.mxu0 0
        %1335 = vmatprep.subr.bf16.mxu0 0
        %1336 = vmatpush1.bf16.msra.mxu0 0
        %1337 = vmatprep.subr.bf16.mxu0 0
        %1338 = vmatpush1.bf16.msra.mxu0 0
        %1339 = vmatprep.subr.bf16.mxu0 0
        %1340 = vmatpush1.bf16.msra.mxu0 0
        %1341 = vmatprep.subr.bf16.mxu0 0
        %1342 = vmatpush1.bf16.msra.mxu0 0
        %1343 = vmatprep.subr.bf16.mxu0 0
        %1344 = vmatpush1.bf16.msra.mxu0 %v1327
        %1345 = vmatprep.subr.bf16.mxu0 0
        %1346 = vmatpush2.bf16.msra.mxu0 0
        %1347 = vmatprep.subr.bf16.mxu0 0
        %1348 = vmatpush2.bf16.msra.mxu0 0
        %1349 = vmatprep.subr.bf16.mxu0 0
        %1350 = vmatpush2.bf16.msra.mxu0 0
        %1351 = vmatprep.subr.bf16.mxu0 0
        %1352 = vmatpush2.bf16.msra.mxu0 0
        %1353 = vmatprep.subr.bf16.mxu0 0
        %1354 = vmatpush2.bf16.msra.mxu0 0
        %1355 = vmatprep.subr.bf16.mxu0 0
        %1356 = vmatpush2.bf16.msra.mxu0 0
        %1357 = vmatprep.subr.bf16.mxu0 0
        %1358 = vmatpush2.bf16.msra.mxu0 0
        %1359 = vmatprep.subr.bf16.mxu0 0
        %1360 = vmatpush2.bf16.msra.mxu0 0
        %1361 = vmatprep.mubr.bf16.mxu0 0
        %1362 = vmatmul.mubr.bf16.gmra.mxu0 %v1323
        %v1363 = vpop.f32.mrf.mxu0
        %v1364 = vadd.f32 0.0, %v1363
        %v1365 = vpop.f32.mrf.mxu0
        %v1366 = vpop.f32.mrf.mxu0
        %v1367 = vpop.f32.mrf.mxu0
        %1368 = vdwg.mxu0
        %v1370 = vsel %vm1295, %v1319, 0
        %v1373 = vsel %vm1325, %v1321, 0
        %1375 = vmatprep.subr.bf16.mxu0 0
        %1376 = vmatpush1.bf16.msra.mxu0 0
        %1377 = vmatprep.subr.bf16.mxu0 0
        %1378 = vmatpush1.bf16.msra.mxu0 0
        %1379 = vmatprep.subr.bf16.mxu0 0
        %1380 = vmatpush1.bf16.msra.mxu0 0
        %1381 = vmatprep.subr.bf16.mxu0 0
        %1382 = vmatpush1.bf16.msra.mxu0 0
        %1383 = vmatprep.subr.bf16.mxu0 0
        %1384 = vmatpush1.bf16.msra.mxu0 0
        %1385 = vmatprep.subr.bf16.mxu0 0
        %1386 = vmatpush1.bf16.msra.mxu0 0
        %1387 = vmatprep.subr.bf16.mxu0 0
        %1388 = vmatpush1.bf16.msra.mxu0 0
        %1389 = vmatprep.subr.bf16.mxu0 0
        %1390 = vmatpush1.bf16.msra.mxu0 %v1373
        %1391 = vmatprep.subr.bf16.mxu0 0
        %1392 = vmatpush2.bf16.msra.mxu0 0
        %1393 = vmatprep.subr.bf16.mxu0 0
        %1394 = vmatpush2.bf16.msra.mxu0 0
        %1395 = vmatprep.subr.bf16.mxu0 0
        %1396 = vmatpush2.bf16.msra.mxu0 0
        %1397 = vmatprep.subr.bf16.mxu0 0
        %1398 = vmatpush2.bf16.msra.mxu0 0
        %1399 = vmatprep.subr.bf16.mxu0 0
        %1400 = vmatpush2.bf16.msra.mxu0 0
        %1401 = vmatprep.subr.bf16.mxu0 0
        %1402 = vmatpush2.bf16.msra.mxu0 0
        %1403 = vmatprep.subr.bf16.mxu0 0
        %1404 = vmatpush2.bf16.msra.mxu0 0
        %1405 = vmatprep.subr.bf16.mxu0 0
        %1406 = vmatpush2.bf16.msra.mxu0 0
        %1407 = vmatprep.mubr.bf16.mxu0 0
        %1408 = vmatmul.mubr.bf16.gmra.mxu0 %v1370
        %v1409 = vpop.f32.mrf.mxu0
        %v1410 = vadd.f32 0.0, %v1409
        %v1411 = vpop.f32.mrf.mxu0
        %v1412 = vpop.f32.mrf.mxu0
        %v1413 = vpop.f32.mrf.mxu0
        %1414 = vdwg.mxu0
        %1416 = vrot.lane.b32.xlu0 %v1198, 112
        %v1417 = vpop.permute.xlu0 %1416
        %1419 = vrot.lane.b32.xlu0 %v1200, 112
        %v1420 = vpop.permute.xlu0 %1419
        %v1422 = vsel %vm1202, %v1417, 0
        %v1425 = vsel %vm1202, %v1420, 0
        %1427 = vmatprep.subr.bf16.mxu0 0
        %1428 = vmatpush1.bf16.xpose.msra.mxu0 0
        %1429 = vmatprep.subr.bf16.mxu0 0
        %1430 = vmatpush1.bf16.xpose.msra.mxu0 0
        %1431 = vmatprep.subr.bf16.mxu0 0
        %1432 = vmatpush1.bf16.xpose.msra.mxu0 0
        %1433 = vmatprep.subr.bf16.mxu0 0
        %1434 = vmatpush1.bf16.xpose.msra.mxu0 0
        %1435 = vmatprep.subr.bf16.mxu0 0
        %1436 = vmatpush1.bf16.xpose.msra.mxu0 0
        %1437 = vmatprep.subr.bf16.mxu0 0
        %1438 = vmatpush1.bf16.xpose.msra.mxu0 0
        %1439 = vmatprep.subr.bf16.mxu0 0
        %1440 = vmatpush1.bf16.xpose.msra.mxu0 0
        %1441 = vmatprep.subr.bf16.mxu0 0
        %1442 = vmatpush1.bf16.xpose.msra.mxu0 %v1425
        %1443 = vmatprep.subr.bf16.mxu0 0
        %1444 = vmatpush2.bf16.xpose.msra.mxu0 0
        %1445 = vmatprep.subr.bf16.mxu0 0
        %1446 = vmatpush2.bf16.xpose.msra.mxu0 0
        %1447 = vmatprep.subr.bf16.mxu0 0
        %1448 = vmatpush2.bf16.xpose.msra.mxu0 0
        %1449 = vmatprep.subr.bf16.mxu0 0
        %1450 = vmatpush2.bf16.xpose.msra.mxu0 0
        %1451 = vmatprep.subr.bf16.mxu0 0
        %1452 = vmatpush2.bf16.xpose.msra.mxu0 0
        %1453 = vmatprep.subr.bf16.mxu0 0
        %1454 = vmatpush2.bf16.xpose.msra.mxu0 0
        %1455 = vmatprep.subr.bf16.mxu0 0
        %1456 = vmatpush2.bf16.xpose.msra.mxu0 0
        %1457 = vmatprep.subr.bf16.mxu0 0
        %1458 = vmatpush2.bf16.xpose.msra.mxu0 0
        %1459 = vmatprep.mubr.bf16.mxu0 0
        %1460 = vmatmul.mubr.bf16.gmra.mxu0 %v1422
        %v1461 = vpop.f32.mrf.mxu0
        %v1462 = vadd.f32 0.0, %v1461
        %v1463 = vpop.f32.mrf.mxu0
        %v1464 = vpop.f32.mrf.mxu0
        %v1465 = vpop.f32.mrf.mxu0
        %1466 = vdwg.mxu0
        %1468 = vrot.lane.b32.xlu0 %v1199, 112
        %v1469 = vpop.permute.xlu0 %1468
        %1471 = vrot.lane.b32.xlu0 %v1201, 112
        %v1472 = vpop.permute.xlu0 %1471
        %v1474 = vsel %vm1202, %v1469, 0
        %v1477 = vsel %vm1202, %v1472, 0
        %1479 = vmatprep.subr.bf16.mxu0 0
        %1480 = vmatpush1.bf16.xpose.msra.mxu0 0
        %1481 = vmatprep.subr.bf16.mxu0 0
        %1482 = vmatpush1.bf16.xpose.msra.mxu0 0
        %1483 = vmatprep.subr.bf16.mxu0 0
        %1484 = vmatpush1.bf16.xpose.msra.mxu0 0
        %1485 = vmatprep.subr.bf16.mxu0 0
        %1486 = vmatpush1.bf16.xpose.msra.mxu0 0
        %1487 = vmatprep.subr.bf16.mxu0 0
        %1488 = vmatpush1.bf16.xpose.msra.mxu0 0
        %1489 = vmatprep.subr.bf16.mxu0 0
        %1490 = vmatpush1.bf16.xpose.msra.mxu0 0
        %1491 = vmatprep.subr.bf16.mxu0 0
        %1492 = vmatpush1.bf16.xpose.msra.mxu0 0
        %1493 = vmatprep.subr.bf16.mxu0 0
        %1494 = vmatpush1.bf16.xpose.msra.mxu0 %v1477
        %1495 = vmatprep.subr.bf16.mxu0 0
        %1496 = vmatpush2.bf16.xpose.msra.mxu0 0
        %1497 = vmatprep.subr.bf16.mxu0 0
        %1498 = vmatpush2.bf16.xpose.msra.mxu0 0
        %1499 = vmatprep.subr.bf16.mxu0 0
        %1500 = vmatpush2.bf16.xpose.msra.mxu0 0
        %1501 = vmatprep.subr.bf16.mxu0 0
        %1502 = vmatpush2.bf16.xpose.msra.mxu0 0
        %1503 = vmatprep.subr.bf16.mxu0 0
        %1504 = vmatpush2.bf16.xpose.msra.mxu0 0
        %1505 = vmatprep.subr.bf16.mxu0 0
        %1506 = vmatpush2.bf16.xpose.msra.mxu0 0
        %1507 = vmatprep.subr.bf16.mxu0 0
        %1508 = vmatpush2.bf16.xpose.msra.mxu0 0
        %1509 = vmatprep.subr.bf16.mxu0 0
        %1510 = vmatpush2.bf16.xpose.msra.mxu0 0
        %1511 = vmatprep.mubr.bf16.mxu0 0
        %1512 = vmatmul.mubr.bf16.gmra.mxu0 %v1474
        %v1513 = vpop.f32.mrf.mxu0
        %v1514 = vadd.f32 0.0, %v1513
        %v1515 = vpop.f32.mrf.mxu0
        %v1516 = vpop.f32.mrf.mxu0
        %v1517 = vpop.f32.mrf.mxu0
        %1518 = vdwg.mxu0
        %v1519 = vsel %vm1295, %v1462, -inf
        %1520 = vmax.xlane.f32.xlu0 %v1519
        %v1521 = vpop.xlane.xlu0 %1520
        %v1522 = vsel %vm1295, %v1514, -inf
        %1523 = vmax.xlane.f32.xlu0 %v1522
        %v1524 = vpop.xlane.xlu0 %1523
        %v1525 = vsub.f32 %v1462, %v1521
        %v1526 = vsub.f32 %v1514, %v1524
        %v1527 = vmul.f32 %v1525, 1.442695
        %v1528 = vpow.pop %v1527
        %v1529 = vmul.f32 %v1526, 1.442695
        %v1530 = vpow.pop %v1529
        %v1531 = vsel %vm1295, %v1528, 0.0
        %1532 = vadd.xlane.f32.xlu0 %v1531
        %v1533 = vpop.xlane.xlu0 %1532
        %v1534 = vsel %vm1295, %v1530, 0.0
        %1535 = vadd.xlane.f32.xlu0 %v1534
        %v1536 = vpop.xlane.xlu0 %1535
        %v1537 = vrcp.pop %v1533
        %v1538 = vrcp.pop %v1536
        %v1539 = vmul.f32 %v1528, %v1537
        %v1540 = vmul.f32 %v1530, %v1538
        %v1541 = vpack.c.bf16 %v1539, %v1539
        %v1542 = vpack.c.bf16 %v1540, %v1540
        %1544 = vrot.lane.b32.xlu0 %v1320, 112
        %v1545 = vpop.permute.xlu0 %1544
        %v1547 = vsel %vm1295, %v1541, 0
        %v1550 = vsel %vm1325, %v1545, 0
        %1552 = vmatprep.subr.bf16.mxu0 0
        %1553 = vmatpush1.bf16.msra.mxu0 0
        %1554 = vmatprep.subr.bf16.mxu0 0
        %1555 = vmatpush1.bf16.msra.mxu0 0
        %1556 = vmatprep.subr.bf16.mxu0 0
        %1557 = vmatpush1.bf16.msra.mxu0 0
        %1558 = vmatprep.subr.bf16.mxu0 0
        %1559 = vmatpush1.bf16.msra.mxu0 0
        %1560 = vmatprep.subr.bf16.mxu0 0
        %1561 = vmatpush1.bf16.msra.mxu0 0
        %1562 = vmatprep.subr.bf16.mxu0 0
        %1563 = vmatpush1.bf16.msra.mxu0 0
        %1564 = vmatprep.subr.bf16.mxu0 0
        %1565 = vmatpush1.bf16.msra.mxu0 0
        %1566 = vmatprep.subr.bf16.mxu0 0
        %1567 = vmatpush1.bf16.msra.mxu0 %v1550
        %1568 = vmatprep.subr.bf16.mxu0 0
        %1569 = vmatpush2.bf16.msra.mxu0 0
        %1570 = vmatprep.subr.bf16.mxu0 0
        %1571 = vmatpush2.bf16.msra.mxu0 0
        %1572 = vmatprep.subr.bf16.mxu0 0
        %1573 = vmatpush2.bf16.msra.mxu0 0
        %1574 = vmatprep.subr.bf16.mxu0 0
        %1575 = vmatpush2.bf16.msra.mxu0 0
        %1576 = vmatprep.subr.bf16.mxu0 0
        %1577 = vmatpush2.bf16.msra.mxu0 0
        %1578 = vmatprep.subr.bf16.mxu0 0
        %1579 = vmatpush2.bf16.msra.mxu0 0
        %1580 = vmatprep.subr.bf16.mxu0 0
        %1581 = vmatpush2.bf16.msra.mxu0 0
        %1582 = vmatprep.subr.bf16.mxu0 0
        %1583 = vmatpush2.bf16.msra.mxu0 0
        %1584 = vmatprep.mubr.bf16.mxu0 0
        %1585 = vmatmul.mubr.bf16.gmra.mxu0 %v1547
        %v1586 = vpop.f32.mrf.mxu0
        %v1587 = vadd.f32 0.0, %v1586
        %v1588 = vpop.f32.mrf.mxu0
        %v1589 = vpop.f32.mrf.mxu0
        %v1590 = vpop.f32.mrf.mxu0
        %1591 = vdwg.mxu0
        %1593 = vrot.lane.b32.xlu0 %v1321, 112
        %v1594 = vpop.permute.xlu0 %1593
        %v1596 = vsel %vm1295, %v1542, 0
        %v1599 = vsel %vm1325, %v1594, 0
        %1601 = vmatprep.subr.bf16.mxu0 0
        %1602 = vmatpush1.bf16.msra.mxu0 0
        %1603 = vmatprep.subr.bf16.mxu0 0
        %1604 = vmatpush1.bf16.msra.mxu0 0
        %1605 = vmatprep.subr.bf16.mxu0 0
        %1606 = vmatpush1.bf16.msra.mxu0 0
        %1607 = vmatprep.subr.bf16.mxu0 0
        %1608 = vmatpush1.bf16.msra.mxu0 0
        %1609 = vmatprep.subr.bf16.mxu0 0
        %1610 = vmatpush1.bf16.msra.mxu0 0
        %1611 = vmatprep.subr.bf16.mxu0 0
        %1612 = vmatpush1.bf16.msra.mxu0 0
        %1613 = vmatprep.subr.bf16.mxu0 0
        %1614 = vmatpush1.bf16.msra.mxu0 0
        %1615 = vmatprep.subr.bf16.mxu0 0
        %1616 = vmatpush1.bf16.msra.mxu0 %v1599
        %1617 = vmatprep.subr.bf16.mxu0 0
        %1618 = vmatpush2.bf16.msra.mxu0 0
        %1619 = vmatprep.subr.bf16.mxu0 0
        %1620 = vmatpush2.bf16.msra.mxu0 0
        %1621 = vmatprep.subr.bf16.mxu0 0
        %1622 = vmatpush2.bf16.msra.mxu0 0
        %1623 = vmatprep.subr.bf16.mxu0 0
        %1624 = vmatpush2.bf16.msra.mxu0 0
        %1625 = vmatprep.subr.bf16.mxu0 0
        %1626 = vmatpush2.bf16.msra.mxu0 0
        %1627 = vmatprep.subr.bf16.mxu0 0
        %1628 = vmatpush2.bf16.msra.mxu0 0
        %1629 = vmatprep.subr.bf16.mxu0 0
        %1630 = vmatpush2.bf16.msra.mxu0 0
        %1631 = vmatprep.subr.bf16.mxu0 0
        %1632 = vmatpush2.bf16.msra.mxu0 0
        %1633 = vmatprep.mubr.bf16.mxu0 0
        %1634 = vmatmul.mubr.bf16.gmra.mxu0 %v1596
        %v1635 = vpop.f32.mrf.mxu0
        %v1636 = vadd.f32 0.0, %v1635
        %v1637 = vpop.f32.mrf.mxu0
        %v1638 = vpop.f32.mrf.mxu0
        %v1639 = vpop.f32.mrf.mxu0
        %1640 = vdwg.mxu0
        %1641 = vrot.lane.b32.xlu0 %v1198, 96
        %v1642 = vpop.permute.xlu0 %1641
        %1643 = vrot.lane.b32.xlu0 %v1200, 96
        %v1644 = vpop.permute.xlu0 %1643
        %v1646 = vsel %vm1202, %v1642, 0
        %v1649 = vsel %vm1202, %v1644, 0
        %1651 = vmatprep.subr.bf16.mxu0 0
        %1652 = vmatpush1.bf16.xpose.msra.mxu0 0
        %1653 = vmatprep.subr.bf16.mxu0 0
        %1654 = vmatpush1.bf16.xpose.msra.mxu0 0
        %1655 = vmatprep.subr.bf16.mxu0 0
        %1656 = vmatpush1.bf16.xpose.msra.mxu0 0
        %1657 = vmatprep.subr.bf16.mxu0 0
        %1658 = vmatpush1.bf16.xpose.msra.mxu0 0
        %1659 = vmatprep.subr.bf16.mxu0 0
        %1660 = vmatpush1.bf16.xpose.msra.mxu0 0
        %1661 = vmatprep.subr.bf16.mxu0 0
        %1662 = vmatpush1.bf16.xpose.msra.mxu0 0
        %1663 = vmatprep.subr.bf16.mxu0 0
        %1664 = vmatpush1.bf16.xpose.msra.mxu0 0
        %1665 = vmatprep.subr.bf16.mxu0 0
        %1666 = vmatpush1.bf16.xpose.msra.mxu0 %v1649
        %1667 = vmatprep.subr.bf16.mxu0 0
        %1668 = vmatpush2.bf16.xpose.msra.mxu0 0
        %1669 = vmatprep.subr.bf16.mxu0 0
        %1670 = vmatpush2.bf16.xpose.msra.mxu0 0
        %1671 = vmatprep.subr.bf16.mxu0 0
        %1672 = vmatpush2.bf16.xpose.msra.mxu0 0
        %1673 = vmatprep.subr.bf16.mxu0 0
        %1674 = vmatpush2.bf16.xpose.msra.mxu0 0
        %1675 = vmatprep.subr.bf16.mxu0 0
        %1676 = vmatpush2.bf16.xpose.msra.mxu0 0
        %1677 = vmatprep.subr.bf16.mxu0 0
        %1678 = vmatpush2.bf16.xpose.msra.mxu0 0
        %1679 = vmatprep.subr.bf16.mxu0 0
        %1680 = vmatpush2.bf16.xpose.msra.mxu0 0
        %1681 = vmatprep.subr.bf16.mxu0 0
        %1682 = vmatpush2.bf16.xpose.msra.mxu0 0
        %1683 = vmatprep.mubr.bf16.mxu0 0
        %1684 = vmatmul.mubr.bf16.gmra.mxu0 %v1646
        %v1685 = vpop.f32.mrf.mxu0
        %v1686 = vadd.f32 0.0, %v1685
        %v1687 = vpop.f32.mrf.mxu0
        %v1688 = vpop.f32.mrf.mxu0
        %v1689 = vpop.f32.mrf.mxu0
        %1690 = vdwg.mxu0
        %1691 = vrot.lane.b32.xlu0 %v1199, 96
        %v1692 = vpop.permute.xlu0 %1691
        %1693 = vrot.lane.b32.xlu0 %v1201, 96
        %v1694 = vpop.permute.xlu0 %1693
        %v1696 = vsel %vm1202, %v1692, 0
        %v1699 = vsel %vm1202, %v1694, 0
        %1701 = vmatprep.subr.bf16.mxu0 0
        %1702 = vmatpush1.bf16.xpose.msra.mxu0 0
        %1703 = vmatprep.subr.bf16.mxu0 0
        %1704 = vmatpush1.bf16.xpose.msra.mxu0 0
        %1705 = vmatprep.subr.bf16.mxu0 0
        %1706 = vmatpush1.bf16.xpose.msra.mxu0 0
        %1707 = vmatprep.subr.bf16.mxu0 0
        %1708 = vmatpush1.bf16.xpose.msra.mxu0 0
        %1709 = vmatprep.subr.bf16.mxu0 0
        %1710 = vmatpush1.bf16.xpose.msra.mxu0 0
        %1711 = vmatprep.subr.bf16.mxu0 0
        %1712 = vmatpush1.bf16.xpose.msra.mxu0 0
        %1713 = vmatprep.subr.bf16.mxu0 0
        %1714 = vmatpush1.bf16.xpose.msra.mxu0 0
        %1715 = vmatprep.subr.bf16.mxu0 0
        %1716 = vmatpush1.bf16.xpose.msra.mxu0 %v1699
        %1717 = vmatprep.subr.bf16.mxu0 0
        %1718 = vmatpush2.bf16.xpose.msra.mxu0 0
        %1719 = vmatprep.subr.bf16.mxu0 0
        %1720 = vmatpush2.bf16.xpose.msra.mxu0 0
        %1721 = vmatprep.subr.bf16.mxu0 0
        %1722 = vmatpush2.bf16.xpose.msra.mxu0 0
        %1723 = vmatprep.subr.bf16.mxu0 0
        %1724 = vmatpush2.bf16.xpose.msra.mxu0 0
        %1725 = vmatprep.subr.bf16.mxu0 0
        %1726 = vmatpush2.bf16.xpose.msra.mxu0 0
        %1727 = vmatprep.subr.bf16.mxu0 0
        %1728 = vmatpush2.bf16.xpose.msra.mxu0 0
        %1729 = vmatprep.subr.bf16.mxu0 0
        %1730 = vmatpush2.bf16.xpose.msra.mxu0 0
        %1731 = vmatprep.subr.bf16.mxu0 0
        %1732 = vmatpush2.bf16.xpose.msra.mxu0 0
        %1733 = vmatprep.mubr.bf16.mxu0 0
        %1734 = vmatmul.mubr.bf16.gmra.mxu0 %v1696
        %v1735 = vpop.f32.mrf.mxu0
        %v1736 = vadd.f32 0.0, %v1735
        %v1737 = vpop.f32.mrf.mxu0
        %v1738 = vpop.f32.mrf.mxu0
        %v1739 = vpop.f32.mrf.mxu0
        %1740 = vdwg.mxu0
        %v1741 = vsel %vm1295, %v1686, -inf
        %1742 = vmax.xlane.f32.xlu0 %v1741
        %v1743 = vpop.xlane.xlu0 %1742
        %v1744 = vsel %vm1295, %v1736, -inf
        %1745 = vmax.xlane.f32.xlu0 %v1744
        %v1746 = vpop.xlane.xlu0 %1745
        %v1747 = vsub.f32 %v1686, %v1743
        %v1748 = vsub.f32 %v1736, %v1746
        %v1749 = vmul.f32 %v1747, 1.442695
        %v1750 = vpow.pop %v1749
        %v1751 = vmul.f32 %v1748, 1.442695
        %v1752 = vpow.pop %v1751
        %v1753 = vsel %vm1295, %v1750, 0.0
        %1754 = vadd.xlane.f32.xlu0 %v1753
        %v1755 = vpop.xlane.xlu0 %1754
        %v1756 = vsel %vm1295, %v1752, 0.0
        %1757 = vadd.xlane.f32.xlu0 %v1756
        %v1758 = vpop.xlane.xlu0 %1757
        %v1759 = vrcp.pop %v1755
        %v1760 = vrcp.pop %v1758
        %v1761 = vmul.f32 %v1750, %v1759
        %v1762 = vmul.f32 %v1752, %v1760
        %v1763 = vpack.c.bf16 %v1761, %v1761
        %v1764 = vpack.c.bf16 %v1762, %v1762
        %1765 = vrot.lane.b32.xlu0 %v1320, 96
        %v1766 = vpop.permute.xlu0 %1765
        %v1768 = vsel %vm1295, %v1763, 0
        %v1771 = vsel %vm1325, %v1766, 0
        %1773 = vmatprep.subr.bf16.mxu0 0
        %1774 = vmatpush1.bf16.msra.mxu0 0
        %1775 = vmatprep.subr.bf16.mxu0 0
        %1776 = vmatpush1.bf16.msra.mxu0 0
        %1777 = vmatprep.subr.bf16.mxu0 0
        %1778 = vmatpush1.bf16.msra.mxu0 0
        %1779 = vmatprep.subr.bf16.mxu0 0
        %1780 = vmatpush1.bf16.msra.mxu0 0
        %1781 = vmatprep.subr.bf16.mxu0 0
        %1782 = vmatpush1.bf16.msra.mxu0 0
        %1783 = vmatprep.subr.bf16.mxu0 0
        %1784 = vmatpush1.bf16.msra.mxu0 0
        %1785 = vmatprep.subr.bf16.mxu0 0
        %1786 = vmatpush1.bf16.msra.mxu0 0
        %1787 = vmatprep.subr.bf16.mxu0 0
        %1788 = vmatpush1.bf16.msra.mxu0 %v1771
        %1789 = vmatprep.subr.bf16.mxu0 0
        %1790 = vmatpush2.bf16.msra.mxu0 0
        %1791 = vmatprep.subr.bf16.mxu0 0
        %1792 = vmatpush2.bf16.msra.mxu0 0
        %1793 = vmatprep.subr.bf16.mxu0 0
        %1794 = vmatpush2.bf16.msra.mxu0 0
        %1795 = vmatprep.subr.bf16.mxu0 0
        %1796 = vmatpush2.bf16.msra.mxu0 0
        %1797 = vmatprep.subr.bf16.mxu0 0
        %1798 = vmatpush2.bf16.msra.mxu0 0
        %1799 = vmatprep.subr.bf16.mxu0 0
        %1800 = vmatpush2.bf16.msra.mxu0 0
        %1801 = vmatprep.subr.bf16.mxu0 0
        %1802 = vmatpush2.bf16.msra.mxu0 0
        %1803 = vmatprep.subr.bf16.mxu0 0
        %1804 = vmatpush2.bf16.msra.mxu0 0
        %1805 = vmatprep.mubr.bf16.mxu0 0
        %1806 = vmatmul.mubr.bf16.gmra.mxu0 %v1768
        %v1807 = vpop.f32.mrf.mxu0
        %v1808 = vadd.f32 0.0, %v1807
        %v1809 = vpop.f32.mrf.mxu0
        %v1810 = vpop.f32.mrf.mxu0
        %v1811 = vpop.f32.mrf.mxu0
        %1812 = vdwg.mxu0
        %1813 = vrot.lane.b32.xlu0 %v1321, 96
        %v1814 = vpop.permute.xlu0 %1813
        %v1816 = vsel %vm1295, %v1764, 0
        %v1819 = vsel %vm1325, %v1814, 0
        %1821 = vmatprep.subr.bf16.mxu0 0
        %1822 = vmatpush1.bf16.msra.mxu0 0
        %1823 = vmatprep.subr.bf16.mxu0 0
        %1824 = vmatpush1.bf16.msra.mxu0 0
        %1825 = vmatprep.subr.bf16.mxu0 0
        %1826 = vmatpush1.bf16.msra.mxu0 0
        %1827 = vmatprep.subr.bf16.mxu0 0
        %1828 = vmatpush1.bf16.msra.mxu0 0
        %1829 = vmatprep.subr.bf16.mxu0 0
        %1830 = vmatpush1.bf16.msra.mxu0 0
        %1831 = vmatprep.subr.bf16.mxu0 0
        %1832 = vmatpush1.bf16.msra.mxu0 0
        %1833 = vmatprep.subr.bf16.mxu0 0
        %1834 = vmatpush1.bf16.msra.mxu0 0
        %1835 = vmatprep.subr.bf16.mxu0 0
        %1836 = vmatpush1.bf16.msra.mxu0 %v1819
        %1837 = vmatprep.subr.bf16.mxu0 0
        %1838 = vmatpush2.bf16.msra.mxu0 0
        %1839 = vmatprep.subr.bf16.mxu0 0
        %1840 = vmatpush2.bf16.msra.mxu0 0
        %1841 = vmatprep.subr.bf16.mxu0 0
        %1842 = vmatpush2.bf16.msra.mxu0 0
        %1843 = vmatprep.subr.bf16.mxu0 0
        %1844 = vmatpush2.bf16.msra.mxu0 0
        %1845 = vmatprep.subr.bf16.mxu0 0
        %1846 = vmatpush2.bf16.msra.mxu0 0
        %1847 = vmatprep.subr.bf16.mxu0 0
        %1848 = vmatpush2.bf16.msra.mxu0 0
        %1849 = vmatprep.subr.bf16.mxu0 0
        %1850 = vmatpush2.bf16.msra.mxu0 0
        %1851 = vmatprep.subr.bf16.mxu0 0
        %1852 = vmatpush2.bf16.msra.mxu0 0
        %1853 = vmatprep.mubr.bf16.mxu0 0
        %1854 = vmatmul.mubr.bf16.gmra.mxu0 %v1816
        %v1855 = vpop.f32.mrf.mxu0
        %v1856 = vadd.f32 0.0, %v1855
        %v1857 = vpop.f32.mrf.mxu0
        %v1858 = vpop.f32.mrf.mxu0
        %v1859 = vpop.f32.mrf.mxu0
        %1860 = vdwg.mxu0
        %1861 = vrot.lane.b32.xlu0 %v1198, 80
        %v1862 = vpop.permute.xlu0 %1861
        %1863 = vrot.lane.b32.xlu0 %v1200, 80
        %v1864 = vpop.permute.xlu0 %1863
        %v1866 = vsel %vm1202, %v1862, 0
        %v1869 = vsel %vm1202, %v1864, 0
        %1871 = vmatprep.subr.bf16.mxu0 0
        %1872 = vmatpush1.bf16.xpose.msra.mxu0 0
        %1873 = vmatprep.subr.bf16.mxu0 0
        %1874 = vmatpush1.bf16.xpose.msra.mxu0 0
        %1875 = vmatprep.subr.bf16.mxu0 0
        %1876 = vmatpush1.bf16.xpose.msra.mxu0 0
        %1877 = vmatprep.subr.bf16.mxu0 0
        %1878 = vmatpush1.bf16.xpose.msra.mxu0 0
        %1879 = vmatprep.subr.bf16.mxu0 0
        %1880 = vmatpush1.bf16.xpose.msra.mxu0 0
        %1881 = vmatprep.subr.bf16.mxu0 0
        %1882 = vmatpush1.bf16.xpose.msra.mxu0 0
        %1883 = vmatprep.subr.bf16.mxu0 0
        %1884 = vmatpush1.bf16.xpose.msra.mxu0 0
        %1885 = vmatprep.subr.bf16.mxu0 0
        %1886 = vmatpush1.bf16.xpose.msra.mxu0 %v1869
        %1887 = vmatprep.subr.bf16.mxu0 0
        %1888 = vmatpush2.bf16.xpose.msra.mxu0 0
        %1889 = vmatprep.subr.bf16.mxu0 0
        %1890 = vmatpush2.bf16.xpose.msra.mxu0 0
        %1891 = vmatprep.subr.bf16.mxu0 0
        %1892 = vmatpush2.bf16.xpose.msra.mxu0 0
        %1893 = vmatprep.subr.bf16.mxu0 0
        %1894 = vmatpush2.bf16.xpose.msra.mxu0 0
        %1895 = vmatprep.subr.bf16.mxu0 0
        %1896 = vmatpush2.bf16.xpose.msra.mxu0 0
        %1897 = vmatprep.subr.bf16.mxu0 0
        %1898 = vmatpush2.bf16.xpose.msra.mxu0 0
        %1899 = vmatprep.subr.bf16.mxu0 0
        %1900 = vmatpush2.bf16.xpose.msra.mxu0 0
        %1901 = vmatprep.subr.bf16.mxu0 0
        %1902 = vmatpush2.bf16.xpose.msra.mxu0 0
        %1903 = vmatprep.mubr.bf16.mxu0 0
        %1904 = vmatmul.mubr.bf16.gmra.mxu0 %v1866
        %v1905 = vpop.f32.mrf.mxu0
        %v1906 = vadd.f32 0.0, %v1905
        %v1907 = vpop.f32.mrf.mxu0
        %v1908 = vpop.f32.mrf.mxu0
        %v1909 = vpop.f32.mrf.mxu0
        %1910 = vdwg.mxu0
        %1911 = vrot.lane.b32.xlu0 %v1199, 80
        %v1912 = vpop.permute.xlu0 %1911
        %1913 = vrot.lane.b32.xlu0 %v1201, 80
        %v1914 = vpop.permute.xlu0 %1913
        %v1916 = vsel %vm1202, %v1912, 0
        %v1919 = vsel %vm1202, %v1914, 0
        %1921 = vmatprep.subr.bf16.mxu0 0
        %1922 = vmatpush1.bf16.xpose.msra.mxu0 0
        %1923 = vmatprep.subr.bf16.mxu0 0
        %1924 = vmatpush1.bf16.xpose.msra.mxu0 0
        %1925 = vmatprep.subr.bf16.mxu0 0
        %1926 = vmatpush1.bf16.xpose.msra.mxu0 0
        %1927 = vmatprep.subr.bf16.mxu0 0
        %1928 = vmatpush1.bf16.xpose.msra.mxu0 0
        %1929 = vmatprep.subr.bf16.mxu0 0
        %1930 = vmatpush1.bf16.xpose.msra.mxu0 0
        %1931 = vmatprep.subr.bf16.mxu0 0
        %1932 = vmatpush1.bf16.xpose.msra.mxu0 0
        %1933 = vmatprep.subr.bf16.mxu0 0
        %1934 = vmatpush1.bf16.xpose.msra.mxu0 0
        %1935 = vmatprep.subr.bf16.mxu0 0
        %1936 = vmatpush1.bf16.xpose.msra.mxu0 %v1919
        %1937 = vmatprep.subr.bf16.mxu0 0
        %1938 = vmatpush2.bf16.xpose.msra.mxu0 0
        %1939 = vmatprep.subr.bf16.mxu0 0
        %1940 = vmatpush2.bf16.xpose.msra.mxu0 0
        %1941 = vmatprep.subr.bf16.mxu0 0
        %1942 = vmatpush2.bf16.xpose.msra.mxu0 0
        %1943 = vmatprep.subr.bf16.mxu0 0
        %1944 = vmatpush2.bf16.xpose.msra.mxu0 0
        %1945 = vmatprep.subr.bf16.mxu0 0
        %1946 = vmatpush2.bf16.xpose.msra.mxu0 0
        %1947 = vmatprep.subr.bf16.mxu0 0
        %1948 = vmatpush2.bf16.xpose.msra.mxu0 0
        %1949 = vmatprep.subr.bf16.mxu0 0
        %1950 = vmatpush2.bf16.xpose.msra.mxu0 0
        %1951 = vmatprep.subr.bf16.mxu0 0
        %1952 = vmatpush2.bf16.xpose.msra.mxu0 0
        %1953 = vmatprep.mubr.bf16.mxu0 0
        %1954 = vmatmul.mubr.bf16.gmra.mxu0 %v1916
        %v1955 = vpop.f32.mrf.mxu0
        %v1956 = vadd.f32 0.0, %v1955
        %v1957 = vpop.f32.mrf.mxu0
        %v1958 = vpop.f32.mrf.mxu0
        %v1959 = vpop.f32.mrf.mxu0
        %1960 = vdwg.mxu0
        %v1961 = vsel %vm1295, %v1906, -inf
        %1962 = vmax.xlane.f32.xlu0 %v1961
        %v1963 = vpop.xlane.xlu0 %1962
        %v1964 = vsel %vm1295, %v1956, -inf
        %1965 = vmax.xlane.f32.xlu0 %v1964
        %v1966 = vpop.xlane.xlu0 %1965
        %v1967 = vsub.f32 %v1906, %v1963
        %v1968 = vsub.f32 %v1956, %v1966
        %v1969 = vmul.f32 %v1967, 1.442695
        %v1970 = vpow.pop %v1969
        %v1971 = vmul.f32 %v1968, 1.442695
        %v1972 = vpow.pop %v1971
        %v1973 = vsel %vm1295, %v1970, 0.0
        %1974 = vadd.xlane.f32.xlu0 %v1973
        %v1975 = vpop.xlane.xlu0 %1974
        %v1976 = vsel %vm1295, %v1972, 0.0
        %1977 = vadd.xlane.f32.xlu0 %v1976
        %v1978 = vpop.xlane.xlu0 %1977
        %v1979 = vrcp.pop %v1975
        %v1980 = vrcp.pop %v1978
        %v1981 = vmul.f32 %v1970, %v1979
        %v1982 = vmul.f32 %v1972, %v1980
        %v1983 = vpack.c.bf16 %v1981, %v1981
        %v1984 = vpack.c.bf16 %v1982, %v1982
        %1985 = vrot.lane.b32.xlu0 %v1320, 80
        %v1986 = vpop.permute.xlu0 %1985
        %v1988 = vsel %vm1295, %v1983, 0
        %v1991 = vsel %vm1325, %v1986, 0
        %1993 = vmatprep.subr.bf16.mxu0 0
        %1994 = vmatpush1.bf16.msra.mxu0 0
        %1995 = vmatprep.subr.bf16.mxu0 0
        %1996 = vmatpush1.bf16.msra.mxu0 0
        %1997 = vmatprep.subr.bf16.mxu0 0
        %1998 = vmatpush1.bf16.msra.mxu0 0
        %1999 = vmatprep.subr.bf16.mxu0 0
        %2000 = vmatpush1.bf16.msra.mxu0 0
        %2001 = vmatprep.subr.bf16.mxu0 0
        %2002 = vmatpush1.bf16.msra.mxu0 0
        %2003 = vmatprep.subr.bf16.mxu0 0
        %2004 = vmatpush1.bf16.msra.mxu0 0
        %2005 = vmatprep.subr.bf16.mxu0 0
        %2006 = vmatpush1.bf16.msra.mxu0 0
        %2007 = vmatprep.subr.bf16.mxu0 0
        %2008 = vmatpush1.bf16.msra.mxu0 %v1991
        %2009 = vmatprep.subr.bf16.mxu0 0
        %2010 = vmatpush2.bf16.msra.mxu0 0
        %2011 = vmatprep.subr.bf16.mxu0 0
        %2012 = vmatpush2.bf16.msra.mxu0 0
        %2013 = vmatprep.subr.bf16.mxu0 0
        %2014 = vmatpush2.bf16.msra.mxu0 0
        %2015 = vmatprep.subr.bf16.mxu0 0
        %2016 = vmatpush2.bf16.msra.mxu0 0
        %2017 = vmatprep.subr.bf16.mxu0 0
        %2018 = vmatpush2.bf16.msra.mxu0 0
        %2019 = vmatprep.subr.bf16.mxu0 0
        %2020 = vmatpush2.bf16.msra.mxu0 0
        %2021 = vmatprep.subr.bf16.mxu0 0
        %2022 = vmatpush2.bf16.msra.mxu0 0
        %2023 = vmatprep.subr.bf16.mxu0 0
        %2024 = vmatpush2.bf16.msra.mxu0 0
        %2025 = vmatprep.mubr.bf16.mxu0 0
        %2026 = vmatmul.mubr.bf16.gmra.mxu0 %v1988
        %v2027 = vpop.f32.mrf.mxu0
        %v2028 = vadd.f32 0.0, %v2027
        %v2029 = vpop.f32.mrf.mxu0
        %v2030 = vpop.f32.mrf.mxu0
        %v2031 = vpop.f32.mrf.mxu0
        %2032 = vdwg.mxu0
        %2033 = vrot.lane.b32.xlu0 %v1321, 80
        %v2034 = vpop.permute.xlu0 %2033
        %v2036 = vsel %vm1295, %v1984, 0
        %v2039 = vsel %vm1325, %v2034, 0
        %2041 = vmatprep.subr.bf16.mxu0 0
        %2042 = vmatpush1.bf16.msra.mxu0 0
        %2043 = vmatprep.subr.bf16.mxu0 0
        %2044 = vmatpush1.bf16.msra.mxu0 0
        %2045 = vmatprep.subr.bf16.mxu0 0
        %2046 = vmatpush1.bf16.msra.mxu0 0
        %2047 = vmatprep.subr.bf16.mxu0 0
        %2048 = vmatpush1.bf16.msra.mxu0 0
        %2049 = vmatprep.subr.bf16.mxu0 0
        %2050 = vmatpush1.bf16.msra.mxu0 0
        %2051 = vmatprep.subr.bf16.mxu0 0
        %2052 = vmatpush1.bf16.msra.mxu0 0
        %2053 = vmatprep.subr.bf16.mxu0 0
        %2054 = vmatpush1.bf16.msra.mxu0 0
        %2055 = vmatprep.subr.bf16.mxu0 0
        %2056 = vmatpush1.bf16.msra.mxu0 %v2039
        %2057 = vmatprep.subr.bf16.mxu0 0
        %2058 = vmatpush2.bf16.msra.mxu0 0
        %2059 = vmatprep.subr.bf16.mxu0 0
        %2060 = vmatpush2.bf16.msra.mxu0 0
        %2061 = vmatprep.subr.bf16.mxu0 0
        %2062 = vmatpush2.bf16.msra.mxu0 0
        %2063 = vmatprep.subr.bf16.mxu0 0
        %2064 = vmatpush2.bf16.msra.mxu0 0
        %2065 = vmatprep.subr.bf16.mxu0 0
        %2066 = vmatpush2.bf16.msra.mxu0 0
        %2067 = vmatprep.subr.bf16.mxu0 0
        %2068 = vmatpush2.bf16.msra.mxu0 0
        %2069 = vmatprep.subr.bf16.mxu0 0
        %2070 = vmatpush2.bf16.msra.mxu0 0
        %2071 = vmatprep.subr.bf16.mxu0 0
        %2072 = vmatpush2.bf16.msra.mxu0 0
        %2073 = vmatprep.mubr.bf16.mxu0 0
        %2074 = vmatmul.mubr.bf16.gmra.mxu0 %v2036
        %v2075 = vpop.f32.mrf.mxu0
        %v2076 = vadd.f32 0.0, %v2075
        %v2077 = vpop.f32.mrf.mxu0
        %v2078 = vpop.f32.mrf.mxu0
        %v2079 = vpop.f32.mrf.mxu0
        %2080 = vdwg.mxu0
        %2081 = vrot.lane.b32.xlu0 %v1198, 64
        %v2082 = vpop.permute.xlu0 %2081
        %2083 = vrot.lane.b32.xlu0 %v1200, 64
        %v2084 = vpop.permute.xlu0 %2083
        %v2086 = vsel %vm1202, %v2082, 0
        %v2089 = vsel %vm1202, %v2084, 0
        %2091 = vmatprep.subr.bf16.mxu0 0
        %2092 = vmatpush1.bf16.xpose.msra.mxu0 0
        %2093 = vmatprep.subr.bf16.mxu0 0
        %2094 = vmatpush1.bf16.xpose.msra.mxu0 0
        %2095 = vmatprep.subr.bf16.mxu0 0
        %2096 = vmatpush1.bf16.xpose.msra.mxu0 0
        %2097 = vmatprep.subr.bf16.mxu0 0
        %2098 = vmatpush1.bf16.xpose.msra.mxu0 0
        %2099 = vmatprep.subr.bf16.mxu0 0
        %2100 = vmatpush1.bf16.xpose.msra.mxu0 0
        %2101 = vmatprep.subr.bf16.mxu0 0
        %2102 = vmatpush1.bf16.xpose.msra.mxu0 0
        %2103 = vmatprep.subr.bf16.mxu0 0
        %2104 = vmatpush1.bf16.xpose.msra.mxu0 0
        %2105 = vmatprep.subr.bf16.mxu0 0
        %2106 = vmatpush1.bf16.xpose.msra.mxu0 %v2089
        %2107 = vmatprep.subr.bf16.mxu0 0
        %2108 = vmatpush2.bf16.xpose.msra.mxu0 0
        %2109 = vmatprep.subr.bf16.mxu0 0
        %2110 = vmatpush2.bf16.xpose.msra.mxu0 0
        %2111 = vmatprep.subr.bf16.mxu0 0
        %2112 = vmatpush2.bf16.xpose.msra.mxu0 0
        %2113 = vmatprep.subr.bf16.mxu0 0
        %2114 = vmatpush2.bf16.xpose.msra.mxu0 0
        %2115 = vmatprep.subr.bf16.mxu0 0
        %2116 = vmatpush2.bf16.xpose.msra.mxu0 0
        %2117 = vmatprep.subr.bf16.mxu0 0
        %2118 = vmatpush2.bf16.xpose.msra.mxu0 0
        %2119 = vmatprep.subr.bf16.mxu0 0
        %2120 = vmatpush2.bf16.xpose.msra.mxu0 0
        %2121 = vmatprep.subr.bf16.mxu0 0
        %2122 = vmatpush2.bf16.xpose.msra.mxu0 0
        %2123 = vmatprep.mubr.bf16.mxu0 0
        %2124 = vmatmul.mubr.bf16.gmra.mxu0 %v2086
        %v2125 = vpop.f32.mrf.mxu0
        %v2126 = vadd.f32 0.0, %v2125
        %v2127 = vpop.f32.mrf.mxu0
        %v2128 = vpop.f32.mrf.mxu0
        %v2129 = vpop.f32.mrf.mxu0
        %2130 = vdwg.mxu0
        %2131 = vrot.lane.b32.xlu0 %v1199, 64
        %v2132 = vpop.permute.xlu0 %2131
        %2133 = vrot.lane.b32.xlu0 %v1201, 64
        %v2134 = vpop.permute.xlu0 %2133
        %v2136 = vsel %vm1202, %v2132, 0
        %v2139 = vsel %vm1202, %v2134, 0
        %2141 = vmatprep.subr.bf16.mxu0 0
        %2142 = vmatpush1.bf16.xpose.msra.mxu0 0
        %2143 = vmatprep.subr.bf16.mxu0 0
        %2144 = vmatpush1.bf16.xpose.msra.mxu0 0
        %2145 = vmatprep.subr.bf16.mxu0 0
        %2146 = vmatpush1.bf16.xpose.msra.mxu0 0
        %2147 = vmatprep.subr.bf16.mxu0 0
        %2148 = vmatpush1.bf16.xpose.msra.mxu0 0
        %2149 = vmatprep.subr.bf16.mxu0 0
        %2150 = vmatpush1.bf16.xpose.msra.mxu0 0
        %2151 = vmatprep.subr.bf16.mxu0 0
        %2152 = vmatpush1.bf16.xpose.msra.mxu0 0
        %2153 = vmatprep.subr.bf16.mxu0 0
        %2154 = vmatpush1.bf16.xpose.msra.mxu0 0
        %2155 = vmatprep.subr.bf16.mxu0 0
        %2156 = vmatpush1.bf16.xpose.msra.mxu0 %v2139
        %2157 = vmatprep.subr.bf16.mxu0 0
        %2158 = vmatpush2.bf16.xpose.msra.mxu0 0
        %2159 = vmatprep.subr.bf16.mxu0 0
        %2160 = vmatpush2.bf16.xpose.msra.mxu0 0
        %2161 = vmatprep.subr.bf16.mxu0 0
        %2162 = vmatpush2.bf16.xpose.msra.mxu0 0
        %2163 = vmatprep.subr.bf16.mxu0 0
        %2164 = vmatpush2.bf16.xpose.msra.mxu0 0
        %2165 = vmatprep.subr.bf16.mxu0 0
        %2166 = vmatpush2.bf16.xpose.msra.mxu0 0
        %2167 = vmatprep.subr.bf16.mxu0 0
        %2168 = vmatpush2.bf16.xpose.msra.mxu0 0
        %2169 = vmatprep.subr.bf16.mxu0 0
        %2170 = vmatpush2.bf16.xpose.msra.mxu0 0
        %2171 = vmatprep.subr.bf16.mxu0 0
        %2172 = vmatpush2.bf16.xpose.msra.mxu0 0
        %2173 = vmatprep.mubr.bf16.mxu0 0
        %2174 = vmatmul.mubr.bf16.gmra.mxu0 %v2136
        %v2175 = vpop.f32.mrf.mxu0
        %v2176 = vadd.f32 0.0, %v2175
        %v2177 = vpop.f32.mrf.mxu0
        %v2178 = vpop.f32.mrf.mxu0
        %v2179 = vpop.f32.mrf.mxu0
        %2180 = vdwg.mxu0
        %v2181 = vsel %vm1295, %v2126, -inf
        %2182 = vmax.xlane.f32.xlu0 %v2181
        %v2183 = vpop.xlane.xlu0 %2182
        %v2184 = vsel %vm1295, %v2176, -inf
        %2185 = vmax.xlane.f32.xlu0 %v2184
        %v2186 = vpop.xlane.xlu0 %2185
        %v2187 = vsub.f32 %v2126, %v2183
        %v2188 = vsub.f32 %v2176, %v2186
        %v2189 = vmul.f32 %v2187, 1.442695
        %v2190 = vpow.pop %v2189
        %v2191 = vmul.f32 %v2188, 1.442695
        %v2192 = vpow.pop %v2191
        %v2193 = vsel %vm1295, %v2190, 0.0
        %2194 = vadd.xlane.f32.xlu0 %v2193
        %v2195 = vpop.xlane.xlu0 %2194
        %v2196 = vsel %vm1295, %v2192, 0.0
        %2197 = vadd.xlane.f32.xlu0 %v2196
        %v2198 = vpop.xlane.xlu0 %2197
        %v2199 = vrcp.pop %v2195
        %v2200 = vrcp.pop %v2198
        %v2201 = vmul.f32 %v2190, %v2199
        %v2202 = vmul.f32 %v2192, %v2200
        %v2203 = vpack.c.bf16 %v2201, %v2201
        %v2204 = vpack.c.bf16 %v2202, %v2202
        %2205 = vrot.lane.b32.xlu0 %v1320, 64
        %v2206 = vpop.permute.xlu0 %2205
        %v2208 = vsel %vm1295, %v2203, 0
        %v2211 = vsel %vm1325, %v2206, 0
        %2213 = vmatprep.subr.bf16.mxu0 0
        %2214 = vmatpush1.bf16.msra.mxu0 0
        %2215 = vmatprep.subr.bf16.mxu0 0
        %2216 = vmatpush1.bf16.msra.mxu0 0
        %2217 = vmatprep.subr.bf16.mxu0 0
        %2218 = vmatpush1.bf16.msra.mxu0 0
        %2219 = vmatprep.subr.bf16.mxu0 0
        %2220 = vmatpush1.bf16.msra.mxu0 0
        %2221 = vmatprep.subr.bf16.mxu0 0
        %2222 = vmatpush1.bf16.msra.mxu0 0
        %2223 = vmatprep.subr.bf16.mxu0 0
        %2224 = vmatpush1.bf16.msra.mxu0 0
        %2225 = vmatprep.subr.bf16.mxu0 0
        %2226 = vmatpush1.bf16.msra.mxu0 0
        %2227 = vmatprep.subr.bf16.mxu0 0
        %2228 = vmatpush1.bf16.msra.mxu0 %v2211
        %2229 = vmatprep.subr.bf16.mxu0 0
        %2230 = vmatpush2.bf16.msra.mxu0 0
        %2231 = vmatprep.subr.bf16.mxu0 0
        %2232 = vmatpush2.bf16.msra.mxu0 0
        %2233 = vmatprep.subr.bf16.mxu0 0
        %2234 = vmatpush2.bf16.msra.mxu0 0
        %2235 = vmatprep.subr.bf16.mxu0 0
        %2236 = vmatpush2.bf16.msra.mxu0 0
        %2237 = vmatprep.subr.bf16.mxu0 0
        %2238 = vmatpush2.bf16.msra.mxu0 0
        %2239 = vmatprep.subr.bf16.mxu0 0
        %2240 = vmatpush2.bf16.msra.mxu0 0
        %2241 = vmatprep.subr.bf16.mxu0 0
        %2242 = vmatpush2.bf16.msra.mxu0 0
        %2243 = vmatprep.subr.bf16.mxu0 0
        %2244 = vmatpush2.bf16.msra.mxu0 0
        %2245 = vmatprep.mubr.bf16.mxu0 0
        %2246 = vmatmul.mubr.bf16.gmra.mxu0 %v2208
        %v2247 = vpop.f32.mrf.mxu0
        %v2248 = vadd.f32 0.0, %v2247
        %v2249 = vpop.f32.mrf.mxu0
        %v2250 = vpop.f32.mrf.mxu0
        %v2251 = vpop.f32.mrf.mxu0
        %2252 = vdwg.mxu0
        %2253 = vrot.lane.b32.xlu0 %v1321, 64
        %v2254 = vpop.permute.xlu0 %2253
        %v2256 = vsel %vm1295, %v2204, 0
        %v2259 = vsel %vm1325, %v2254, 0
        %2261 = vmatprep.subr.bf16.mxu0 0
        %2262 = vmatpush1.bf16.msra.mxu0 0
        %2263 = vmatprep.subr.bf16.mxu0 0
        %2264 = vmatpush1.bf16.msra.mxu0 0
        %2265 = vmatprep.subr.bf16.mxu0 0
        %2266 = vmatpush1.bf16.msra.mxu0 0
        %2267 = vmatprep.subr.bf16.mxu0 0
        %2268 = vmatpush1.bf16.msra.mxu0 0
        %2269 = vmatprep.subr.bf16.mxu0 0
        %2270 = vmatpush1.bf16.msra.mxu0 0
        %2271 = vmatprep.subr.bf16.mxu0 0
        %2272 = vmatpush1.bf16.msra.mxu0 0
        %2273 = vmatprep.subr.bf16.mxu0 0
        %2274 = vmatpush1.bf16.msra.mxu0 0
        %2275 = vmatprep.subr.bf16.mxu0 0
        %2276 = vmatpush1.bf16.msra.mxu0 %v2259
        %2277 = vmatprep.subr.bf16.mxu0 0
        %2278 = vmatpush2.bf16.msra.mxu0 0
        %2279 = vmatprep.subr.bf16.mxu0 0
        %2280 = vmatpush2.bf16.msra.mxu0 0
        %2281 = vmatprep.subr.bf16.mxu0 0
        %2282 = vmatpush2.bf16.msra.mxu0 0
        %2283 = vmatprep.subr.bf16.mxu0 0
        %2284 = vmatpush2.bf16.msra.mxu0 0
        %2285 = vmatprep.subr.bf16.mxu0 0
        %2286 = vmatpush2.bf16.msra.mxu0 0
        %2287 = vmatprep.subr.bf16.mxu0 0
        %2288 = vmatpush2.bf16.msra.mxu0 0
        %2289 = vmatprep.subr.bf16.mxu0 0
        %2290 = vmatpush2.bf16.msra.mxu0 0
        %2291 = vmatprep.subr.bf16.mxu0 0
        %2292 = vmatpush2.bf16.msra.mxu0 0
        %2293 = vmatprep.mubr.bf16.mxu0 0
        %2294 = vmatmul.mubr.bf16.gmra.mxu0 %v2256
        %v2295 = vpop.f32.mrf.mxu0
        %v2296 = vadd.f32 0.0, %v2295
        %v2297 = vpop.f32.mrf.mxu0
        %v2298 = vpop.f32.mrf.mxu0
        %v2299 = vpop.f32.mrf.mxu0
        %2300 = vdwg.mxu0
        %2301 = vrot.lane.b32.xlu0 %v1198, 48
        %v2302 = vpop.permute.xlu0 %2301
        %2303 = vrot.lane.b32.xlu0 %v1200, 48
        %v2304 = vpop.permute.xlu0 %2303
        %v2306 = vsel %vm1202, %v2302, 0
        %v2309 = vsel %vm1202, %v2304, 0
        %2311 = vmatprep.subr.bf16.mxu0 0
        %2312 = vmatpush1.bf16.xpose.msra.mxu0 0
        %2313 = vmatprep.subr.bf16.mxu0 0
        %2314 = vmatpush1.bf16.xpose.msra.mxu0 0
        %2315 = vmatprep.subr.bf16.mxu0 0
        %2316 = vmatpush1.bf16.xpose.msra.mxu0 0
        %2317 = vmatprep.subr.bf16.mxu0 0
        %2318 = vmatpush1.bf16.xpose.msra.mxu0 0
        %2319 = vmatprep.subr.bf16.mxu0 0
        %2320 = vmatpush1.bf16.xpose.msra.mxu0 0
        %2321 = vmatprep.subr.bf16.mxu0 0
        %2322 = vmatpush1.bf16.xpose.msra.mxu0 0
        %2323 = vmatprep.subr.bf16.mxu0 0
        %2324 = vmatpush1.bf16.xpose.msra.mxu0 0
        %2325 = vmatprep.subr.bf16.mxu0 0
        %2326 = vmatpush1.bf16.xpose.msra.mxu0 %v2309
        %2327 = vmatprep.subr.bf16.mxu0 0
        %2328 = vmatpush2.bf16.xpose.msra.mxu0 0
        %2329 = vmatprep.subr.bf16.mxu0 0
        %2330 = vmatpush2.bf16.xpose.msra.mxu0 0
        %2331 = vmatprep.subr.bf16.mxu0 0
        %2332 = vmatpush2.bf16.xpose.msra.mxu0 0
        %2333 = vmatprep.subr.bf16.mxu0 0
        %2334 = vmatpush2.bf16.xpose.msra.mxu0 0
        %2335 = vmatprep.subr.bf16.mxu0 0
        %2336 = vmatpush2.bf16.xpose.msra.mxu0 0
        %2337 = vmatprep.subr.bf16.mxu0 0
        %2338 = vmatpush2.bf16.xpose.msra.mxu0 0
        %2339 = vmatprep.subr.bf16.mxu0 0
        %2340 = vmatpush2.bf16.xpose.msra.mxu0 0
        %2341 = vmatprep.subr.bf16.mxu0 0
        %2342 = vmatpush2.bf16.xpose.msra.mxu0 0
        %2343 = vmatprep.mubr.bf16.mxu0 0
        %2344 = vmatmul.mubr.bf16.gmra.mxu0 %v2306
        %v2345 = vpop.f32.mrf.mxu0
        %v2346 = vadd.f32 0.0, %v2345
        %v2347 = vpop.f32.mrf.mxu0
        %v2348 = vpop.f32.mrf.mxu0
        %v2349 = vpop.f32.mrf.mxu0
        %2350 = vdwg.mxu0
        %2351 = vrot.lane.b32.xlu0 %v1199, 48
        %v2352 = vpop.permute.xlu0 %2351
        %2353 = vrot.lane.b32.xlu0 %v1201, 48
        %v2354 = vpop.permute.xlu0 %2353
        %v2356 = vsel %vm1202, %v2352, 0
        %v2359 = vsel %vm1202, %v2354, 0
        %2361 = vmatprep.subr.bf16.mxu0 0
        %2362 = vmatpush1.bf16.xpose.msra.mxu0 0
        %2363 = vmatprep.subr.bf16.mxu0 0
        %2364 = vmatpush1.bf16.xpose.msra.mxu0 0
        %2365 = vmatprep.subr.bf16.mxu0 0
        %2366 = vmatpush1.bf16.xpose.msra.mxu0 0
        %2367 = vmatprep.subr.bf16.mxu0 0
        %2368 = vmatpush1.bf16.xpose.msra.mxu0 0
        %2369 = vmatprep.subr.bf16.mxu0 0
        %2370 = vmatpush1.bf16.xpose.msra.mxu0 0
        %2371 = vmatprep.subr.bf16.mxu0 0
        %2372 = vmatpush1.bf16.xpose.msra.mxu0 0
        %2373 = vmatprep.subr.bf16.mxu0 0
        %2374 = vmatpush1.bf16.xpose.msra.mxu0 0
        %2375 = vmatprep.subr.bf16.mxu0 0
        %2376 = vmatpush1.bf16.xpose.msra.mxu0 %v2359
        %2377 = vmatprep.subr.bf16.mxu0 0
        %2378 = vmatpush2.bf16.xpose.msra.mxu0 0
        %2379 = vmatprep.subr.bf16.mxu0 0
        %2380 = vmatpush2.bf16.xpose.msra.mxu0 0
        %2381 = vmatprep.subr.bf16.mxu0 0
        %2382 = vmatpush2.bf16.xpose.msra.mxu0 0
        %2383 = vmatprep.subr.bf16.mxu0 0
        %2384 = vmatpush2.bf16.xpose.msra.mxu0 0
        %2385 = vmatprep.subr.bf16.mxu0 0
        %2386 = vmatpush2.bf16.xpose.msra.mxu0 0
        %2387 = vmatprep.subr.bf16.mxu0 0
        %2388 = vmatpush2.bf16.xpose.msra.mxu0 0
        %2389 = vmatprep.subr.bf16.mxu0 0
        %2390 = vmatpush2.bf16.xpose.msra.mxu0 0
        %2391 = vmatprep.subr.bf16.mxu0 0
        %2392 = vmatpush2.bf16.xpose.msra.mxu0 0
        %2393 = vmatprep.mubr.bf16.mxu0 0
        %2394 = vmatmul.mubr.bf16.gmra.mxu0 %v2356
        %v2395 = vpop.f32.mrf.mxu0
        %v2396 = vadd.f32 0.0, %v2395
        %v2397 = vpop.f32.mrf.mxu0
        %v2398 = vpop.f32.mrf.mxu0
        %v2399 = vpop.f32.mrf.mxu0
        %2400 = vdwg.mxu0
        %v2401 = vsel %vm1295, %v2346, -inf
        %2402 = vmax.xlane.f32.xlu0 %v2401
        %v2403 = vpop.xlane.xlu0 %2402
        %v2404 = vsel %vm1295, %v2396, -inf
        %2405 = vmax.xlane.f32.xlu0 %v2404
        %v2406 = vpop.xlane.xlu0 %2405
        %v2407 = vsub.f32 %v2346, %v2403
        %v2408 = vsub.f32 %v2396, %v2406
        %v2409 = vmul.f32 %v2407, 1.442695
        %v2410 = vpow.pop %v2409
        %v2411 = vmul.f32 %v2408, 1.442695
        %v2412 = vpow.pop %v2411
        %v2413 = vsel %vm1295, %v2410, 0.0
        %2414 = vadd.xlane.f32.xlu0 %v2413
        %v2415 = vpop.xlane.xlu0 %2414
        %v2416 = vsel %vm1295, %v2412, 0.0
        %2417 = vadd.xlane.f32.xlu0 %v2416
        %v2418 = vpop.xlane.xlu0 %2417
        %v2419 = vrcp.pop %v2415
        %v2420 = vrcp.pop %v2418
        %v2421 = vmul.f32 %v2410, %v2419
        %v2422 = vmul.f32 %v2412, %v2420
        %v2423 = vpack.c.bf16 %v2421, %v2421
        %v2424 = vpack.c.bf16 %v2422, %v2422
        %2425 = vrot.lane.b32.xlu0 %v1320, 48
        %v2426 = vpop.permute.xlu0 %2425
        %v2428 = vsel %vm1295, %v2423, 0
        %v2431 = vsel %vm1325, %v2426, 0
        %2433 = vmatprep.subr.bf16.mxu0 0
        %2434 = vmatpush1.bf16.msra.mxu0 0
        %2435 = vmatprep.subr.bf16.mxu0 0
        %2436 = vmatpush1.bf16.msra.mxu0 0
        %2437 = vmatprep.subr.bf16.mxu0 0
        %2438 = vmatpush1.bf16.msra.mxu0 0
        %2439 = vmatprep.subr.bf16.mxu0 0
        %2440 = vmatpush1.bf16.msra.mxu0 0
        %2441 = vmatprep.subr.bf16.mxu0 0
        %2442 = vmatpush1.bf16.msra.mxu0 0
        %2443 = vmatprep.subr.bf16.mxu0 0
        %2444 = vmatpush1.bf16.msra.mxu0 0
        %2445 = vmatprep.subr.bf16.mxu0 0
        %2446 = vmatpush1.bf16.msra.mxu0 0
        %2447 = vmatprep.subr.bf16.mxu0 0
        %2448 = vmatpush1.bf16.msra.mxu0 %v2431
        %2449 = vmatprep.subr.bf16.mxu0 0
        %2450 = vmatpush2.bf16.msra.mxu0 0
        %2451 = vmatprep.subr.bf16.mxu0 0
        %2452 = vmatpush2.bf16.msra.mxu0 0
        %2453 = vmatprep.subr.bf16.mxu0 0
        %2454 = vmatpush2.bf16.msra.mxu0 0
        %2455 = vmatprep.subr.bf16.mxu0 0
        %2456 = vmatpush2.bf16.msra.mxu0 0
        %2457 = vmatprep.subr.bf16.mxu0 0
        %2458 = vmatpush2.bf16.msra.mxu0 0
        %2459 = vmatprep.subr.bf16.mxu0 0
        %2460 = vmatpush2.bf16.msra.mxu0 0
        %2461 = vmatprep.subr.bf16.mxu0 0
        %2462 = vmatpush2.bf16.msra.mxu0 0
        %2463 = vmatprep.subr.bf16.mxu0 0
        %2464 = vmatpush2.bf16.msra.mxu0 0
        %2465 = vmatprep.mubr.bf16.mxu0 0
        %2466 = vmatmul.mubr.bf16.gmra.mxu0 %v2428
        %v2467 = vpop.f32.mrf.mxu0
        %v2468 = vadd.f32 0.0, %v2467
        %v2469 = vpop.f32.mrf.mxu0
        %v2470 = vpop.f32.mrf.mxu0
        %v2471 = vpop.f32.mrf.mxu0
        %2472 = vdwg.mxu0
        %2473 = vrot.lane.b32.xlu0 %v1321, 48
        %v2474 = vpop.permute.xlu0 %2473
        %v2476 = vsel %vm1295, %v2424, 0
        %v2479 = vsel %vm1325, %v2474, 0
        %2481 = vmatprep.subr.bf16.mxu0 0
        %2482 = vmatpush1.bf16.msra.mxu0 0
        %2483 = vmatprep.subr.bf16.mxu0 0
        %2484 = vmatpush1.bf16.msra.mxu0 0
        %2485 = vmatprep.subr.bf16.mxu0 0
        %2486 = vmatpush1.bf16.msra.mxu0 0
        %2487 = vmatprep.subr.bf16.mxu0 0
        %2488 = vmatpush1.bf16.msra.mxu0 0
        %2489 = vmatprep.subr.bf16.mxu0 0
        %2490 = vmatpush1.bf16.msra.mxu0 0
        %2491 = vmatprep.subr.bf16.mxu0 0
        %2492 = vmatpush1.bf16.msra.mxu0 0
        %2493 = vmatprep.subr.bf16.mxu0 0
        %2494 = vmatpush1.bf16.msra.mxu0 0
        %2495 = vmatprep.subr.bf16.mxu0 0
        %2496 = vmatpush1.bf16.msra.mxu0 %v2479
        %2497 = vmatprep.subr.bf16.mxu0 0
        %2498 = vmatpush2.bf16.msra.mxu0 0
        %2499 = vmatprep.subr.bf16.mxu0 0
        %2500 = vmatpush2.bf16.msra.mxu0 0
        %2501 = vmatprep.subr.bf16.mxu0 0
        %2502 = vmatpush2.bf16.msra.mxu0 0
        %2503 = vmatprep.subr.bf16.mxu0 0
        %2504 = vmatpush2.bf16.msra.mxu0 0
        %2505 = vmatprep.subr.bf16.mxu0 0
        %2506 = vmatpush2.bf16.msra.mxu0 0
        %2507 = vmatprep.subr.bf16.mxu0 0
        %2508 = vmatpush2.bf16.msra.mxu0 0
        %2509 = vmatprep.subr.bf16.mxu0 0
        %2510 = vmatpush2.bf16.msra.mxu0 0
        %2511 = vmatprep.subr.bf16.mxu0 0
        %2512 = vmatpush2.bf16.msra.mxu0 0
        %2513 = vmatprep.mubr.bf16.mxu0 0
        %2514 = vmatmul.mubr.bf16.gmra.mxu0 %v2476
        %v2515 = vpop.f32.mrf.mxu0
        %v2516 = vadd.f32 0.0, %v2515
        %v2517 = vpop.f32.mrf.mxu0
        %v2518 = vpop.f32.mrf.mxu0
        %v2519 = vpop.f32.mrf.mxu0
        %2520 = vdwg.mxu0
        %2521 = vrot.lane.b32.xlu0 %v1198, 32
        %v2522 = vpop.permute.xlu0 %2521
        %2523 = vrot.lane.b32.xlu0 %v1200, 32
        %v2524 = vpop.permute.xlu0 %2523
        %v2526 = vsel %vm1202, %v2522, 0
        %v2529 = vsel %vm1202, %v2524, 0
        %2531 = vmatprep.subr.bf16.mxu0 0
        %2532 = vmatpush1.bf16.xpose.msra.mxu0 0
        %2533 = vmatprep.subr.bf16.mxu0 0
        %2534 = vmatpush1.bf16.xpose.msra.mxu0 0
        %2535 = vmatprep.subr.bf16.mxu0 0
        %2536 = vmatpush1.bf16.xpose.msra.mxu0 0
        %2537 = vmatprep.subr.bf16.mxu0 0
        %2538 = vmatpush1.bf16.xpose.msra.mxu0 0
        %2539 = vmatprep.subr.bf16.mxu0 0
        %2540 = vmatpush1.bf16.xpose.msra.mxu0 0
        %2541 = vmatprep.subr.bf16.mxu0 0
        %2542 = vmatpush1.bf16.xpose.msra.mxu0 0
        %2543 = vmatprep.subr.bf16.mxu0 0
        %2544 = vmatpush1.bf16.xpose.msra.mxu0 0
        %2545 = vmatprep.subr.bf16.mxu0 0
        %2546 = vmatpush1.bf16.xpose.msra.mxu0 %v2529
        %2547 = vmatprep.subr.bf16.mxu0 0
        %2548 = vmatpush2.bf16.xpose.msra.mxu0 0
        %2549 = vmatprep.subr.bf16.mxu0 0
        %2550 = vmatpush2.bf16.xpose.msra.mxu0 0
        %2551 = vmatprep.subr.bf16.mxu0 0
        %2552 = vmatpush2.bf16.xpose.msra.mxu0 0
        %2553 = vmatprep.subr.bf16.mxu0 0
        %2554 = vmatpush2.bf16.xpose.msra.mxu0 0
        %2555 = vmatprep.subr.bf16.mxu0 0
        %2556 = vmatpush2.bf16.xpose.msra.mxu0 0
        %2557 = vmatprep.subr.bf16.mxu0 0
        %2558 = vmatpush2.bf16.xpose.msra.mxu0 0
        %2559 = vmatprep.subr.bf16.mxu0 0
        %2560 = vmatpush2.bf16.xpose.msra.mxu0 0
        %2561 = vmatprep.subr.bf16.mxu0 0
        %2562 = vmatpush2.bf16.xpose.msra.mxu0 0
        %2563 = vmatprep.mubr.bf16.mxu0 0
        %2564 = vmatmul.mubr.bf16.gmra.mxu0 %v2526
        %v2565 = vpop.f32.mrf.mxu0
        %v2566 = vadd.f32 0.0, %v2565
        %v2567 = vpop.f32.mrf.mxu0
        %v2568 = vpop.f32.mrf.mxu0
        %v2569 = vpop.f32.mrf.mxu0
        %2570 = vdwg.mxu0
        %2571 = vrot.lane.b32.xlu0 %v1199, 32
        %v2572 = vpop.permute.xlu0 %2571
        %2573 = vrot.lane.b32.xlu0 %v1201, 32
        %v2574 = vpop.permute.xlu0 %2573
        %v2576 = vsel %vm1202, %v2572, 0
        %v2579 = vsel %vm1202, %v2574, 0
        %2581 = vmatprep.subr.bf16.mxu0 0
        %2582 = vmatpush1.bf16.xpose.msra.mxu0 0
        %2583 = vmatprep.subr.bf16.mxu0 0
        %2584 = vmatpush1.bf16.xpose.msra.mxu0 0
        %2585 = vmatprep.subr.bf16.mxu0 0
        %2586 = vmatpush1.bf16.xpose.msra.mxu0 0
        %2587 = vmatprep.subr.bf16.mxu0 0
        %2588 = vmatpush1.bf16.xpose.msra.mxu0 0
        %2589 = vmatprep.subr.bf16.mxu0 0
        %2590 = vmatpush1.bf16.xpose.msra.mxu0 0
        %2591 = vmatprep.subr.bf16.mxu0 0
        %2592 = vmatpush1.bf16.xpose.msra.mxu0 0
        %2593 = vmatprep.subr.bf16.mxu0 0
        %2594 = vmatpush1.bf16.xpose.msra.mxu0 0
        %2595 = vmatprep.subr.bf16.mxu0 0
        %2596 = vmatpush1.bf16.xpose.msra.mxu0 %v2579
        %2597 = vmatprep.subr.bf16.mxu0 0
        %2598 = vmatpush2.bf16.xpose.msra.mxu0 0
        %2599 = vmatprep.subr.bf16.mxu0 0
        %2600 = vmatpush2.bf16.xpose.msra.mxu0 0
        %2601 = vmatprep.subr.bf16.mxu0 0
        %2602 = vmatpush2.bf16.xpose.msra.mxu0 0
        %2603 = vmatprep.subr.bf16.mxu0 0
        %2604 = vmatpush2.bf16.xpose.msra.mxu0 0
        %2605 = vmatprep.subr.bf16.mxu0 0
        %2606 = vmatpush2.bf16.xpose.msra.mxu0 0
        %2607 = vmatprep.subr.bf16.mxu0 0
        %2608 = vmatpush2.bf16.xpose.msra.mxu0 0
        %2609 = vmatprep.subr.bf16.mxu0 0
        %2610 = vmatpush2.bf16.xpose.msra.mxu0 0
        %2611 = vmatprep.subr.bf16.mxu0 0
        %2612 = vmatpush2.bf16.xpose.msra.mxu0 0
        %2613 = vmatprep.mubr.bf16.mxu0 0
        %2614 = vmatmul.mubr.bf16.gmra.mxu0 %v2576
        %v2615 = vpop.f32.mrf.mxu0
        %v2616 = vadd.f32 0.0, %v2615
        %v2617 = vpop.f32.mrf.mxu0
        %v2618 = vpop.f32.mrf.mxu0
        %v2619 = vpop.f32.mrf.mxu0
        %2620 = vdwg.mxu0
        %v2621 = vsel %vm1295, %v2566, -inf
        %2622 = vmax.xlane.f32.xlu0 %v2621
        %v2623 = vpop.xlane.xlu0 %2622
        %v2624 = vsel %vm1295, %v2616, -inf
        %2625 = vmax.xlane.f32.xlu0 %v2624
        %v2626 = vpop.xlane.xlu0 %2625
        %v2627 = vsub.f32 %v2566, %v2623
        %v2628 = vsub.f32 %v2616, %v2626
        %v2629 = vmul.f32 %v2627, 1.442695
        %v2630 = vpow.pop %v2629
        %v2631 = vmul.f32 %v2628, 1.442695
        %v2632 = vpow.pop %v2631
        %v2633 = vsel %vm1295, %v2630, 0.0
        %2634 = vadd.xlane.f32.xlu0 %v2633
        %v2635 = vpop.xlane.xlu0 %2634
        %v2636 = vsel %vm1295, %v2632, 0.0
        %2637 = vadd.xlane.f32.xlu0 %v2636
        %v2638 = vpop.xlane.xlu0 %2637
        %v2639 = vrcp.pop %v2635
        %v2640 = vrcp.pop %v2638
        %v2641 = vmul.f32 %v2630, %v2639
        %v2642 = vmul.f32 %v2632, %v2640
        %v2643 = vpack.c.bf16 %v2641, %v2641
        %v2644 = vpack.c.bf16 %v2642, %v2642
        %2645 = vrot.lane.b32.xlu0 %v1320, 32
        %v2646 = vpop.permute.xlu0 %2645
        %v2648 = vsel %vm1295, %v2643, 0
        %v2651 = vsel %vm1325, %v2646, 0
        %2653 = vmatprep.subr.bf16.mxu0 0
        %2654 = vmatpush1.bf16.msra.mxu0 0
        %2655 = vmatprep.subr.bf16.mxu0 0
        %2656 = vmatpush1.bf16.msra.mxu0 0
        %2657 = vmatprep.subr.bf16.mxu0 0
        %2658 = vmatpush1.bf16.msra.mxu0 0
        %2659 = vmatprep.subr.bf16.mxu0 0
        %2660 = vmatpush1.bf16.msra.mxu0 0
        %2661 = vmatprep.subr.bf16.mxu0 0
        %2662 = vmatpush1.bf16.msra.mxu0 0
        %2663 = vmatprep.subr.bf16.mxu0 0
        %2664 = vmatpush1.bf16.msra.mxu0 0
        %2665 = vmatprep.subr.bf16.mxu0 0
        %2666 = vmatpush1.bf16.msra.mxu0 0
        %2667 = vmatprep.subr.bf16.mxu0 0
        %2668 = vmatpush1.bf16.msra.mxu0 %v2651
        %2669 = vmatprep.subr.bf16.mxu0 0
        %2670 = vmatpush2.bf16.msra.mxu0 0
        %2671 = vmatprep.subr.bf16.mxu0 0
        %2672 = vmatpush2.bf16.msra.mxu0 0
        %2673 = vmatprep.subr.bf16.mxu0 0
        %2674 = vmatpush2.bf16.msra.mxu0 0
        %2675 = vmatprep.subr.bf16.mxu0 0
        %2676 = vmatpush2.bf16.msra.mxu0 0
        %2677 = vmatprep.subr.bf16.mxu0 0
        %2678 = vmatpush2.bf16.msra.mxu0 0
        %2679 = vmatprep.subr.bf16.mxu0 0
        %2680 = vmatpush2.bf16.msra.mxu0 0
        %2681 = vmatprep.subr.bf16.mxu0 0
        %2682 = vmatpush2.bf16.msra.mxu0 0
        %2683 = vmatprep.subr.bf16.mxu0 0
        %2684 = vmatpush2.bf16.msra.mxu0 0
        %2685 = vmatprep.mubr.bf16.mxu0 0
        %2686 = vmatmul.mubr.bf16.gmra.mxu0 %v2648
        %v2687 = vpop.f32.mrf.mxu0
        %v2688 = vadd.f32 0.0, %v2687
        %v2689 = vpop.f32.mrf.mxu0
        %v2690 = vpop.f32.mrf.mxu0
        %v2691 = vpop.f32.mrf.mxu0
        %2692 = vdwg.mxu0
        %2693 = vrot.lane.b32.xlu0 %v1321, 32
        %v2694 = vpop.permute.xlu0 %2693
        %v2696 = vsel %vm1295, %v2644, 0
        %v2699 = vsel %vm1325, %v2694, 0
        %2701 = vmatprep.subr.bf16.mxu0 0
        %2702 = vmatpush1.bf16.msra.mxu0 0
        %2703 = vmatprep.subr.bf16.mxu0 0
        %2704 = vmatpush1.bf16.msra.mxu0 0
        %2705 = vmatprep.subr.bf16.mxu0 0
        %2706 = vmatpush1.bf16.msra.mxu0 0
        %2707 = vmatprep.subr.bf16.mxu0 0
        %2708 = vmatpush1.bf16.msra.mxu0 0
        %2709 = vmatprep.subr.bf16.mxu0 0
        %2710 = vmatpush1.bf16.msra.mxu0 0
        %2711 = vmatprep.subr.bf16.mxu0 0
        %2712 = vmatpush1.bf16.msra.mxu0 0
        %2713 = vmatprep.subr.bf16.mxu0 0
        %2714 = vmatpush1.bf16.msra.mxu0 0
        %2715 = vmatprep.subr.bf16.mxu0 0
        %2716 = vmatpush1.bf16.msra.mxu0 %v2699
        %2717 = vmatprep.subr.bf16.mxu0 0
        %2718 = vmatpush2.bf16.msra.mxu0 0
        %2719 = vmatprep.subr.bf16.mxu0 0
        %2720 = vmatpush2.bf16.msra.mxu0 0
        %2721 = vmatprep.subr.bf16.mxu0 0
        %2722 = vmatpush2.bf16.msra.mxu0 0
        %2723 = vmatprep.subr.bf16.mxu0 0
        %2724 = vmatpush2.bf16.msra.mxu0 0
        %2725 = vmatprep.subr.bf16.mxu0 0
        %2726 = vmatpush2.bf16.msra.mxu0 0
        %2727 = vmatprep.subr.bf16.mxu0 0
        %2728 = vmatpush2.bf16.msra.mxu0 0
        %2729 = vmatprep.subr.bf16.mxu0 0
        %2730 = vmatpush2.bf16.msra.mxu0 0
        %2731 = vmatprep.subr.bf16.mxu0 0
        %2732 = vmatpush2.bf16.msra.mxu0 0
        %2733 = vmatprep.mubr.bf16.mxu0 0
        %2734 = vmatmul.mubr.bf16.gmra.mxu0 %v2696
        %v2735 = vpop.f32.mrf.mxu0
        %v2736 = vadd.f32 0.0, %v2735
        %v2737 = vpop.f32.mrf.mxu0
        %v2738 = vpop.f32.mrf.mxu0
        %v2739 = vpop.f32.mrf.mxu0
        %2740 = vdwg.mxu0
        %2741 = vrot.lane.b32.xlu0 %v1198, 16
        %v2742 = vpop.permute.xlu0 %2741
        %2743 = vrot.lane.b32.xlu0 %v1200, 16
        %v2744 = vpop.permute.xlu0 %2743
        %v2746 = vsel %vm1202, %v2742, 0
        %v2749 = vsel %vm1202, %v2744, 0
        %2751 = vmatprep.subr.bf16.mxu0 0
        %2752 = vmatpush1.bf16.xpose.msra.mxu0 0
        %2753 = vmatprep.subr.bf16.mxu0 0
        %2754 = vmatpush1.bf16.xpose.msra.mxu0 0
        %2755 = vmatprep.subr.bf16.mxu0 0
        %2756 = vmatpush1.bf16.xpose.msra.mxu0 0
        %2757 = vmatprep.subr.bf16.mxu0 0
        %2758 = vmatpush1.bf16.xpose.msra.mxu0 0
        %2759 = vmatprep.subr.bf16.mxu0 0
        %2760 = vmatpush1.bf16.xpose.msra.mxu0 0
        %2761 = vmatprep.subr.bf16.mxu0 0
        %2762 = vmatpush1.bf16.xpose.msra.mxu0 0
        %2763 = vmatprep.subr.bf16.mxu0 0
        %2764 = vmatpush1.bf16.xpose.msra.mxu0 0
        %2765 = vmatprep.subr.bf16.mxu0 0
        %2766 = vmatpush1.bf16.xpose.msra.mxu0 %v2749
        %2767 = vmatprep.subr.bf16.mxu0 0
        %2768 = vmatpush2.bf16.xpose.msra.mxu0 0
        %2769 = vmatprep.subr.bf16.mxu0 0
        %2770 = vmatpush2.bf16.xpose.msra.mxu0 0
        %2771 = vmatprep.subr.bf16.mxu0 0
        %2772 = vmatpush2.bf16.xpose.msra.mxu0 0
        %2773 = vmatprep.subr.bf16.mxu0 0
        %2774 = vmatpush2.bf16.xpose.msra.mxu0 0
        %2775 = vmatprep.subr.bf16.mxu0 0
        %2776 = vmatpush2.bf16.xpose.msra.mxu0 0
        %2777 = vmatprep.subr.bf16.mxu0 0
        %2778 = vmatpush2.bf16.xpose.msra.mxu0 0
        %2779 = vmatprep.subr.bf16.mxu0 0
        %2780 = vmatpush2.bf16.xpose.msra.mxu0 0
        %2781 = vmatprep.subr.bf16.mxu0 0
        %2782 = vmatpush2.bf16.xpose.msra.mxu0 0
        %2783 = vmatprep.mubr.bf16.mxu0 0
        %2784 = vmatmul.mubr.bf16.gmra.mxu0 %v2746
        %v2785 = vpop.f32.mrf.mxu0
        %v2786 = vadd.f32 0.0, %v2785
        %v2787 = vpop.f32.mrf.mxu0
        %v2788 = vpop.f32.mrf.mxu0
        %v2789 = vpop.f32.mrf.mxu0
        %2790 = vdwg.mxu0
        %2791 = vrot.lane.b32.xlu0 %v1199, 16
        %v2792 = vpop.permute.xlu0 %2791
        %2793 = vrot.lane.b32.xlu0 %v1201, 16
        %v2794 = vpop.permute.xlu0 %2793
        %v2796 = vsel %vm1202, %v2792, 0
        %v2799 = vsel %vm1202, %v2794, 0
        %2801 = vmatprep.subr.bf16.mxu0 0
        %2802 = vmatpush1.bf16.xpose.msra.mxu0 0
        %2803 = vmatprep.subr.bf16.mxu0 0
        %2804 = vmatpush1.bf16.xpose.msra.mxu0 0
        %2805 = vmatprep.subr.bf16.mxu0 0
        %2806 = vmatpush1.bf16.xpose.msra.mxu0 0
        %2807 = vmatprep.subr.bf16.mxu0 0
        %2808 = vmatpush1.bf16.xpose.msra.mxu0 0
        %2809 = vmatprep.subr.bf16.mxu0 0
        %2810 = vmatpush1.bf16.xpose.msra.mxu0 0
        %2811 = vmatprep.subr.bf16.mxu0 0
        %2812 = vmatpush1.bf16.xpose.msra.mxu0 0
        %2813 = vmatprep.subr.bf16.mxu0 0
        %2814 = vmatpush1.bf16.xpose.msra.mxu0 0
        %2815 = vmatprep.subr.bf16.mxu0 0
        %2816 = vmatpush1.bf16.xpose.msra.mxu0 %v2799
        %2817 = vmatprep.subr.bf16.mxu0 0
        %2818 = vmatpush2.bf16.xpose.msra.mxu0 0
        %2819 = vmatprep.subr.bf16.mxu0 0
        %2820 = vmatpush2.bf16.xpose.msra.mxu0 0
        %2821 = vmatprep.subr.bf16.mxu0 0
        %2822 = vmatpush2.bf16.xpose.msra.mxu0 0
        %2823 = vmatprep.subr.bf16.mxu0 0
        %2824 = vmatpush2.bf16.xpose.msra.mxu0 0
        %2825 = vmatprep.subr.bf16.mxu0 0
        %2826 = vmatpush2.bf16.xpose.msra.mxu0 0
        %2827 = vmatprep.subr.bf16.mxu0 0
        %2828 = vmatpush2.bf16.xpose.msra.mxu0 0
        %2829 = vmatprep.subr.bf16.mxu0 0
        %2830 = vmatpush2.bf16.xpose.msra.mxu0 0
        %2831 = vmatprep.subr.bf16.mxu0 0
        %2832 = vmatpush2.bf16.xpose.msra.mxu0 0
        %2833 = vmatprep.mubr.bf16.mxu0 0
        %2834 = vmatmul.mubr.bf16.gmra.mxu0 %v2796
        %v2835 = vpop.f32.mrf.mxu0
        %v2836 = vadd.f32 0.0, %v2835
        %v2837 = vpop.f32.mrf.mxu0
        %v2838 = vpop.f32.mrf.mxu0
        %v2839 = vpop.f32.mrf.mxu0
        %2840 = vdwg.mxu0
        %v2841 = vsel %vm1295, %v2786, -inf
        %2842 = vmax.xlane.f32.xlu0 %v2841
        %v2843 = vpop.xlane.xlu0 %2842
        %v2844 = vsel %vm1295, %v2836, -inf
        %2845 = vmax.xlane.f32.xlu0 %v2844
        %v2846 = vpop.xlane.xlu0 %2845
        %v2847 = vsub.f32 %v2786, %v2843
        %v2848 = vsub.f32 %v2836, %v2846
        %v2849 = vmul.f32 %v2847, 1.442695
        %v2850 = vpow.pop %v2849
        %v2851 = vmul.f32 %v2848, 1.442695
        %v2852 = vpow.pop %v2851
        %v2853 = vsel %vm1295, %v2850, 0.0
        %2854 = vadd.xlane.f32.xlu0 %v2853
        %v2855 = vpop.xlane.xlu0 %2854
        %v2856 = vsel %vm1295, %v2852, 0.0
        %2857 = vadd.xlane.f32.xlu0 %v2856
        %v2858 = vpop.xlane.xlu0 %2857
        %v2859 = vrcp.pop %v2855
        %v2860 = vrcp.pop %v2858
        %v2861 = vmul.f32 %v2850, %v2859
        %v2862 = vmul.f32 %v2852, %v2860
        %v2863 = vpack.c.bf16 %v2861, %v2861
        %v2864 = vpack.c.bf16 %v2862, %v2862
        %2865 = vrot.lane.b32.xlu0 %v1320, 16
        %v2866 = vpop.permute.xlu0 %2865
        %v2868 = vsel %vm1295, %v2863, 0
        %v2871 = vsel %vm1325, %v2866, 0
        %2873 = vmatprep.subr.bf16.mxu0 0
        %2874 = vmatpush1.bf16.msra.mxu0 0
        %2875 = vmatprep.subr.bf16.mxu0 0
        %2876 = vmatpush1.bf16.msra.mxu0 0
        %2877 = vmatprep.subr.bf16.mxu0 0
        %2878 = vmatpush1.bf16.msra.mxu0 0
        %2879 = vmatprep.subr.bf16.mxu0 0
        %2880 = vmatpush1.bf16.msra.mxu0 0
        %2881 = vmatprep.subr.bf16.mxu0 0
        %2882 = vmatpush1.bf16.msra.mxu0 0
        %2883 = vmatprep.subr.bf16.mxu0 0
        %2884 = vmatpush1.bf16.msra.mxu0 0
        %2885 = vmatprep.subr.bf16.mxu0 0
        %2886 = vmatpush1.bf16.msra.mxu0 0
        %2887 = vmatprep.subr.bf16.mxu0 0
        %2888 = vmatpush1.bf16.msra.mxu0 %v2871
        %2889 = vmatprep.subr.bf16.mxu0 0
        %2890 = vmatpush2.bf16.msra.mxu0 0
        %2891 = vmatprep.subr.bf16.mxu0 0
        %2892 = vmatpush2.bf16.msra.mxu0 0
        %2893 = vmatprep.subr.bf16.mxu0 0
        %2894 = vmatpush2.bf16.msra.mxu0 0
        %2895 = vmatprep.subr.bf16.mxu0 0
        %2896 = vmatpush2.bf16.msra.mxu0 0
        %2897 = vmatprep.subr.bf16.mxu0 0
        %2898 = vmatpush2.bf16.msra.mxu0 0
        %2899 = vmatprep.subr.bf16.mxu0 0
        %2900 = vmatpush2.bf16.msra.mxu0 0
        %2901 = vmatprep.subr.bf16.mxu0 0
        %2902 = vmatpush2.bf16.msra.mxu0 0
        %2903 = vmatprep.subr.bf16.mxu0 0
        %2904 = vmatpush2.bf16.msra.mxu0 0
        %2905 = vmatprep.mubr.bf16.mxu0 0
        %2906 = vmatmul.mubr.bf16.gmra.mxu0 %v2868
        %v2907 = vpop.f32.mrf.mxu0
        %v2908 = vadd.f32 0.0, %v2907
        %v2909 = vpop.f32.mrf.mxu0
        %v2910 = vpop.f32.mrf.mxu0
        %v2911 = vpop.f32.mrf.mxu0
        %2912 = vdwg.mxu0
        %2913 = vrot.lane.b32.xlu0 %v1321, 16
        %v2914 = vpop.permute.xlu0 %2913
        %v2916 = vsel %vm1295, %v2864, 0
        %v2919 = vsel %vm1325, %v2914, 0
        %2921 = vmatprep.subr.bf16.mxu0 0
        %2922 = vmatpush1.bf16.msra.mxu0 0
        %2923 = vmatprep.subr.bf16.mxu0 0
        %2924 = vmatpush1.bf16.msra.mxu0 0
        %2925 = vmatprep.subr.bf16.mxu0 0
        %2926 = vmatpush1.bf16.msra.mxu0 0
        %2927 = vmatprep.subr.bf16.mxu0 0
        %2928 = vmatpush1.bf16.msra.mxu0 0
        %2929 = vmatprep.subr.bf16.mxu0 0
        %2930 = vmatpush1.bf16.msra.mxu0 0
        %2931 = vmatprep.subr.bf16.mxu0 0
        %2932 = vmatpush1.bf16.msra.mxu0 0
        %2933 = vmatprep.subr.bf16.mxu0 0
        %2934 = vmatpush1.bf16.msra.mxu0 0
        %2935 = vmatprep.subr.bf16.mxu0 0
        %2936 = vmatpush1.bf16.msra.mxu0 %v2919
        %2937 = vmatprep.subr.bf16.mxu0 0
        %2938 = vmatpush2.bf16.msra.mxu0 0
        %2939 = vmatprep.subr.bf16.mxu0 0
        %2940 = vmatpush2.bf16.msra.mxu0 0
        %2941 = vmatprep.subr.bf16.mxu0 0
        %2942 = vmatpush2.bf16.msra.mxu0 0
        %2943 = vmatprep.subr.bf16.mxu0 0
        %2944 = vmatpush2.bf16.msra.mxu0 0
        %2945 = vmatprep.subr.bf16.mxu0 0
        %2946 = vmatpush2.bf16.msra.mxu0 0
        %2947 = vmatprep.subr.bf16.mxu0 0
        %2948 = vmatpush2.bf16.msra.mxu0 0
        %2949 = vmatprep.subr.bf16.mxu0 0
        %2950 = vmatpush2.bf16.msra.mxu0 0
        %2951 = vmatprep.subr.bf16.mxu0 0
        %2952 = vmatpush2.bf16.msra.mxu0 0
        %2953 = vmatprep.mubr.bf16.mxu0 0
        %2954 = vmatmul.mubr.bf16.gmra.mxu0 %v2916
        %v2955 = vpop.f32.mrf.mxu0
        %v2956 = vadd.f32 0.0, %v2955
        %v2957 = vpop.f32.mrf.mxu0
        %v2958 = vpop.f32.mrf.mxu0
        %v2959 = vpop.f32.mrf.mxu0
        %2960 = vdwg.mxu0
        %2963 = vrot.lane.b32.xlu0 %v1587, 16
        %v2964 = vpop.permute.xlu0 %2963
        %2965 = vrot.lane.b32.xlu0 %v1636, 16
        %v2966 = vpop.permute.xlu0 %2965
        %2971 = vrot.lane.b32.xlu0 %v1808, 32
        %v2972 = vpop.permute.xlu0 %2971
        %2973 = vrot.lane.b32.xlu0 %v1856, 32
        %v2974 = vpop.permute.xlu0 %2973
        %2979 = vrot.lane.b32.xlu0 %v2028, 48
        %v2980 = vpop.permute.xlu0 %2979
        %2981 = vrot.lane.b32.xlu0 %v2076, 48
        %v2982 = vpop.permute.xlu0 %2981
        %2987 = vrot.lane.b32.xlu0 %v2248, 64
        %v2988 = vpop.permute.xlu0 %2987
        %2989 = vrot.lane.b32.xlu0 %v2296, 64
        %v2990 = vpop.permute.xlu0 %2989
        %2995 = vrot.lane.b32.xlu0 %v2468, 80
        %v2996 = vpop.permute.xlu0 %2995
        %2997 = vrot.lane.b32.xlu0 %v2516, 80
        %v2998 = vpop.permute.xlu0 %2997
        %3003 = vrot.lane.b32.xlu0 %v2688, 96
        %v3004 = vpop.permute.xlu0 %3003
        %3005 = vrot.lane.b32.xlu0 %v2736, 96
        %v3006 = vpop.permute.xlu0 %3005
        %3011 = vrot.lane.b32.xlu0 %v2908, 112
        %v3012 = vpop.permute.xlu0 %3011
        %3013 = vrot.lane.b32.xlu0 %v2956, 112
        %v3014 = vpop.permute.xlu0 %3013
        %v3017 = vsel %vm1202, %v1364, %v2964
        %v3018 = vsel %vm1202, %v1410, %v2966
        %vm3019 = vcmask 261120
        %v3020 = vsel %vm3019, %v3017, %v2972
        %v3021 = vsel %vm3019, %v3018, %v2974
        %vm3022 = vcmask 392192
        %v3023 = vsel %vm3022, %v3020, %v2980
        %v3024 = vsel %vm3022, %v3021, %v2982
        %vm3025 = vcmask 523264
        %v3026 = vsel %vm3025, %v3023, %v2988
        %v3027 = vsel %vm3025, %v3024, %v2990
        %vm3028 = vcmask 654336
        %v3029 = vsel %vm3028, %v3026, %v2996
        %v3030 = vsel %vm3028, %v3027, %v2998
        %vm3031 = vcmask 785408
        %v3032 = vsel %vm3031, %v3029, %v3004
        %v3033 = vsel %vm3031, %v3030, %v3006
        %vm3034 = vcmask 916480
        %v3035 = vsel %vm3034, %v3032, %v3012
        %v3036 = vsel %vm3034, %v3033, %v3014
        %v3037 = vpack.c.bf16 %v3036, %v3035
        %v3038 = vld [vmem:[%s768] sm:$0xf]
        %v3039 = vld [vmem:[%s768 + $0x4] sm:$0xf]
        %v3040 = vld [vmem:[%s768 + $0x8] sm:$0xf]
        %v3041 = vld [vmem:[%s768 + $0xc] sm:$0xf]
        %v3042 = vld [vmem:[%s768 + $0x10] sm:$0xf]
        %v3043 = vld [vmem:[%s768 + $0x14] sm:$0xf]
        %v3044 = vld [vmem:[%s768 + $0x18] sm:$0xf]
        %v3045 = vld [vmem:[%s768 + $0x1c] sm:$0xf]
        %v3046 = vld [vmem:[%s768 + $0x20] sm:$0xf]
        %v3047 = vld [vmem:[%s768 + $0x24] sm:$0xf]
        %v3048 = vld [vmem:[%s768 + $0x28] sm:$0xf]
        %v3049 = vld [vmem:[%s768 + $0x2c] sm:$0xf]
        %v3050 = vld [vmem:[%s768 + $0x30] sm:$0xf]
        %v3051 = vld [vmem:[%s768 + $0x34] sm:$0xf]
        %v3052 = vld [vmem:[%s768 + $0x38] sm:$0xf]
        %v3053 = vld [vmem:[%s768 + $0x3c] sm:$0xf]
        %v3054 = vld [vmem:[%s771] sm:$0x1]
        %v3056 = vlaneseq
        %v3057 = vshrl.u32 %v3056, 7
        %v3058 = vsub.s32 0, %v3057
        %v3059 = vrot.slane %v3054, %v3058
        %v3077 = vunpack.c.l.b16 %v3038
        %v3078 = vunpack.c.l.b16 %v3039
        %v3079 = vunpack.c.l.b16 %v3040
        %v3080 = vunpack.c.l.b16 %v3041
        %v3081 = vunpack.c.l.b16 %v3042
        %v3082 = vunpack.c.l.b16 %v3043
        %v3083 = vunpack.c.l.b16 %v3044
        %v3084 = vunpack.c.l.b16 %v3045
        %v3085 = vunpack.c.l.b16 %v3046
        %v3086 = vunpack.c.l.b16 %v3047
        %v3087 = vunpack.c.l.b16 %v3048
        %v3088 = vunpack.c.l.b16 %v3049
        %v3089 = vunpack.c.l.b16 %v3050
        %v3090 = vunpack.c.l.b16 %v3051
        %v3091 = vunpack.c.l.b16 %v3052
        %v3092 = vunpack.c.l.b16 %v3053
        %v3093 = vpack.c.b16 %v3078, %v3077
        %v3094 = vpack.c.b16 %v3080, %v3079
        %v3095 = vpack.c.b16 %v3082, %v3081
        %v3096 = vpack.c.b16 %v3084, %v3083
        %v3097 = vpack.c.b16 %v3086, %v3085
        %v3098 = vpack.c.b16 %v3088, %v3087
        %v3099 = vpack.c.b16 %v3090, %v3089
        %v3100 = vpack.c.b16 %v3092, %v3091
        %3109 = vmatprep.subr.bf16.mxu0 0
        %3110 = vmatpush1.bf16.msra.mxu0 %v3100
        %3111 = vmatprep.subr.bf16.mxu0 0
        %3112 = vmatpush1.bf16.msra.mxu0 %v3099
        %3113 = vmatprep.subr.bf16.mxu0 0
        %3114 = vmatpush1.bf16.msra.mxu0 %v3098
        %3115 = vmatprep.subr.bf16.mxu0 0
        %3116 = vmatpush1.bf16.msra.mxu0 %v3097
        %3117 = vmatprep.subr.bf16.mxu0 0
        %3118 = vmatpush1.bf16.msra.mxu0 %v3096
        %3119 = vmatprep.subr.bf16.mxu0 0
        %3120 = vmatpush1.bf16.msra.mxu0 %v3095
        %3121 = vmatprep.subr.bf16.mxu0 0
        %3122 = vmatpush1.bf16.msra.mxu0 %v3094
        %3123 = vmatprep.subr.bf16.mxu0 0
        %3124 = vmatpush1.bf16.msra.mxu0 %v3093
        %3125 = vmatprep.subr.bf16.mxu0 0
        %3126 = vmatpush2.bf16.msra.mxu0 0
        %3127 = vmatprep.subr.bf16.mxu0 0
        %3128 = vmatpush2.bf16.msra.mxu0 0
        %3129 = vmatprep.subr.bf16.mxu0 0
        %3130 = vmatpush2.bf16.msra.mxu0 0
        %3131 = vmatprep.subr.bf16.mxu0 0
        %3132 = vmatpush2.bf16.msra.mxu0 0
        %3133 = vmatprep.subr.bf16.mxu0 0
        %3134 = vmatpush2.bf16.msra.mxu0 0
        %3135 = vmatprep.subr.bf16.mxu0 0
        %3136 = vmatpush2.bf16.msra.mxu0 0
        %3137 = vmatprep.subr.bf16.mxu0 0
        %3138 = vmatpush2.bf16.msra.mxu0 0
        %3139 = vmatprep.subr.bf16.mxu0 0
        %3140 = vmatpush2.bf16.msra.mxu0 0
        %3141 = vmatprep.mubr.bf16.mxu0 0
        %3142 = vmatmul.mubr.bf16.gmra.mxu0 %v3037
        %v3143 = vpop.f32.mrf.mxu0
        %v3144 = vadd.f32 %v3059, %v3143
        %v3145 = vpop.f32.mrf.mxu0
        %v3146 = vpop.f32.mrf.mxu0
        %v3147 = vadd.f32 %v3059, %v3146
        %v3148 = vpop.f32.mrf.mxu0
        %3149 = vdwg.mxu0
        %v3150 = vadd.f32 %v891, %v3144
        %v3151 = vadd.f32 %v892, %v3147
        %v3152 = vld [vmem:[%s774] sm:$0x1]
        %v3153 = vld [vmem:[%s777] sm:$0x1]
        %3154 = vadd.xlane.f32.xlu0 %v3150
        %v3155 = vpop.xlane.xlu0 %3154
        %3156 = vadd.xlane.f32.xlu0 %v3151
        %v3157 = vpop.xlane.xlu0 %3156
        %v3158 = vmul.f32 %v3155, %v899
        %v3159 = vmul.f32 %v3157, %v899
        %v3160 = vsub.f32 %v3150, %v3158
        %v3161 = vsub.f32 %v3151, %v3159
        %v3162 = vmul.f32 %v3160, %v3160
        %v3163 = vmul.f32 %v3161, %v3161
        %3164 = vadd.xlane.f32.xlu0 %v3162
        %v3165 = vpop.xlane.xlu0 %3164
        %3166 = vadd.xlane.f32.xlu0 %v3163
        %v3167 = vpop.xlane.xlu0 %3166
        %v3168 = vmul.f32 %v3165, %v899
        %v3169 = vmul.f32 %v3167, %v899
        %v3170 = vadd.f32 %v3168, 1e-05
        %v3171 = vadd.f32 %v3169, 1e-05
        %v3172 = vrsqrt.pop %v3170
        %v3173 = vrsqrt.pop %v3171
        %v3174 = vmul.f32 %v3160, %v3172
        %v3175 = vmul.f32 %v3161, %v3173
        %v3177 = vlaneseq
        %v3178 = vshrl.u32 %v3177, 7
        %v3179 = vsub.s32 0, %v3178
        %v3180 = vrot.slane %v3152, %v3179
        %v3182 = vmul.f32 %v3174, %v3180
        %v3183 = vmul.f32 %v3175, %v3180
        %v3185 = vlaneseq
        %v3186 = vshrl.u32 %v3185, 7
        %v3187 = vsub.s32 0, %v3186
        %v3188 = vrot.slane %v3153, %v3187
        %v3190 = vadd.f32 %v3182, %v3188
        %v3191 = vadd.f32 %v3183, %v3188
        %v3192 = vpack.c.bf16 %v3191, %v3190
        %v3193 = vld [vmem:[%s645] sm:$0xff]
        %v3194 = vld [vmem:[%s645 + $0x8] sm:$0xff]
        %v3195 = vld [vmem:[%s645 + $0x10] sm:$0xff]
        %v3196 = vld [vmem:[%s645 + $0x18] sm:$0xff]
        %v3197 = vld [vmem:[%s645 + $0x20] sm:$0xff]
        %v3198 = vld [vmem:[%s645 + $0x28] sm:$0xff]
        %v3199 = vld [vmem:[%s645 + $0x30] sm:$0xff]
        %v3200 = vld [vmem:[%s645 + $0x38] sm:$0xff]
        %v3201 = vld [vmem:[%s645 + $0x40] sm:$0xff]
        %v3202 = vld [vmem:[%s645 + $0x48] sm:$0xff]
        %v3203 = vld [vmem:[%s645 + $0x50] sm:$0xff]
        %v3204 = vld [vmem:[%s645 + $0x58] sm:$0xff]
        %v3205 = vld [vmem:[%s645 + $0x60] sm:$0xff]
        %v3206 = vld [vmem:[%s645 + $0x68] sm:$0xff]
        %v3207 = vld [vmem:[%s645 + $0x70] sm:$0xff]
        %v3208 = vld [vmem:[%s645 + $0x78] sm:$0xff]
        %v3209 = vld [vmem:[%s645 + $0x80] sm:$0xff]
        %v3210 = vld [vmem:[%s645 + $0x88] sm:$0xff]
        %v3211 = vld [vmem:[%s645 + $0x90] sm:$0xff]
        %v3212 = vld [vmem:[%s645 + $0x98] sm:$0xff]
        %v3213 = vld [vmem:[%s645 + $0xa0] sm:$0xff]
        %v3214 = vld [vmem:[%s645 + $0xa8] sm:$0xff]
        %v3215 = vld [vmem:[%s645 + $0xb0] sm:$0xff]
        %v3216 = vld [vmem:[%s645 + $0xb8] sm:$0xff]
        %v3217 = vld [vmem:[%s645 + $0xc0] sm:$0xff]
        %v3218 = vld [vmem:[%s645 + $0xc8] sm:$0xff]
        %v3219 = vld [vmem:[%s645 + $0xd0] sm:$0xff]
        %v3220 = vld [vmem:[%s645 + $0xd8] sm:$0xff]
        %v3221 = vld [vmem:[%s645 + $0xe0] sm:$0xff]
        %v3222 = vld [vmem:[%s645 + $0xe8] sm:$0xff]
        %v3223 = vld [vmem:[%s645 + $0xf0] sm:$0xff]
        %v3224 = vld [vmem:[%s645 + $0xf8] sm:$0xff]
        %v3225 = vld [vmem:[%s781] sm:$0xf]
        %v3227 = vlaneseq
        %v3228 = vshrl.u32 %v3227, 7
        %v3229 = vsub.s32 0, %v3228
        %v3230 = vrot.slane %v3225, %v3229
        %v3231 = vlaneseq
        %v3232 = vshrl.u32 %v3231, 7
        %v3233 = vsub.s32 1, %v3232
        %v3234 = vrot.slane %v3225, %v3233
        %v3235 = vlaneseq
        %v3236 = vshrl.u32 %v3235, 7
        %v3237 = vsub.s32 2, %v3236
        %v3238 = vrot.slane %v3225, %v3237
        %v3239 = vlaneseq
        %v3240 = vshrl.u32 %v3239, 7
        %v3241 = vsub.s32 3, %v3240
        %v3242 = vrot.slane %v3225, %v3241
        %v3279 = vunpack.c.l.b16 %v3193
        %v3280 = vunpack.c.h.b16 %v3193
        %v3281 = vunpack.c.l.b16 %v3194
        %v3282 = vunpack.c.h.b16 %v3194
        %v3283 = vunpack.c.l.b16 %v3195
        %v3284 = vunpack.c.h.b16 %v3195
        %v3285 = vunpack.c.l.b16 %v3196
        %v3286 = vunpack.c.h.b16 %v3196
        %v3287 = vunpack.c.l.b16 %v3197
        %v3288 = vunpack.c.h.b16 %v3197
        %v3289 = vunpack.c.l.b16 %v3198
        %v3290 = vunpack.c.h.b16 %v3198
        %v3291 = vunpack.c.l.b16 %v3199
        %v3292 = vunpack.c.h.b16 %v3199
        %v3293 = vunpack.c.l.b16 %v3200
        %v3294 = vunpack.c.h.b16 %v3200
        %v3295 = vunpack.c.l.b16 %v3201
        %v3296 = vunpack.c.h.b16 %v3201
        %v3297 = vunpack.c.l.b16 %v3202
        %v3298 = vunpack.c.h.b16 %v3202
        %v3299 = vunpack.c.l.b16 %v3203
        %v3300 = vunpack.c.h.b16 %v3203
        %v3301 = vunpack.c.l.b16 %v3204
        %v3302 = vunpack.c.h.b16 %v3204
        %v3303 = vunpack.c.l.b16 %v3205
        %v3304 = vunpack.c.h.b16 %v3205
        %v3305 = vunpack.c.l.b16 %v3206
        %v3306 = vunpack.c.h.b16 %v3206
        %v3307 = vunpack.c.l.b16 %v3207
        %v3308 = vunpack.c.h.b16 %v3207
        %v3309 = vunpack.c.l.b16 %v3208
        %v3310 = vunpack.c.h.b16 %v3208
        %v3311 = vunpack.c.l.b16 %v3209
        %v3312 = vunpack.c.h.b16 %v3209
        %v3313 = vunpack.c.l.b16 %v3210
        %v3314 = vunpack.c.h.b16 %v3210
        %v3315 = vunpack.c.l.b16 %v3211
        %v3316 = vunpack.c.h.b16 %v3211
        %v3317 = vunpack.c.l.b16 %v3212
        %v3318 = vunpack.c.h.b16 %v3212
        %v3319 = vunpack.c.l.b16 %v3213
        %v3320 = vunpack.c.h.b16 %v3213
        %v3321 = vunpack.c.l.b16 %v3214
        %v3322 = vunpack.c.h.b16 %v3214
        %v3323 = vunpack.c.l.b16 %v3215
        %v3324 = vunpack.c.h.b16 %v3215
        %v3325 = vunpack.c.l.b16 %v3216
        %v3326 = vunpack.c.h.b16 %v3216
        %v3327 = vunpack.c.l.b16 %v3217
        %v3328 = vunpack.c.h.b16 %v3217
        %v3329 = vunpack.c.l.b16 %v3218
        %v3330 = vunpack.c.h.b16 %v3218
        %v3331 = vunpack.c.l.b16 %v3219
        %v3332 = vunpack.c.h.b16 %v3219
        %v3333 = vunpack.c.l.b16 %v3220
        %v3334 = vunpack.c.h.b16 %v3220
        %v3335 = vunpack.c.l.b16 %v3221
        %v3336 = vunpack.c.h.b16 %v3221
        %v3337 = vunpack.c.l.b16 %v3222
        %v3338 = vunpack.c.h.b16 %v3222
        %v3339 = vunpack.c.l.b16 %v3223
        %v3340 = vunpack.c.h.b16 %v3223
        %v3341 = vunpack.c.l.b16 %v3224
        %v3342 = vunpack.c.h.b16 %v3224
        %v3343 = vpack.c.b16 %v3283, %v3279
        %v3344 = vpack.c.b16 %v3284, %v3280
        %v3345 = vpack.c.b16 %v3285, %v3281
        %v3346 = vpack.c.b16 %v3286, %v3282
        %v3347 = vpack.c.b16 %v3291, %v3287
        %v3348 = vpack.c.b16 %v3292, %v3288
        %v3349 = vpack.c.b16 %v3293, %v3289
        %v3350 = vpack.c.b16 %v3294, %v3290
        %v3351 = vpack.c.b16 %v3299, %v3295
        %v3352 = vpack.c.b16 %v3300, %v3296
        %v3353 = vpack.c.b16 %v3301, %v3297
        %v3354 = vpack.c.b16 %v3302, %v3298
        %v3355 = vpack.c.b16 %v3307, %v3303
        %v3356 = vpack.c.b16 %v3308, %v3304
        %v3357 = vpack.c.b16 %v3309, %v3305
        %v3358 = vpack.c.b16 %v3310, %v3306
        %v3359 = vpack.c.b16 %v3315, %v3311
        %v3360 = vpack.c.b16 %v3316, %v3312
        %v3361 = vpack.c.b16 %v3317, %v3313
        %v3362 = vpack.c.b16 %v3318, %v3314
        %v3363 = vpack.c.b16 %v3323, %v3319
        %v3364 = vpack.c.b16 %v3324, %v3320
        %v3365 = vpack.c.b16 %v3325, %v3321
        %v3366 = vpack.c.b16 %v3326, %v3322
        %v3367 = vpack.c.b16 %v3331, %v3327
        %v3368 = vpack.c.b16 %v3332, %v3328
        %v3369 = vpack.c.b16 %v3333, %v3329
        %v3370 = vpack.c.b16 %v3334, %v3330
        %v3371 = vpack.c.b16 %v3339, %v3335
        %v3372 = vpack.c.b16 %v3340, %v3336
        %v3373 = vpack.c.b16 %v3341, %v3337
        %v3374 = vpack.c.b16 %v3342, %v3338
        %3407 = vmatprep.subr.bf16.mxu0 %v3372
        %3408 = vmatpush1.bf16.msra.mxu0 %v3371
        %3409 = vmatprep.subr.bf16.mxu0 %v3368
        %3410 = vmatpush1.bf16.msra.mxu0 %v3367
        %3411 = vmatprep.subr.bf16.mxu0 %v3364
        %3412 = vmatpush1.bf16.msra.mxu0 %v3363
        %3413 = vmatprep.subr.bf16.mxu0 %v3360
        %3414 = vmatpush1.bf16.msra.mxu0 %v3359
        %3415 = vmatprep.subr.bf16.mxu0 %v3356
        %3416 = vmatpush1.bf16.msra.mxu0 %v3355
        %3417 = vmatprep.subr.bf16.mxu0 %v3352
        %3418 = vmatpush1.bf16.msra.mxu0 %v3351
        %3419 = vmatprep.subr.bf16.mxu0 %v3348
        %3420 = vmatpush1.bf16.msra.mxu0 %v3347
        %3421 = vmatprep.subr.bf16.mxu0 %v3344
        %3422 = vmatpush1.bf16.msra.mxu0 %v3343
        %3423 = vmatprep.subr.bf16.mxu0 0
        %3424 = vmatpush2.bf16.msra.mxu0 0
        %3425 = vmatprep.subr.bf16.mxu0 0
        %3426 = vmatpush2.bf16.msra.mxu0 0
        %3427 = vmatprep.subr.bf16.mxu0 0
        %3428 = vmatpush2.bf16.msra.mxu0 0
        %3429 = vmatprep.subr.bf16.mxu0 0
        %3430 = vmatpush2.bf16.msra.mxu0 0
        %3431 = vmatprep.subr.bf16.mxu0 0
        %3432 = vmatpush2.bf16.msra.mxu0 0
        %3433 = vmatprep.subr.bf16.mxu0 0
        %3434 = vmatpush2.bf16.msra.mxu0 0
        %3435 = vmatprep.subr.bf16.mxu0 0
        %3436 = vmatpush2.bf16.msra.mxu0 0
        %3437 = vmatprep.subr.bf16.mxu0 0
        %3438 = vmatpush2.bf16.msra.mxu0 0
        %3439 = vmatprep.mubr.bf16.mxu0 0
        %3440 = vmatmul.mubr.bf16.gmra.mxu0 %v3192
        %v3441 = vpop.f32.mrf.mxu0
        %v3442 = vadd.f32 %v3230, %v3441
        %v3443 = vpop.f32.mrf.mxu0
        %v3444 = vadd.f32 %v3234, %v3443
        %v3445 = vpop.f32.mrf.mxu0
        %v3446 = vadd.f32 %v3230, %v3445
        %v3447 = vpop.f32.mrf.mxu0
        %v3448 = vadd.f32 %v3234, %v3447
        %3449 = vdwg.mxu0
        %3450 = vmatprep.subr.bf16.mxu0 %v3374
        %3451 = vmatpush1.bf16.msra.mxu0 %v3373
        %3452 = vmatprep.subr.bf16.mxu0 %v3370
        %3453 = vmatpush1.bf16.msra.mxu0 %v3369
        %3454 = vmatprep.subr.bf16.mxu0 %v3366
        %3455 = vmatpush1.bf16.msra.mxu0 %v3365
        %3456 = vmatprep.subr.bf16.mxu0 %v3362
        %3457 = vmatpush1.bf16.msra.mxu0 %v3361
        %3458 = vmatprep.subr.bf16.mxu0 %v3358
        %3459 = vmatpush1.bf16.msra.mxu0 %v3357
        %3460 = vmatprep.subr.bf16.mxu0 %v3354
        %3461 = vmatpush1.bf16.msra.mxu0 %v3353
        %3462 = vmatprep.subr.bf16.mxu0 %v3350
        %3463 = vmatpush1.bf16.msra.mxu0 %v3349
        %3464 = vmatprep.subr.bf16.mxu0 %v3346
        %3465 = vmatpush1.bf16.msra.mxu0 %v3345
        %3466 = vmatprep.subr.bf16.mxu0 0
        %3467 = vmatpush2.bf16.msra.mxu0 0
        %3468 = vmatprep.subr.bf16.mxu0 0
        %3469 = vmatpush2.bf16.msra.mxu0 0
        %3470 = vmatprep.subr.bf16.mxu0 0
        %3471 = vmatpush2.bf16.msra.mxu0 0
        %3472 = vmatprep.subr.bf16.mxu0 0
        %3473 = vmatpush2.bf16.msra.mxu0 0
        %3474 = vmatprep.subr.bf16.mxu0 0
        %3475 = vmatpush2.bf16.msra.mxu0 0
        %3476 = vmatprep.subr.bf16.mxu0 0
        %3477 = vmatpush2.bf16.msra.mxu0 0
        %3478 = vmatprep.subr.bf16.mxu0 0
        %3479 = vmatpush2.bf16.msra.mxu0 0
        %3480 = vmatprep.subr.bf16.mxu0 0
        %3481 = vmatpush2.bf16.msra.mxu0 0
        %3482 = vmatprep.mubr.bf16.mxu0 0
        %3483 = vmatmul.mubr.bf16.gmra.mxu0 %v3192
        %v3484 = vpop.f32.mrf.mxu0
        %v3485 = vadd.f32 %v3238, %v3484
        %v3486 = vpop.f32.mrf.mxu0
        %v3487 = vadd.f32 %v3242, %v3486
        %v3488 = vpop.f32.mrf.mxu0
        %v3489 = vadd.f32 %v3238, %v3488
        %v3490 = vpop.f32.mrf.mxu0
        %v3491 = vadd.f32 %v3242, %v3490
        %3492 = vdwg.mxu0
        %v3493 = vmax.f32 %v3442, 0.0
        %v3494 = vmax.f32 %v3444, 0.0
        %v3495 = vmax.f32 %v3485, 0.0
        %v3496 = vmax.f32 %v3487, 0.0
        %v3497 = vmax.f32 %v3446, 0.0
        %v3498 = vmax.f32 %v3448, 0.0
        %v3499 = vmax.f32 %v3489, 0.0
        %v3500 = vmax.f32 %v3491, 0.0
        %v3501 = vpack.c.bf16 %v3497, %v3493
        %v3502 = vpack.c.bf16 %v3498, %v3494
        %v3503 = vpack.c.bf16 %v3499, %v3495
        %v3504 = vpack.c.bf16 %v3500, %v3496
        %v3505 = vld [vmem:[%s654] sm:$0xf]
        %v3506 = vld [vmem:[%s654 + $0x4] sm:$0xf]
        %v3507 = vld [vmem:[%s654 + $0x8] sm:$0xf]
        %v3508 = vld [vmem:[%s654 + $0xc] sm:$0xf]
        %v3509 = vld [vmem:[%s654 + $0x10] sm:$0xf]
        %v3510 = vld [vmem:[%s654 + $0x14] sm:$0xf]
        %v3511 = vld [vmem:[%s654 + $0x18] sm:$0xf]
        %v3512 = vld [vmem:[%s654 + $0x1c] sm:$0xf]
        %v3513 = vld [vmem:[%s654 + $0x20] sm:$0xf]
        %v3514 = vld [vmem:[%s654 + $0x24] sm:$0xf]
        %v3515 = vld [vmem:[%s654 + $0x28] sm:$0xf]
        %v3516 = vld [vmem:[%s654 + $0x2c] sm:$0xf]
        %v3517 = vld [vmem:[%s654 + $0x30] sm:$0xf]
        %v3518 = vld [vmem:[%s654 + $0x34] sm:$0xf]
        %v3519 = vld [vmem:[%s654 + $0x38] sm:$0xf]
        %v3520 = vld [vmem:[%s654 + $0x3c] sm:$0xf]
        %v3521 = vld [vmem:[%s654 + $0x40] sm:$0xf]
        %v3522 = vld [vmem:[%s654 + $0x44] sm:$0xf]
        %v3523 = vld [vmem:[%s654 + $0x48] sm:$0xf]
        %v3524 = vld [vmem:[%s654 + $0x4c] sm:$0xf]
        %v3525 = vld [vmem:[%s654 + $0x50] sm:$0xf]
        %v3526 = vld [vmem:[%s654 + $0x54] sm:$0xf]
        %v3527 = vld [vmem:[%s654 + $0x58] sm:$0xf]
        %v3528 = vld [vmem:[%s654 + $0x5c] sm:$0xf]
        %v3529 = vld [vmem:[%s654 + $0x60] sm:$0xf]
        %v3530 = vld [vmem:[%s654 + $0x64] sm:$0xf]
        %v3531 = vld [vmem:[%s654 + $0x68] sm:$0xf]
        %v3532 = vld [vmem:[%s654 + $0x6c] sm:$0xf]
        %v3533 = vld [vmem:[%s654 + $0x70] sm:$0xf]
        %v3534 = vld [vmem:[%s654 + $0x74] sm:$0xf]
        %v3535 = vld [vmem:[%s654 + $0x78] sm:$0xf]
        %v3536 = vld [vmem:[%s654 + $0x7c] sm:$0xf]
        %v3537 = vld [vmem:[%s654 + $0x80] sm:$0xf]
        %v3538 = vld [vmem:[%s654 + $0x84] sm:$0xf]
        %v3539 = vld [vmem:[%s654 + $0x88] sm:$0xf]
        %v3540 = vld [vmem:[%s654 + $0x8c] sm:$0xf]
        %v3541 = vld [vmem:[%s654 + $0x90] sm:$0xf]
        %v3542 = vld [vmem:[%s654 + $0x94] sm:$0xf]
        %v3543 = vld [vmem:[%s654 + $0x98] sm:$0xf]
        %v3544 = vld [vmem:[%s654 + $0x9c] sm:$0xf]
        %v3545 = vld [vmem:[%s654 + $0xa0] sm:$0xf]
        %v3546 = vld [vmem:[%s654 + $0xa4] sm:$0xf]
        %v3547 = vld [vmem:[%s654 + $0xa8] sm:$0xf]
        %v3548 = vld [vmem:[%s654 + $0xac] sm:$0xf]
        %v3549 = vld [vmem:[%s654 + $0xb0] sm:$0xf]
        %v3550 = vld [vmem:[%s654 + $0xb4] sm:$0xf]
        %v3551 = vld [vmem:[%s654 + $0xb8] sm:$0xf]
        %v3552 = vld [vmem:[%s654 + $0xbc] sm:$0xf]
        %v3553 = vld [vmem:[%s654 + $0xc0] sm:$0xf]
        %v3554 = vld [vmem:[%s654 + $0xc4] sm:$0xf]
        %v3555 = vld [vmem:[%s654 + $0xc8] sm:$0xf]
        %v3556 = vld [vmem:[%s654 + $0xcc] sm:$0xf]
        %v3557 = vld [vmem:[%s654 + $0xd0] sm:$0xf]
        %v3558 = vld [vmem:[%s654 + $0xd4] sm:$0xf]
        %v3559 = vld [vmem:[%s654 + $0xd8] sm:$0xf]
        %v3560 = vld [vmem:[%s654 + $0xdc] sm:$0xf]
        %v3561 = vld [vmem:[%s654 + $0xe0] sm:$0xf]
        %v3562 = vld [vmem:[%s654 + $0xe4] sm:$0xf]
        %v3563 = vld [vmem:[%s654 + $0xe8] sm:$0xf]
        %v3564 = vld [vmem:[%s654 + $0xec] sm:$0xf]
        %v3565 = vld [vmem:[%s654 + $0xf0] sm:$0xf]
        %v3566 = vld [vmem:[%s654 + $0xf4] sm:$0xf]
        %v3567 = vld [vmem:[%s654 + $0xf8] sm:$0xf]
        %v3568 = vld [vmem:[%s654 + $0xfc] sm:$0xf]
        %v3569 = vld [vmem:[%s784] sm:$0x1]
        %v3571 = vlaneseq
        %v3572 = vshrl.u32 %v3571, 7
        %v3573 = vsub.s32 0, %v3572
        %v3574 = vrot.slane %v3569, %v3573
        %v3640 = vunpack.c.l.b16 %v3505
        %v3641 = vunpack.c.l.b16 %v3506
        %v3642 = vunpack.c.l.b16 %v3507
        %v3643 = vunpack.c.l.b16 %v3508
        %v3644 = vunpack.c.l.b16 %v3509
        %v3645 = vunpack.c.l.b16 %v3510
        %v3646 = vunpack.c.l.b16 %v3511
        %v3647 = vunpack.c.l.b16 %v3512
        %v3648 = vunpack.c.l.b16 %v3513
        %v3649 = vunpack.c.l.b16 %v3514
        %v3650 = vunpack.c.l.b16 %v3515
        %v3651 = vunpack.c.l.b16 %v3516
        %v3652 = vunpack.c.l.b16 %v3517
        %v3653 = vunpack.c.l.b16 %v3518
        %v3654 = vunpack.c.l.b16 %v3519
        %v3655 = vunpack.c.l.b16 %v3520
        %v3656 = vunpack.c.l.b16 %v3521
        %v3657 = vunpack.c.l.b16 %v3522
        %v3658 = vunpack.c.l.b16 %v3523
        %v3659 = vunpack.c.l.b16 %v3524
        %v3660 = vunpack.c.l.b16 %v3525
        %v3661 = vunpack.c.l.b16 %v3526
        %v3662 = vunpack.c.l.b16 %v3527
        %v3663 = vunpack.c.l.b16 %v3528
        %v3664 = vunpack.c.l.b16 %v3529
        %v3665 = vunpack.c.l.b16 %v3530
        %v3666 = vunpack.c.l.b16 %v3531
        %v3667 = vunpack.c.l.b16 %v3532
        %v3668 = vunpack.c.l.b16 %v3533
        %v3669 = vunpack.c.l.b16 %v3534
        %v3670 = vunpack.c.l.b16 %v3535
        %v3671 = vunpack.c.l.b16 %v3536
        %v3672 = vunpack.c.l.b16 %v3537
        %v3673 = vunpack.c.l.b16 %v3538
        %v3674 = vunpack.c.l.b16 %v3539
        %v3675 = vunpack.c.l.b16 %v3540
        %v3676 = vunpack.c.l.b16 %v3541
        %v3677 = vunpack.c.l.b16 %v3542
        %v3678 = vunpack.c.l.b16 %v3543
        %v3679 = vunpack.c.l.b16 %v3544
        %v3680 = vunpack.c.l.b16 %v3545
        %v3681 = vunpack.c.l.b16 %v3546
        %v3682 = vunpack.c.l.b16 %v3547
        %v3683 = vunpack.c.l.b16 %v3548
        %v3684 = vunpack.c.l.b16 %v3549
        %v3685 = vunpack.c.l.b16 %v3550
        %v3686 = vunpack.c.l.b16 %v3551
        %v3687 = vunpack.c.l.b16 %v3552
        %v3688 = vunpack.c.l.b16 %v3553
        %v3689 = vunpack.c.l.b16 %v3554
        %v3690 = vunpack.c.l.b16 %v3555
        %v3691 = vunpack.c.l.b16 %v3556
        %v3692 = vunpack.c.l.b16 %v3557
        %v3693 = vunpack.c.l.b16 %v3558
        %v3694 = vunpack.c.l.b16 %v3559
        %v3695 = vunpack.c.l.b16 %v3560
        %v3696 = vunpack.c.l.b16 %v3561
        %v3697 = vunpack.c.l.b16 %v3562
        %v3698 = vunpack.c.l.b16 %v3563
        %v3699 = vunpack.c.l.b16 %v3564
        %v3700 = vunpack.c.l.b16 %v3565
        %v3701 = vunpack.c.l.b16 %v3566
        %v3702 = vunpack.c.l.b16 %v3567
        %v3703 = vunpack.c.l.b16 %v3568
        %v3704 = vpack.c.b16 %v3641, %v3640
        %v3705 = vpack.c.b16 %v3643, %v3642
        %v3706 = vpack.c.b16 %v3645, %v3644
        %v3707 = vpack.c.b16 %v3647, %v3646
        %v3708 = vpack.c.b16 %v3649, %v3648
        %v3709 = vpack.c.b16 %v3651, %v3650
        %v3710 = vpack.c.b16 %v3653, %v3652
        %v3711 = vpack.c.b16 %v3655, %v3654
        %v3712 = vpack.c.b16 %v3657, %v3656
        %v3713 = vpack.c.b16 %v3659, %v3658
        %v3714 = vpack.c.b16 %v3661, %v3660
        %v3715 = vpack.c.b16 %v3663, %v3662
        %v3716 = vpack.c.b16 %v3665, %v3664
        %v3717 = vpack.c.b16 %v3667, %v3666
        %v3718 = vpack.c.b16 %v3669, %v3668
        %v3719 = vpack.c.b16 %v3671, %v3670
        %v3720 = vpack.c.b16 %v3673, %v3672
        %v3721 = vpack.c.b16 %v3675, %v3674
        %v3722 = vpack.c.b16 %v3677, %v3676
        %v3723 = vpack.c.b16 %v3679, %v3678
        %v3724 = vpack.c.b16 %v3681, %v3680
        %v3725 = vpack.c.b16 %v3683, %v3682
        %v3726 = vpack.c.b16 %v3685, %v3684
        %v3727 = vpack.c.b16 %v3687, %v3686
        %v3728 = vpack.c.b16 %v3689, %v3688
        %v3729 = vpack.c.b16 %v3691, %v3690
        %v3730 = vpack.c.b16 %v3693, %v3692
        %v3731 = vpack.c.b16 %v3695, %v3694
        %v3732 = vpack.c.b16 %v3697, %v3696
        %v3733 = vpack.c.b16 %v3699, %v3698
        %v3734 = vpack.c.b16 %v3701, %v3700
        %v3735 = vpack.c.b16 %v3703, %v3702
        %3768 = vmatprep.subr.bf16.mxu0 0
        %3769 = vmatpush1.bf16.msra.mxu0 %v3711
        %3770 = vmatprep.subr.bf16.mxu0 0
        %3771 = vmatpush1.bf16.msra.mxu0 %v3710
        %3772 = vmatprep.subr.bf16.mxu0 0
        %3773 = vmatpush1.bf16.msra.mxu0 %v3709
        %3774 = vmatprep.subr.bf16.mxu0 0
        %3775 = vmatpush1.bf16.msra.mxu0 %v3708
        %3776 = vmatprep.subr.bf16.mxu0 0
        %3777 = vmatpush1.bf16.msra.mxu0 %v3707
        %3778 = vmatprep.subr.bf16.mxu0 0
        %3779 = vmatpush1.bf16.msra.mxu0 %v3706
        %3780 = vmatprep.subr.bf16.mxu0 0
        %3781 = vmatpush1.bf16.msra.mxu0 %v3705
        %3782 = vmatprep.subr.bf16.mxu0 0
        %3783 = vmatpush1.bf16.msra.mxu0 %v3704
        %3784 = vmatprep.subr.bf16.mxu0 0
        %3785 = vmatpush2.bf16.msra.mxu0 %v3719
        %3786 = vmatprep.subr.bf16.mxu0 0
        %3787 = vmatpush2.bf16.msra.mxu0 %v3718
        %3788 = vmatprep.subr.bf16.mxu0 0
        %3789 = vmatpush2.bf16.msra.mxu0 %v3717
        %3790 = vmatprep.subr.bf16.mxu0 0
        %3791 = vmatpush2.bf16.msra.mxu0 %v3716
        %3792 = vmatprep.subr.bf16.mxu0 0
        %3793 = vmatpush2.bf16.msra.mxu0 %v3715
        %3794 = vmatprep.subr.bf16.mxu0 0
        %3795 = vmatpush2.bf16.msra.mxu0 %v3714
        %3796 = vmatprep.subr.bf16.mxu0 0
        %3797 = vmatpush2.bf16.msra.mxu0 %v3713
        %3798 = vmatprep.subr.bf16.mxu0 0
        %3799 = vmatpush2.bf16.msra.mxu0 %v3712
        %3800 = vmatprep.mubr.bf16.mxu0 %v3502
        %3801 = vmatmul.mubr.bf16.gmra.mxu0 %v3501
        %v3802 = vpop.f32.mrf.mxu0
        %v3803 = vadd.f32 %v3574, %v3802
        %v3804 = vpop.f32.mrf.mxu0
        %v3805 = vpop.f32.mrf.mxu0
        %v3806 = vadd.f32 %v3574, %v3805
        %v3807 = vpop.f32.mrf.mxu0
        %3808 = vdwg.mxu0
        %3809 = vmatprep.subr.bf16.mxu0 0
        %3810 = vmatpush1.bf16.msra.mxu0 %v3727
        %3811 = vmatprep.subr.bf16.mxu0 0
        %3812 = vmatpush1.bf16.msra.mxu0 %v3726
        %3813 = vmatprep.subr.bf16.mxu0 0
        %3814 = vmatpush1.bf16.msra.mxu0 %v3725
        %3815 = vmatprep.subr.bf16.mxu0 0
        %3816 = vmatpush1.bf16.msra.mxu0 %v3724
        %3817 = vmatprep.subr.bf16.mxu0 0
        %3818 = vmatpush1.bf16.msra.mxu0 %v3723
        %3819 = vmatprep.subr.bf16.mxu0 0
        %3820 = vmatpush1.bf16.msra.mxu0 %v3722
        %3821 = vmatprep.subr.bf16.mxu0 0
        %3822 = vmatpush1.bf16.msra.mxu0 %v3721
        %3823 = vmatprep.subr.bf16.mxu0 0
        %3824 = vmatpush1.bf16.msra.mxu0 %v3720
        %3825 = vmatprep.subr.bf16.mxu0 0
        %3826 = vmatpush2.bf16.msra.mxu0 %v3735
        %3827 = vmatprep.subr.bf16.mxu0 0
        %3828 = vmatpush2.bf16.msra.mxu0 %v3734
        %3829 = vmatprep.subr.bf16.mxu0 0
        %3830 = vmatpush2.bf16.msra.mxu0 %v3733
        %3831 = vmatprep.subr.bf16.mxu0 0
        %3832 = vmatpush2.bf16.msra.mxu0 %v3732
        %3833 = vmatprep.subr.bf16.mxu0 0
        %3834 = vmatpush2.bf16.msra.mxu0 %v3731
        %3835 = vmatprep.subr.bf16.mxu0 0
        %3836 = vmatpush2.bf16.msra.mxu0 %v3730
        %3837 = vmatprep.subr.bf16.mxu0 0
        %3838 = vmatpush2.bf16.msra.mxu0 %v3729
        %3839 = vmatprep.subr.bf16.mxu0 0
        %3840 = vmatpush2.bf16.msra.mxu0 %v3728
        %3841 = vmatprep.mubr.bf16.mxu0 %v3504
        %3842 = vmatmul.mubr.bf16.gmra.mxu0 %v3503
        %v3843 = vpop.f32.mrf.mxu0
        %v3844 = vadd.f32 %v3803, %v3843
        %v3845 = vpop.f32.mrf.mxu0
        %v3846 = vpop.f32.mrf.mxu0
        %v3847 = vadd.f32 %v3806, %v3846
        %v3848 = vpop.f32.mrf.mxu0
        %3849 = vdwg.mxu0
        %v3850 = vadd.f32 %v3150, %v3844
        %v3851 = vadd.f32 %v3151, %v3847
        %3852 = vst [vmem:[#allocation2] sm:$0xff] %v3850
        %3853 = vst [vmem:[#allocation2 + $0x8] sm:$0xff] %v3851
        %p3854 = scmp.eq.s32.totalorder %s38, 2
        // Predicated region
        $region101: #{forward.1} parent=83 // pred_check
          %p3855 = pneg %p3854
        $region102: #{forward.1} parent=83 // pred_check_branch
          %3857 = sbr.rel (%p3855) target = $region104
        $region103: #{forward.1} parent=83 // pred_region
          %v3860 = vrot.slane %v3851, 7
          %3863 = vst [vmem:[%s788 - $0x7] sm:$0x80] %v3850
          %3864 = vst [vmem:[%s788 + $0x1] sm:$0x1] %v3860
        $region104: #{forward.1} parent=83 // pred_fallthru
          _
        %p3865 = scmp.lt.s32.totalorder %s37, 0
        %s3866 = scalar_select %p3865, %s37, 0
        %s3867 = smul.addr %s3866, 2
        %s3868 = scalar_lea.vmem %s16, %s3867
        // Predicated region
        $region105: #{forward.1} parent=83 // pred_check
          %p3869 = pneg %p464
        $region106: #{forward.1} parent=83 // pred_check_branch
          %3871 = sbr.rel (%p3869) target = $region108
        $region107: #{forward.1} parent=83 // pred_region
          _
        $region108: #{forward.1} parent=83 // pred_fallthru
          _
        // Predicated region
        $region109: #{forward.1} parent=83 // pred_check
          %p3872 = pneg %p464
        $region110: #{forward.1} parent=83 // pred_check_branch
          %3874 = sbr.rel (%p3872) target = $region112
        $region111: #{forward.1} parent=83 // pred_region
          %p3875 = scmp.lt.s32.totalorder %s37, 0
          %s3876 = scalar_select %p3875, %s37, 0
          %s3877 = smul.addr %s3876, 2
          %s3878 = scalar_lea.vmem %s16, %s3877
        $region112: #{forward.1} parent=83 // pred_fallthru
          _
      $region84: #{forward.1} parent=5 // pred_fallthru
        _
      %p3879 = scmp.le.s32.totalorder 2, %s28
      // Predicated region
      $region113: #{forward.1} parent=5 // pred_check
        %p3880 = pneg %p3879
      $region114: #{forward.1} parent=5 // pred_check_branch
        %3882 = sbr.rel (%p3880) target = $region116
      $region115: #{forward.1} parent=5 // pred_region
        %s3883 = ssub.s32 %s28, 2
      $region116: #{forward.1} parent=5 // pred_fallthru
        _
    $region6: #{forward.1} parent=1 // loop_footer
      %s32 = sadd.s32 1, %s28
    $region7: #{forward.1} parent=1 // loop_footer_branch
      %27 = sbr.rel target = $region3
    $region8: #{forward.1} parent=1 // loop_exit
      _
    %3884 = vsyncpa [#allocation4], 1
    %s3885 = scalar_lea.sflag [#allocation4], 1
    %3886 = vsyncpa %s3885, 1
    %3887 = vsyncpa [#allocation6], 1
    %s3888 = scalar_lea.sflag [#allocation6], 1
    %3889 = vsyncpa %s3888, 1

</llo_original>
